<compile_context>
chip_gen: v7x
topology: tpu7x:2x2x1
jax: 0.10.0
libtpu: 0.0.40
codegen_flags: <defaults>
</compile_context>

<pallas_src>
import functools
import math

import jax
import jax.numpy as jnp
from jax import lax
from jax.experimental import pallas as pl
from jax.experimental.pallas import tpu as pltpu


def emau_kernel(x_ref, w1_ref, b1_ref, w2_ref, mu0_ref, out_ref, mu_out_ref, *,
                stage_num, mxu_dtype, n_valid, pad_rows):
    # x_ref:   (1, C, N)  input feature map for this batch element
    # w1_ref:  (C, C)     conv1 1x1 weight   b1_ref: (C, 1) conv1 bias
    # w2_ref:  (C, C)     conv2 1x1 weight (no bias)
    # mu0_ref: (C, K)     initial bases (shared across batch)
    f32 = jnp.float32

    def mx(v):
        # Cast MXU operands only (accumulation is always f32 via preferred_element_type).
        return v if mxu_dtype is None else v.astype(mxu_dtype)

    c, k = mu0_ref.shape
    n = x_ref.shape[-1]

    b1 = b1_ref[...].astype(f32)                       # (C, 1)
    mu = mu0_ref[...].astype(f32)                      # (C, K); normalization math in f32

    # conv1 (1x1): x1 = W1 @ x + b1   (C, N), f32 accumulation.
    x1 = jnp.dot(mx(w1_ref[...]), mx(x_ref[0]), preferred_element_type=f32) + b1

    # Augment conv1's output with a ones row (at row C) so a single MXU pass per EM
    # stage yields both the mu numerator and sum_N(z).  This mxu-dtype copy is the
    # only (C, N)-sized array kept live across the EM loop (the f32 x1 dies here).
    op_dt = x1.dtype if mxu_dtype is None else jnp.dtype(mxu_dtype)
    row_ids = lax.broadcasted_iota(jnp.int32, (pad_rows, n), 0)
    ones_pad = jnp.where(row_ids == 0, 1.0, 0.0).astype(op_dt)
    aug = jnp.concatenate([mx(x1), ones_pad], axis=0)          # (C+pad, N)

    col_mask = None
    if n_valid < n:
        # Zero the softmax mass of padded columns so they contribute to neither
        # sum_N(z) nor the mu numerator nor the reconstruction.
        col_ids = lax.broadcasted_iota(jnp.int32, (1, n), 1)
        col_mask = (col_ids < n_valid).astype(f32)

    mu_zeros = jnp.zeros((pad_rows, k), dtype=op_dt)           # zero rows: contribute +0

    zT_mx = None
    # EM iterations (stage_num is small & static -> unrolled Python loop).
    for _ in range(stage_num):
        mu_aug = jnp.concatenate([mx(mu), mu_zeros], axis=0)   # (C+pad, K)
        # z^T = mu^T @ x1 -> (K, N): K on sublanes, N (lane-dense) on lanes.
        zT = lax.dot_general(mu_aug, aug, (((0,), (0,)), ((), ())),
                             preferred_element_type=f32)
        # softmax over K (axis 0), f32; denominator as per-lane reciprocal (EUP) + mul.
        zT = jnp.exp(zT - jnp.max(zT, axis=0, keepdims=True))
        zT = zT * pl.reciprocal(jnp.sum(zT, axis=0, keepdims=True))
        if col_mask is not None:
            zT = zT * col_mask
        zT_mx = mx(zT)

        # One MXU pass: rows [:C] = x1 @ z (mu numerator), row C = sum_N(z).
        res = lax.dot_general(aug, zT_mx, (((1,), (1,)), ((), ())),
                              preferred_element_type=f32)      # (C+pad, K)
        colsum = res[c:c + 1]                                  # (1, K)
        # mu = (x1 @ z) / (1e-6 + sum_N z): the per-column scale commutes with the
        # N-contraction, so the z_ normalization is folded in here.  approx recip is
        # safe: this scale cancels (up to the 1e-6 eps interplay, ~1e-6 relative) in
        # the l2 normalization right below.
        mu = res[:c] * pl.reciprocal(1e-6 + colsum, approx=True)
        # l2-normalize mu along C (eps placement kept: 1e-6 + sqrt(ss)).
        norm = jnp.sqrt(jnp.sum(mu * mu, axis=0, keepdims=True))
        mu = mu * pl.reciprocal(1e-6 + norm)

    # x_rec = mu @ z^T -> (C, N); ReLU + cast to mxu dtype BEFORE conv2 so at most
    # one f32 (C, N) array (y) is live at a time.
    x_rec = jnp.dot(mx(mu), zT_mx, preferred_element_type=f32)
    x_rec = mx(jnp.maximum(x_rec, 0.0))
    y = jnp.dot(mx(w2_ref[...]), x_rec, preferred_element_type=f32)
    # Re-read the identity branch here instead of holding an f32 copy across the kernel.
    y = jnp.maximum(y + x_ref[0].astype(f32), 0.0)

    out_ref[0] = y.astype(out_ref.dtype)
    mu_out_ref[0] = mu.astype(mu_out_ref.dtype)


def _round_up(v, m):
    return -(-v // m) * m


def _aligned_dim(v, base, preferred=256, max_overhead=0.125):
    """Round up to the v6e/v7x MXU tile (256) when the padding overhead is small,
    otherwise just to the layout minimum `base` (sublane pack / 128 lanes)."""
    vp = _round_up(v, preferred)
    if vp - v <= max_overhead * v:
        return vp
    return _round_up(v, base)


def _vmem_capacity_bytes():
    try:
        cap = getattr(pltpu.get_tpu_info(), "vmem_capacity_bytes", None)
        if cap:
            return int(cap)
    except Exception:
        pass
    return 64 * 1024 * 1024   # conservative fallback (v7x-sized VMEM)


def _build_emau_call(b, cp, npad, k, x_dtype, stage_num, mxu_dtype, n_valid,
                     pad_rows, vmem_limit, cost, single_buffered_params):
    kernel = functools.partial(emau_kernel, stage_num=stage_num, mxu_dtype=mxu_dtype,
                               n_valid=n_valid, pad_rows=pad_rows)

    def param_spec(shape):
        if single_buffered_params:
            # Constant blocks (index map never changes): single buffer is enough;
            # saves ~2*C^2 + C*K elements of VMEM (matters when squeezing v7x).
            return pl.BlockSpec(shape, lambda i: (0,) * len(shape),
                                pipeline_mode=pl.Buffered(1))
        return pl.BlockSpec(shape, lambda i: (0,) * len(shape))

    return pl.pallas_call(
        kernel,
        out_shape=(jax.ShapeDtypeStruct((b, cp, npad), x_dtype),
                   jax.ShapeDtypeStruct((b, cp, k), x_dtype)),
        grid_spec=pltpu.PrefetchScalarGridSpec(
            num_scalar_prefetch=0,
            grid=(b,),
            in_specs=[
                # x / out keep the default 2-deep buffering (hides DMA on v5e HBM BW).
                pl.BlockSpec((1, cp, npad), lambda i: (i, 0, 0)),   # x (per-batch block)
                param_spec((cp, cp)),                               # conv1 weight
                param_spec((cp, 1)),                                # conv1 bias
                param_spec((cp, cp)),                               # conv2 weight
                param_spec((cp, k)),                                # mu0
            ],
            out_specs=[
                pl.BlockSpec((1, cp, npad), lambda i: (i, 0, 0)),
                pl.BlockSpec((1, cp, k), lambda i: (i, 0, 0)),
            ],
        ),
        compiler_params=pltpu.CompilerParams(
            # Batch axis shards across v7x's 2 TensorCores.
            # TODO(synk): with B==1 (or odd B) one v7x core idles; an explicit
            # core_map split over N-chunks (+ small cross-core mu reduction through
            # VMEM_SHARED) would recover it.
            dimension_semantics=("parallel",),
            vmem_limit_bytes=vmem_limit),
        cost_estimate=cost,
    )


def emau_forward(x_nchw, w1, b1, w2, mu0, stage_num=3, mxu_dtype=jnp.bfloat16):
    """EMAU forward.  x_nchw: (B, C, H, W) -> (out (B, C, H, W), mu (B, C, K)).

    mxu_dtype: dtype of the MXU operands for the five big matmuls (default bf16:
    ~3-6x MXU throughput on v5e/v6e/v7x and half the operand VMEM).  Accumulation,
    softmax and all normalization math stay f32.  Pass None for the exact path.
    """
    assert stage_num >= 1, "EMAU needs at least one EM iteration (z is undefined otherwise)"
    b, c, h, w = x_nchw.shape
    n = h * w
    k = mu0.shape[-1]
    dsize = x_nchw.dtype.itemsize
    msize = jnp.dtype(mxu_dtype).itemsize if mxu_dtype is not None else 4
    f32b = 4

    # Layout / MXU alignment: C to the sublane pack, N to a lane multiple, both
    # rounded to 256 when cheap (v6e/v7x MXU tile); v5e only needs 128 but tolerates it.
    c_base = 8 if msize >= 4 else (16 if msize == 2 else 32)
    pad_rows = c_base                      # appended ones/zeros rows stay tile-aligned
    cp = _aligned_dim(c, c_base)
    npad = _aligned_dim(n, 128)

    x = x_nchw.reshape(b, c, n)
    if cp != c or npad != n:
        x = jnp.pad(x, ((0, 0), (0, cp - c), (0, npad - n)))
    if cp != c:
        # Zero-padded channels are exactly transparent: padded w1/w2 rows & cols and
        # padded b1/mu0 entries are zero, so padded channels of every intermediate
        # stay zero and are sliced off below.
        w1 = jnp.pad(w1, ((0, cp - c), (0, cp - c)))
        w2 = jnp.pad(w2, ((0, cp - c), (0, cp - c)))
        b1 = jnp.pad(b1, ((0, cp - c),))
        mu0 = jnp.pad(mu0, ((0, cp - c), (0, 0)))

    # --- VMEM budget per grid step, counting peak liveness. ---
    io_block = cp * npad * dsize
    mu_block = cp * k * dsize
    param_bytes = (2 * cp * cp + cp + cp * k) * dsize
    aug_bytes = msize * (cp + pad_rows) * npad
    interm_peak = max(
        # conv1 + aug build: casted x block + f32 x1 + mxu x1 copy + aug
        msize * cp * npad + f32b * cp * npad + msize * cp * npad + aug_bytes,
        # EM stage: aug + f32 zT + mxu zT
        aug_bytes + (f32b + msize) * k * npad,
        # reconstruction: aug + mxu zT + f32 x_rec
        aug_bytes + msize * k * npad + f32b * cp * npad,
        # conv2 + residual: mxu x_rec + f32 y
        msize * cp * npad + f32b * cp * npad + msize * k * npad,
    ) + f32b * (8 * cp * k + 8 * k + 2 * npad)     # mu / mu_aug / norms / mask / misc
    # x & out double-buffered, mu_out double-buffered; params counted double-buffered
    # (conservative, in case pl.Buffered(1) is not honored).
    vmem_needed = 2 * (2 * io_block) + 2 * mu_block + 2 * param_bytes + interm_peak

    cap = _vmem_capacity_bytes()
    vmem_limit = int(min(max(int(1.25 * vmem_needed), 16 * 1024 * 1024),
                         int(0.85 * cap)))        # ~108 MiB on v5e/v6e, ~54 MiB on v7x
    # TODO(synk): if 1.25*vmem_needed exceeds ~0.85*VMEM (v7x at C~512, N~8-9k f32),
    # tile N inside the kernel instead: keep x/out at memory_space=pl.ANY and run
    # pltpu.emit_pipeline over ~1-2k-lane N chunks, accumulating x1@zT and colsum per
    # EM stage and recomputing zT chunks in the epilogue for x_rec/conv2/residual.

    flops = b * (2 * 2 * cp * cp * npad                                   # conv1 + conv2
                 + stage_num * 2 * (2 * (cp + pad_rows) * k * npad)       # zT + fused mu/colsum
                 + 2 * cp * k * npad)                                     # reconstruction
    cost = pl.CostEstimate(
        flops=int(flops),
        transcendentals=int(b * stage_num * (k * npad + npad + 2 * k)),
        bytes_accessed=int(b * (2 * cp * npad + cp * k) * dsize + param_bytes))

    args = (x, w1, b1.reshape(cp, 1), w2, mu0)
    out = mu = None
    last_err = None
    for single_buffered in (True, False):
        try:
            call = _build_emau_call(b, cp, npad, k, x.dtype, stage_num, mxu_dtype,
                                    n, pad_rows, vmem_limit, cost, single_buffered)
            out, mu = call(*args)
            jax.block_until_ready((out, mu))
            break
        except Exception as e:   # pl.Buffered(1) unsupported -> default double buffering
            last_err = e
            out = mu = None
    if out is None:
        raise last_err

    out = out[:, :c, :n].reshape(b, c, h, w)
    mu = mu[:, :c, :]
    return out, mu


def emau_reference(x_nchw, w1, b1, w2, mu0, stage_num=3):
    """Pure-JAX reference mirroring the PyTorch forward, for validation."""
    b, c, h, w = x_nchw.shape
    n = h * w
    idn = x_nchw.reshape(b, c, n)
    x = jnp.einsum('oc,bcn->bon', w1, idn) + b1[None, :, None]
    mu = jnp.broadcast_to(mu0, (b,) + mu0.shape)
    z = None
    for _ in range(stage_num):
        z = jnp.einsum('bcn,bck->bnk', x, mu)
        z = jax.nn.softmax(z, axis=2)
        z_ = z / (1e-6 + jnp.sum(z, axis=1, keepdims=True))
        mu = jnp.einsum('bcn,bnk->bck', x, z_)
        mu = mu / (1e-6 + jnp.linalg.norm(mu, axis=1, keepdims=True))
    xr = jnp.einsum('bck,bnk->bcn', mu, z)
    xr = jnp.maximum(xr, 0.0)
    y = jnp.einsum('oc,bcn->bon', w2, xr)
    y = jnp.maximum(y + idn, 0.0)
    return y.reshape(b, c, h, w), mu


if __name__ == "__main__":
    STAGE_NUM = 3

    def make_inputs(key, b, c, k, h, w):
        k_x, k_mu, k_w1, k_b1, k_w2 = jax.random.split(key, 5)
        x = jax.random.normal(k_x, (b, c, h, w), dtype=jnp.float32)
        mu0 = jax.random.normal(k_mu, (c, k), dtype=jnp.float32) * math.sqrt(2.0 / k)
        mu0 = mu0 / (1e-6 + jnp.linalg.norm(mu0, axis=0, keepdims=True))
        w1 = jax.random.normal(k_w1, (c, c), dtype=jnp.float32) * math.sqrt(2.0 / c)
        w2 = jax.random.normal(k_w2, (c, c), dtype=jnp.float32) * math.sqrt(2.0 / c)
        bound = 1.0 / math.sqrt(c)
        b1 = jax.random.uniform(k_b1, (c,), dtype=jnp.float32, minval=-bound, maxval=bound)
        return x, w1, b1, w2, mu0

    def rel_err(a, b):
        a = jnp.asarray(a, jnp.float32)
        b = jnp.asarray(b, jnp.float32)
        return float(jnp.linalg.norm(a - b) / (jnp.linalg.norm(b) + 1e-12))

    # --- Test 1: aligned small shapes; default bf16-MXU path + exact f32 path. ---
    B, C, K, H, W = 2, 64, 32, 16, 16
    x, w1, b1, w2, mu0 = make_inputs(jax.random.PRNGKey(0), B, C, K, H, W)
    out_ref, mu_ref = emau_reference(x, w1, b1, w2, mu0, stage_num=STAGE_NUM)

    out_bf, mu_bf = emau_forward(x, w1, b1, w2, mu0, stage_num=STAGE_NUM)  # default: bf16 MXU
    out_bf = jax.block_until_ready(out_bf)
    mu_bf = jax.block_until_ready(mu_bf)
    assert out_bf.shape == (B, C, H, W) and mu_bf.shape == (B, C, K)
    # bf16 MXU operands with f32 accumulation: sanity-level agreement vs f32 reference.
    assert rel_err(out_bf, out_ref) < 5e-2, f"bf16 out rel err {rel_err(out_bf, out_ref)}"
    assert rel_err(mu_bf, mu_ref) < 1e-1, f"bf16 mu rel err {rel_err(mu_bf, mu_ref)}"

    out_f32, mu_f32 = emau_forward(x, w1, b1, w2, mu0, stage_num=STAGE_NUM, mxu_dtype=None)
    out_f32 = jax.block_until_ready(out_f32)
    mu_f32 = jax.block_until_ready(mu_f32)
    assert jnp.allclose(out_f32, out_ref, rtol=1e-3, atol=1e-3)
    assert jnp.allclose(mu_f32, mu_ref, rtol=1e-3, atol=1e-3)

    # --- Test 2: unaligned shapes (exercises C/N zero-padding + softmax-mass mask). ---
    B2, C2, K2, H2, W2 = 2, 60, 32, 15, 15
    x2, w12, b12, w22, mu02 = make_inputs(jax.random.PRNGKey(1), B2, C2, K2, H2, W2)
    out2_ref, mu2_ref = emau_reference(x2, w12, b12, w22, mu02, stage_num=STAGE_NUM)
    out2, mu2 = emau_forward(x2, w12, b12, w22, mu02, stage_num=STAGE_NUM, mxu_dtype=None)
    out2 = jax.block_until_ready(out2)
    mu2 = jax.block_until_ready(mu2)
    assert out2.shape == (B2, C2, H2, W2) and mu2.shape == (B2, C2, K2)
    assert jnp.allclose(out2, out2_ref, rtol=1e-3, atol=1e-3)
    assert jnp.allclose(mu2, mu2_ref, rtol=1e-3, atol=1e-3)

    print("KERNEL_OK")
</pallas_src>

<mosaic_0001>
module attributes {stable_mosaic.version = 11 : i64} {
  func.func @emau_kernel(%arg0: i32, %arg1: memref<1x64x256xf32, #tpu.memory_space<vmem>>, %arg2: memref<64x64xf32, #tpu.memory_space<vmem>>, %arg3: memref<64x1xf32, #tpu.memory_space<vmem>>, %arg4: memref<64x64xf32, #tpu.memory_space<vmem>>, %arg5: memref<64x32xf32, #tpu.memory_space<vmem>>, %arg6: memref<1x64x256xf32, #tpu.memory_space<vmem>>, %arg7: memref<1x64x32xf32, #tpu.memory_space<vmem>>) attributes {dimension_semantics = [#tpu.dimension_semantics<parallel>], iteration_bounds = array<i64: 2>, scalar_prefetch = 0 : i64, scratch_operands = 0 : i64, tpu.core_type = #tpu.core_type<tc>, window_params = [{transform_indices = @transform_0, window_bounds = array<i64: 1, 64, 256>}, {pipeline_mode = #tpu.pipeline_mode<synchronous>, transform_indices = @transform_1, window_bounds = array<i64: 64, 64>}, {pipeline_mode = #tpu.pipeline_mode<synchronous>, transform_indices = @transform_2, window_bounds = array<i64: 64, 1>}, {pipeline_mode = #tpu.pipeline_mode<synchronous>, transform_indices = @transform_3, window_bounds = array<i64: 64, 64>}, {pipeline_mode = #tpu.pipeline_mode<synchronous>, transform_indices = @transform_4, window_bounds = array<i64: 64, 32>}, {transform_indices = @transform_5, window_bounds = array<i64: 1, 64, 256>}, {transform_indices = @transform_6, window_bounds = array<i64: 1, 64, 32>}]} {
    %c0 = arith.constant 0 : index
    %c0_0 = arith.constant 0 : index
    %0 = vector.load %arg3[%c0, %c0_0] : memref<64x1xf32, #tpu.memory_space<vmem>>, vector<64x1xf32>
    %c0_1 = arith.constant 0 : index
    %c0_2 = arith.constant 0 : index
    %1 = vector.load %arg5[%c0_1, %c0_2] : memref<64x32xf32, #tpu.memory_space<vmem>>, vector<64x32xf32>
    %c0_3 = arith.constant 0 : index
    %c0_4 = arith.constant 0 : index
    %2 = vector.load %arg2[%c0_3, %c0_4] : memref<64x64xf32, #tpu.memory_space<vmem>>, vector<64x64xf32>
    %3 = arith.truncf %2 : vector<64x64xf32> to vector<64x64xbf16>
    %c0_5 = arith.constant 0 : index
    %c0_6 = arith.constant 0 : index
    %c0_7 = arith.constant 0 : index
    %4 = vector.load %arg1[%c0_5, %c0_6, %c0_7] : memref<1x64x256xf32, #tpu.memory_space<vmem>>, vector<1x64x256xf32>
    %5 = vector.shape_cast %4 : vector<1x64x256xf32> to vector<64x256xf32>
    %6 = arith.truncf %5 : vector<64x256xf32> to vector<64x256xbf16>
    %cst = arith.constant dense<0.000000e+00> : vector<64x256xf32>
    %7 = tpu.matmul %3, %6, %cst {dimension_numbers = #tpu.dot_dimension_numbers<[1], [0], [0], [1], [0, 0, 1, 1], [], []>} : vector<64x64xbf16>, vector<64x256xbf16>, vector<64x256xf32> -> vector<64x256xf32>
    %8 = vector.broadcast %0 : vector<64x1xf32> to vector<64x256xf32>
    %9 = arith.addf %7, %8 : vector<64x256xf32>
    %10 = tpu.iota {dimensions = array<i32: 0>} : vector<16x256xi32>
    %c0_i32 = arith.constant 0 : i32
    %11 = vector.broadcast %c0_i32 : i32 to vector<16x256xi32>
    %12 = arith.cmpi eq, %10, %11 : vector<16x256xi32>
    %cst_8 = arith.constant 1.000000e+00 : f32
    %cst_9 = arith.constant 0.000000e+00 : f32
    %13 = vector.broadcast %cst_8 : f32 to vector<16x256xf32>
    %14 = vector.broadcast %cst_9 : f32 to vector<16x256xf32>
    %15 = arith.select %12, %13, %14 : vector<16x256xi1>, vector<16x256xf32>
    %16 = arith.truncf %15 : vector<16x256xf32> to vector<16x256xbf16>
    %17 = arith.truncf %9 : vector<64x256xf32> to vector<64x256xbf16>
    %18 = tpu.concatenate %17, %16 in 0 : vector<64x256xbf16>, vector<16x256xbf16> -> vector<80x256xbf16>
    %cst_10 = arith.constant 0.000000e+00 : bf16
    %19 = vector.broadcast %cst_10 : bf16 to vector<16x32xbf16>
    %20 = arith.truncf %1 : vector<64x32xf32> to vector<64x32xbf16>
    %21 = tpu.concatenate %20, %19 in 0 : vector<64x32xbf16>, vector<16x32xbf16> -> vector<80x32xbf16>
    %cst_11 = arith.constant dense<0.000000e+00> : vector<32x256xf32>
    %22 = tpu.matmul %21, %18, %cst_11 {dimension_numbers = #tpu.dot_dimension_numbers<[0], [0], [1], [1], [0, 1, 1, 1], [], []>} : vector<80x32xbf16>, vector<80x256xbf16>, vector<32x256xf32> -> vector<32x256xf32>
    %cst_12 = arith.constant dense<0xFF800000> : vector<256xf32>
    %23 = vector.multi_reduction <maximumf>, %22, %cst_12 [0] : vector<32x256xf32> to vector<256xf32>
    %24 = vector.shape_cast %23 : vector<256xf32> to vector<1x256xf32>
    %25 = vector.broadcast %24 : vector<1x256xf32> to vector<32x256xf32>
    %26 = arith.subf %22, %25 : vector<32x256xf32>
    %27 = math.exp %26 : vector<32x256xf32>
    %cst_13 = arith.constant dense<0.000000e+00> : vector<256xf32>
    %28 = vector.multi_reduction <add>, %27, %cst_13 [0] : vector<32x256xf32> to vector<256xf32>
    %29 = vector.shape_cast %28 : vector<256xf32> to vector<1x256xf32>
    %30 = tpu.reciprocal %29 : vector<1x256xf32> -> vector<1x256xf32>
    %31 = vector.broadcast %30 : vector<1x256xf32> to vector<32x256xf32>
    %32 = arith.mulf %27, %31 : vector<32x256xf32>
    %33 = arith.truncf %32 : vector<32x256xf32> to vector<32x256xbf16>
    %cst_14 = arith.constant dense<0.000000e+00> : vector<80x32xf32>
    %34 = tpu.matmul %18, %33, %cst_14 {dimension_numbers = #tpu.dot_dimension_numbers<[1], [1], [0], [0], [0, 0, 1, 0], [], []>} : vector<80x256xbf16>, vector<32x256xbf16>, vector<80x32xf32> -> vector<80x32xf32>
    %35 = vector.extract_strided_slice %34 {offsets = [64, 0], sizes = [1, 32], strides = [1, 1]} : vector<80x32xf32> to vector<1x32xf32>
    %36 = vector.extract_strided_slice %34 {offsets = [0, 0], sizes = [64, 32], strides = [1, 1]} : vector<80x32xf32> to vector<64x32xf32>
    %cst_15 = arith.constant 9.99999997E-7 : f32
    %37 = vector.broadcast %cst_15 : f32 to vector<1x32xf32>
    %38 = arith.addf %37, %35 : vector<1x32xf32>
    %39 = tpu.reciprocal %38 {approx = true} : vector<1x32xf32> -> vector<1x32xf32>
    %40 = vector.broadcast %39 : vector<1x32xf32> to vector<64x32xf32>
    %41 = arith.mulf %36, %40 : vector<64x32xf32>
    %42 = arith.mulf %41, %41 : vector<64x32xf32>
    %cst_16 = arith.constant dense<0.000000e+00> : vector<32xf32>
    %43 = vector.multi_reduction <add>, %42, %cst_16 [0] : vector<64x32xf32> to vector<32xf32>
    %44 = vector.shape_cast %43 : vector<32xf32> to vector<1x32xf32>
    %45 = math.sqrt %44 : vector<1x32xf32>
    %cst_17 = arith.constant 9.99999997E-7 : f32
    %46 = vector.broadcast %cst_17 : f32 to vector<1x32xf32>
    %47 = arith.addf %46, %45 : vector<1x32xf32>
    %48 = tpu.reciprocal %47 : vector<1x32xf32> -> vector<1x32xf32>
    %49 = vector.broadcast %48 : vector<1x32xf32> to vector<64x32xf32>
    %50 = arith.mulf %41, %49 : vector<64x32xf32>
    %51 = arith.truncf %50 : vector<64x32xf32> to vector<64x32xbf16>
    %52 = tpu.concatenate %51, %19 in 0 : vector<64x32xbf16>, vector<16x32xbf16> -> vector<80x32xbf16>
    %cst_18 = arith.constant dense<0.000000e+00> : vector<32x256xf32>
    %53 = tpu.matmul %52, %18, %cst_18 {dimension_numbers = #tpu.dot_dimension_numbers<[0], [0], [1], [1], [0, 1, 1, 1], [], []>} : vector<80x32xbf16>, vector<80x256xbf16>, vector<32x256xf32> -> vector<32x256xf32>
    %cst_19 = arith.constant dense<0xFF800000> : vector<256xf32>
    %54 = vector.multi_reduction <maximumf>, %53, %cst_19 [0] : vector<32x256xf32> to vector<256xf32>
    %55 = vector.shape_cast %54 : vector<256xf32> to vector<1x256xf32>
    %56 = vector.broadcast %55 : vector<1x256xf32> to vector<32x256xf32>
    %57 = arith.subf %53, %56 : vector<32x256xf32>
    %58 = math.exp %57 : vector<32x256xf32>
    %cst_20 = arith.constant dense<0.000000e+00> : vector<256xf32>
    %59 = vector.multi_reduction <add>, %58, %cst_20 [0] : vector<32x256xf32> to vector<256xf32>
    %60 = vector.shape_cast %59 : vector<256xf32> to vector<1x256xf32>
    %61 = tpu.reciprocal %60 : vector<1x256xf32> -> vector<1x256xf32>
    %62 = vector.broadcast %61 : vector<1x256xf32> to vector<32x256xf32>
    %63 = arith.mulf %58, %62 : vector<32x256xf32>
    %64 = arith.truncf %63 : vector<32x256xf32> to vector<32x256xbf16>
    %cst_21 = arith.constant dense<0.000000e+00> : vector<80x32xf32>
    %65 = tpu.matmul %18, %64, %cst_21 {dimension_numbers = #tpu.dot_dimension_numbers<[1], [1], [0], [0], [0, 0, 1, 0], [], []>} : vector<80x256xbf16>, vector<32x256xbf16>, vector<80x32xf32> -> vector<80x32xf32>
    %66 = vector.extract_strided_slice %65 {offsets = [64, 0], sizes = [1, 32], strides = [1, 1]} : vector<80x32xf32> to vector<1x32xf32>
    %67 = vector.extract_strided_slice %65 {offsets = [0, 0], sizes = [64, 32], strides = [1, 1]} : vector<80x32xf32> to vector<64x32xf32>
    %cst_22 = arith.constant 9.99999997E-7 : f32
    %68 = vector.broadcast %cst_22 : f32 to vector<1x32xf32>
    %69 = arith.addf %68, %66 : vector<1x32xf32>
    %70 = tpu.reciprocal %69 {approx = true} : vector<1x32xf32> -> vector<1x32xf32>
    %71 = vector.broadcast %70 : vector<1x32xf32> to vector<64x32xf32>
    %72 = arith.mulf %67, %71 : vector<64x32xf32>
    %73 = arith.mulf %72, %72 : vector<64x32xf32>
    %cst_23 = arith.constant dense<0.000000e+00> : vector<32xf32>
    %74 = vector.multi_reduction <add>, %73, %cst_23 [0] : vector<64x32xf32> to vector<32xf32>
    %75 = vector.shape_cast %74 : vector<32xf32> to vector<1x32xf32>
    %76 = math.sqrt %75 : vector<1x32xf32>
    %cst_24 = arith.constant 9.99999997E-7 : f32
    %77 = vector.broadcast %cst_24 : f32 to vector<1x32xf32>
    %78 = arith.addf %77, %76 : vector<1x32xf32>
    %79 = tpu.reciprocal %78 : vector<1x32xf32> -> vector<1x32xf32>
    %80 = vector.broadcast %79 : vector<1x32xf32> to vector<64x32xf32>
    %81 = arith.mulf %72, %80 : vector<64x32xf32>
    %82 = arith.truncf %81 : vector<64x32xf32> to vector<64x32xbf16>
    %83 = tpu.concatenate %82, %19 in 0 : vector<64x32xbf16>, vector<16x32xbf16> -> vector<80x32xbf16>
    %cst_25 = arith.constant dense<0.000000e+00> : vector<32x256xf32>
    %84 = tpu.matmul %83, %18, %cst_25 {dimension_numbers = #tpu.dot_dimension_numbers<[0], [0], [1], [1], [0, 1, 1, 1], [], []>} : vector<80x32xbf16>, vector<80x256xbf16>, vector<32x256xf32> -> vector<32x256xf32>
    %cst_26 = arith.constant dense<0xFF800000> : vector<256xf32>
    %85 = vector.multi_reduction <maximumf>, %84, %cst_26 [0] : vector<32x256xf32> to vector<256xf32>
    %86 = vector.shape_cast %85 : vector<256xf32> to vector<1x256xf32>
    %87 = vector.broadcast %86 : vector<1x256xf32> to vector<32x256xf32>
    %88 = arith.subf %84, %87 : vector<32x256xf32>
    %89 = math.exp %88 : vector<32x256xf32>
    %cst_27 = arith.constant dense<0.000000e+00> : vector<256xf32>
    %90 = vector.multi_reduction <add>, %89, %cst_27 [0] : vector<32x256xf32> to vector<256xf32>
    %91 = vector.shape_cast %90 : vector<256xf32> to vector<1x256xf32>
    %92 = tpu.reciprocal %91 : vector<1x256xf32> -> vector<1x256xf32>
    %93 = vector.broadcast %92 : vector<1x256xf32> to vector<32x256xf32>
    %94 = arith.mulf %89, %93 : vector<32x256xf32>
    %95 = arith.truncf %94 : vector<32x256xf32> to vector<32x256xbf16>
    %cst_28 = arith.constant dense<0.000000e+00> : vector<80x32xf32>
    %96 = tpu.matmul %18, %95, %cst_28 {dimension_numbers = #tpu.dot_dimension_numbers<[1], [1], [0], [0], [0, 0, 1, 0], [], []>} : vector<80x256xbf16>, vector<32x256xbf16>, vector<80x32xf32> -> vector<80x32xf32>
    %97 = vector.extract_strided_slice %96 {offsets = [64, 0], sizes = [1, 32], strides = [1, 1]} : vector<80x32xf32> to vector<1x32xf32>
    %98 = vector.extract_strided_slice %96 {offsets = [0, 0], sizes = [64, 32], strides = [1, 1]} : vector<80x32xf32> to vector<64x32xf32>
    %cst_29 = arith.constant 9.99999997E-7 : f32
    %99 = vector.broadcast %cst_29 : f32 to vector<1x32xf32>
    %100 = arith.addf %99, %97 : vector<1x32xf32>
    %101 = tpu.reciprocal %100 {approx = true} : vector<1x32xf32> -> vector<1x32xf32>
    %102 = vector.broadcast %101 : vector<1x32xf32> to vector<64x32xf32>
    %103 = arith.mulf %98, %102 : vector<64x32xf32>
    %104 = arith.mulf %103, %103 : vector<64x32xf32>
    %cst_30 = arith.constant dense<0.000000e+00> : vector<32xf32>
    %105 = vector.multi_reduction <add>, %104, %cst_30 [0] : vector<64x32xf32> to vector<32xf32>
    %106 = vector.shape_cast %105 : vector<32xf32> to vector<1x32xf32>
    %107 = math.sqrt %106 : vector<1x32xf32>
    %cst_31 = arith.constant 9.99999997E-7 : f32
    %108 = vector.broadcast %cst_31 : f32 to vector<1x32xf32>
    %109 = arith.addf %108, %107 : vector<1x32xf32>
    %110 = tpu.reciprocal %109 : vector<1x32xf32> -> vector<1x32xf32>
    %111 = vector.broadcast %110 : vector<1x32xf32> to vector<64x32xf32>
    %112 = arith.mulf %103, %111 : vector<64x32xf32>
    %113 = arith.truncf %112 : vector<64x32xf32> to vector<64x32xbf16>
    %cst_32 = arith.constant dense<0.000000e+00> : vector<64x256xf32>
    %114 = tpu.matmul %113, %95, %cst_32 {dimension_numbers = #tpu.dot_dimension_numbers<[1], [0], [0], [1], [0, 0, 1, 1], [], []>} : vector<64x32xbf16>, vector<32x256xbf16>, vector<64x256xf32> -> vector<64x256xf32>
    %cst_33 = arith.constant 0.000000e+00 : f32
    %115 = vector.broadcast %cst_33 : f32 to vector<64x256xf32>
    %116 = arith.maximumf %114, %115 : vector<64x256xf32>
    %117 = arith.truncf %116 : vector<64x256xf32> to vector<64x256xbf16>
    %c0_34 = arith.constant 0 : index
    %c0_35 = arith.constant 0 : index
    %118 = vector.load %arg4[%c0_34, %c0_35] : memref<64x64xf32, #tpu.memory_space<vmem>>, vector<64x64xf32>
    %119 = arith.truncf %118 : vector<64x64xf32> to vector<64x64xbf16>
    %cst_36 = arith.constant dense<0.000000e+00> : vector<64x256xf32>
    %120 = tpu.matmul %119, %117, %cst_36 {dimension_numbers = #tpu.dot_dimension_numbers<[1], [0], [0], [1], [0, 0, 1, 1], [], []>} : vector<64x64xbf16>, vector<64x256xbf16>, vector<64x256xf32> -> vector<64x256xf32>
    %c0_37 = arith.constant 0 : index
    %c0_38 = arith.constant 0 : index
    %c0_39 = arith.constant 0 : index
    %121 = vector.load %arg1[%c0_37, %c0_38, %c0_39] : memref<1x64x256xf32, #tpu.memory_space<vmem>>, vector<1x64x256xf32>
    %122 = vector.shape_cast %121 : vector<1x64x256xf32> to vector<64x256xf32>
    %123 = arith.addf %120, %122 : vector<64x256xf32>
    %cst_40 = arith.constant 0.000000e+00 : f32
    %124 = vector.broadcast %cst_40 : f32 to vector<64x256xf32>
    %125 = arith.maximumf %123, %124 : vector<64x256xf32>
    %c0_41 = arith.constant 0 : index
    %c0_42 = arith.constant 0 : index
    %c0_43 = arith.constant 0 : index
    %126 = vector.load %arg6[%c0_41, %c0_42, %c0_43] : memref<1x64x256xf32, #tpu.memory_space<vmem>>, vector<1x64x256xf32>
    %127 = vector.shape_cast %126 : vector<1x64x256xf32> to vector<64x256xf32>
    %128 = vector.shape_cast %125 : vector<64x256xf32> to vector<1x64x256xf32>
    tpu.vector_store %arg6[%c0_41, %c0_42, %c0_43], %128 {strides = array<i32>} : memref<1x64x256xf32, #tpu.memory_space<vmem>>, vector<1x64x256xf32>,
    %c0_44 = arith.constant 0 : index
    %c0_45 = arith.constant 0 : index
    %c0_46 = arith.constant 0 : index
    %129 = vector.load %arg7[%c0_44, %c0_45, %c0_46] : memref<1x64x32xf32, #tpu.memory_space<vmem>>, vector<1x64x32xf32>
    %130 = vector.shape_cast %129 : vector<1x64x32xf32> to vector<64x32xf32>
    %131 = vector.shape_cast %112 : vector<64x32xf32> to vector<1x64x32xf32>
    tpu.vector_store %arg7[%c0_44, %c0_45, %c0_46], %131 {strides = array<i32>} : memref<1x64x32xf32, #tpu.memory_space<vmem>>, vector<1x64x32xf32>,
    return
  }
  func.func @transform_0(%arg0: i32) -> (i32, i32, i32) {
    %c0_i32 = arith.constant 0 : i32
    %c0_i32_0 = arith.constant 0 : i32
    %c0_i32_1 = arith.constant 0 : i32
    return %arg0, %c0_i32, %c0_i32_0 : i32, i32, i32
  }
  func.func @transform_1(%arg0: i32) -> (i32, i32) {
    %c0_i32 = arith.constant 0 : i32
    %c0_i32_0 = arith.constant 0 : i32
    %c0_i32_1 = arith.constant 0 : i32
    return %c0_i32, %c0_i32_0 : i32, i32
  }
  func.func @transform_2(%arg0: i32) -> (i32, i32) {
    %c0_i32 = arith.constant 0 : i32
    %c0_i32_0 = arith.constant 0 : i32
    %c0_i32_1 = arith.constant 0 : i32
    return %c0_i32, %c0_i32_0 : i32, i32
  }
  func.func @transform_3(%arg0: i32) -> (i32, i32) {
    %c0_i32 = arith.constant 0 : i32
    %c0_i32_0 = arith.constant 0 : i32
    %c0_i32_1 = arith.constant 0 : i32
    return %c0_i32, %c0_i32_0 : i32, i32
  }
  func.func @transform_4(%arg0: i32) -> (i32, i32) {
    %c0_i32 = arith.constant 0 : i32
    %c0_i32_0 = arith.constant 0 : i32
    %c0_i32_1 = arith.constant 0 : i32
    return %c0_i32, %c0_i32_0 : i32, i32
  }
  func.func @transform_5(%arg0: i32) -> (i32, i32, i32) {
    %c0_i32 = arith.constant 0 : i32
    %c0_i32_0 = arith.constant 0 : i32
    %c0_i32_1 = arith.constant 0 : i32
    return %arg0, %c0_i32, %c0_i32_0 : i32, i32, i32
  }
  func.func @transform_6(%arg0: i32) -> (i32, i32, i32) {
    %c0_i32 = arith.constant 0 : i32
    %c0_i32_0 = arith.constant 0 : i32
    %c0_i32_1 = arith.constant 0 : i32
    return %arg0, %c0_i32, %c0_i32_0 : i32, i32, i32
  }
}

module attributes {stable_mosaic.version = 11 : i64} {
  func.func @emau_kernel(%arg0: i32, %arg1: memref<1x64x256xf32, #tpu.memory_space<vmem>>, %arg2: memref<64x64xf32, #tpu.memory_space<vmem>>, %arg3: memref<64x1xf32, #tpu.memory_space<vmem>>, %arg4: memref<64x64xf32, #tpu.memory_space<vmem>>, %arg5: memref<64x32xf32, #tpu.memory_space<vmem>>, %arg6: memref<1x64x256xf32, #tpu.memory_space<vmem>>, %arg7: memref<1x64x32xf32, #tpu.memory_space<vmem>>) attributes {dimension_semantics = [#tpu.dimension_semantics<parallel>], iteration_bounds = array<i64: 2>, scalar_prefetch = 0 : i64, scratch_operands = 0 : i64, tpu.core_type = #tpu.core_type<tc>, window_params = [{transform_indices = @transform_0, window_bounds = array<i64: 1, 64, 256>}, {pipeline_mode = #tpu.pipeline_mode<synchronous>, transform_indices = @transform_1, window_bounds = array<i64: 64, 64>}, {pipeline_mode = #tpu.pipeline_mode<synchronous>, transform_indices = @transform_2, window_bounds = array<i64: 64, 1>}, {pipeline_mode = #tpu.pipeline_mode<synchronous>, transform_indices = @transform_3, window_bounds = array<i64: 64, 64>}, {pipeline_mode = #tpu.pipeline_mode<synchronous>, transform_indices = @transform_4, window_bounds = array<i64: 64, 32>}, {transform_indices = @transform_5, window_bounds = array<i64: 1, 64, 256>}, {transform_indices = @transform_6, window_bounds = array<i64: 1, 64, 32>}]} {
    %c0 = arith.constant 0 : index
    %c0_0 = arith.constant 0 : index
    %0 = vector.load %arg3[%c0, %c0_0] : memref<64x1xf32, #tpu.memory_space<vmem>>, vector<64x1xf32>
    %c0_1 = arith.constant 0 : index
    %c0_2 = arith.constant 0 : index
    %1 = vector.load %arg5[%c0_1, %c0_2] : memref<64x32xf32, #tpu.memory_space<vmem>>, vector<64x32xf32>
    %c0_3 = arith.constant 0 : index
    %c0_4 = arith.constant 0 : index
    %2 = vector.load %arg2[%c0_3, %c0_4] : memref<64x64xf32, #tpu.memory_space<vmem>>, vector<64x64xf32>
    %3 = arith.truncf %2 : vector<64x64xf32> to vector<64x64xbf16>
    %c0_5 = arith.constant 0 : index
    %c0_6 = arith.constant 0 : index
    %c0_7 = arith.constant 0 : index
    %4 = vector.load %arg1[%c0_5, %c0_6, %c0_7] : memref<1x64x256xf32, #tpu.memory_space<vmem>>, vector<1x64x256xf32>
    %5 = vector.shape_cast %4 : vector<1x64x256xf32> to vector<64x256xf32>
    %6 = arith.truncf %5 : vector<64x256xf32> to vector<64x256xbf16>
    %cst = arith.constant dense<0.000000e+00> : vector<64x256xf32>
    %7 = tpu.matmul %3, %6, %cst {dimension_numbers = #tpu.dot_dimension_numbers<[1], [0], [0], [1], [0, 0, 1, 1], [], []>} : vector<64x64xbf16>, vector<64x256xbf16>, vector<64x256xf32> -> vector<64x256xf32>
    %8 = vector.broadcast %0 : vector<64x1xf32> to vector<64x256xf32>
    %9 = arith.addf %7, %8 : vector<64x256xf32>
    %10 = tpu.iota {dimensions = array<i32: 0>} : vector<16x256xi32>
    %c0_i32 = arith.constant 0 : i32
    %11 = vector.broadcast %c0_i32 : i32 to vector<16x256xi32>
    %12 = arith.cmpi eq, %10, %11 : vector<16x256xi32>
    %cst_8 = arith.constant 1.000000e+00 : f32
    %cst_9 = arith.constant 0.000000e+00 : f32
    %13 = vector.broadcast %cst_8 : f32 to vector<16x256xf32>
    %14 = vector.broadcast %cst_9 : f32 to vector<16x256xf32>
    %15 = arith.select %12, %13, %14 : vector<16x256xi1>, vector<16x256xf32>
    %16 = arith.truncf %15 : vector<16x256xf32> to vector<16x256xbf16>
    %17 = arith.truncf %9 : vector<64x256xf32> to vector<64x256xbf16>
    %18 = tpu.concatenate %17, %16 in 0 : vector<64x256xbf16>, vector<16x256xbf16> -> vector<80x256xbf16>
    %cst_10 = arith.constant 0.000000e+00 : bf16
    %19 = vector.broadcast %cst_10 : bf16 to vector<16x32xbf16>
    %20 = arith.truncf %1 : vector<64x32xf32> to vector<64x32xbf16>
    %21 = tpu.concatenate %20, %19 in 0 : vector<64x32xbf16>, vector<16x32xbf16> -> vector<80x32xbf16>
    %cst_11 = arith.constant dense<0.000000e+00> : vector<32x256xf32>
    %22 = tpu.matmul %21, %18, %cst_11 {dimension_numbers = #tpu.dot_dimension_numbers<[0], [0], [1], [1], [0, 1, 1, 1], [], []>} : vector<80x32xbf16>, vector<80x256xbf16>, vector<32x256xf32> -> vector<32x256xf32>
    %cst_12 = arith.constant dense<0xFF800000> : vector<256xf32>
    %23 = vector.multi_reduction <maximumf>, %22, %cst_12 [0] : vector<32x256xf32> to vector<256xf32>
    %24 = vector.shape_cast %23 : vector<256xf32> to vector<1x256xf32>
    %25 = vector.broadcast %24 : vector<1x256xf32> to vector<32x256xf32>
    %26 = arith.subf %22, %25 : vector<32x256xf32>
    %27 = math.exp %26 : vector<32x256xf32>
    %cst_13 = arith.constant dense<0.000000e+00> : vector<256xf32>
    %28 = vector.multi_reduction <add>, %27, %cst_13 [0] : vector<32x256xf32> to vector<256xf32>
    %29 = vector.shape_cast %28 : vector<256xf32> to vector<1x256xf32>
    %30 = tpu.reciprocal %29 : vector<1x256xf32> -> vector<1x256xf32>
    %31 = vector.broadcast %30 : vector<1x256xf32> to vector<32x256xf32>
    %32 = arith.mulf %27, %31 : vector<32x256xf32>
    %33 = arith.truncf %32 : vector<32x256xf32> to vector<32x256xbf16>
    %cst_14 = arith.constant dense<0.000000e+00> : vector<80x32xf32>
    %34 = tpu.matmul %18, %33, %cst_14 {dimension_numbers = #tpu.dot_dimension_numbers<[1], [1], [0], [0], [0, 0, 1, 0], [], []>} : vector<80x256xbf16>, vector<32x256xbf16>, vector<80x32xf32> -> vector<80x32xf32>
    %35 = vector.extract_strided_slice %34 {offsets = [64, 0], sizes = [1, 32], strides = [1, 1]} : vector<80x32xf32> to vector<1x32xf32>
    %36 = vector.extract_strided_slice %34 {offsets = [0, 0], sizes = [64, 32], strides = [1, 1]} : vector<80x32xf32> to vector<64x32xf32>
    %cst_15 = arith.constant 9.99999997E-7 : f32
    %37 = vector.broadcast %cst_15 : f32 to vector<1x32xf32>
    %38 = arith.addf %37, %35 : vector<1x32xf32>
    %39 = tpu.reciprocal %38 {approx = true} : vector<1x32xf32> -> vector<1x32xf32>
    %40 = vector.broadcast %39 : vector<1x32xf32> to vector<64x32xf32>
    %41 = arith.mulf %36, %40 : vector<64x32xf32>
    %42 = arith.mulf %41, %41 : vector<64x32xf32>
    %cst_16 = arith.constant dense<0.000000e+00> : vector<32xf32>
    %43 = vector.multi_reduction <add>, %42, %cst_16 [0] : vector<64x32xf32> to vector<32xf32>
    %44 = vector.shape_cast %43 : vector<32xf32> to vector<1x32xf32>
    %45 = math.sqrt %44 : vector<1x32xf32>
    %cst_17 = arith.constant 9.99999997E-7 : f32
    %46 = vector.broadcast %cst_17 : f32 to vector<1x32xf32>
    %47 = arith.addf %46, %45 : vector<1x32xf32>
    %48 = tpu.reciprocal %47 : vector<1x32xf32> -> vector<1x32xf32>
    %49 = vector.broadcast %48 : vector<1x32xf32> to vector<64x32xf32>
    %50 = arith.mulf %41, %49 : vector<64x32xf32>
    %51 = arith.truncf %50 : vector<64x32xf32> to vector<64x32xbf16>
    %52 = tpu.concatenate %51, %19 in 0 : vector<64x32xbf16>, vector<16x32xbf16> -> vector<80x32xbf16>
    %cst_18 = arith.constant dense<0.000000e+00> : vector<32x256xf32>
    %53 = tpu.matmul %52, %18, %cst_18 {dimension_numbers = #tpu.dot_dimension_numbers<[0], [0], [1], [1], [0, 1, 1, 1], [], []>} : vector<80x32xbf16>, vector<80x256xbf16>, vector<32x256xf32> -> vector<32x256xf32>
    %cst_19 = arith.constant dense<0xFF800000> : vector<256xf32>
    %54 = vector.multi_reduction <maximumf>, %53, %cst_19 [0] : vector<32x256xf32> to vector<256xf32>
    %55 = vector.shape_cast %54 : vector<256xf32> to vector<1x256xf32>
    %56 = vector.broadcast %55 : vector<1x256xf32> to vector<32x256xf32>
    %57 = arith.subf %53, %56 : vector<32x256xf32>
    %58 = math.exp %57 : vector<32x256xf32>
    %cst_20 = arith.constant dense<0.000000e+00> : vector<256xf32>
    %59 = vector.multi_reduction <add>, %58, %cst_20 [0] : vector<32x256xf32> to vector<256xf32>
    %60 = vector.shape_cast %59 : vector<256xf32> to vector<1x256xf32>
    %61 = tpu.reciprocal %60 : vector<1x256xf32> -> vector<1x256xf32>
    %62 = vector.broadcast %61 : vector<1x256xf32> to vector<32x256xf32>
    %63 = arith.mulf %58, %62 : vector<32x256xf32>
    %64 = arith.truncf %63 : vector<32x256xf32> to vector<32x256xbf16>
    %cst_21 = arith.constant dense<0.000000e+00> : vector<80x32xf32>
    %65 = tpu.matmul %18, %64, %cst_21 {dimension_numbers = #tpu.dot_dimension_numbers<[1], [1], [0], [0], [0, 0, 1, 0], [], []>} : vector<80x256xbf16>, vector<32x256xbf16>, vector<80x32xf32> -> vector<80x32xf32>
    %66 = vector.extract_strided_slice %65 {offsets = [64, 0], sizes = [1, 32], strides = [1, 1]} : vector<80x32xf32> to vector<1x32xf32>
    %67 = vector.extract_strided_slice %65 {offsets = [0, 0], sizes = [64, 32], strides = [1, 1]} : vector<80x32xf32> to vector<64x32xf32>
    %cst_22 = arith.constant 9.99999997E-7 : f32
    %68 = vector.broadcast %cst_22 : f32 to vector<1x32xf32>
    %69 = arith.addf %68, %66 : vector<1x32xf32>
    %70 = tpu.reciprocal %69 {approx = true} : vector<1x32xf32> -> vector<1x32xf32>
    %71 = vector.broadcast %70 : vector<1x32xf32> to vector<64x32xf32>
    %72 = arith.mulf %67, %71 : vector<64x32xf32>
    %73 = arith.mulf %72, %72 : vector<64x32xf32>
    %cst_23 = arith.constant dense<0.000000e+00> : vector<32xf32>
    %74 = vector.multi_reduction <add>, %73, %cst_23 [0] : vector<64x32xf32> to vector<32xf32>
    %75 = vector.shape_cast %74 : vector<32xf32> to vector<1x32xf32>
    %76 = math.sqrt %75 : vector<1x32xf32>
    %cst_24 = arith.constant 9.99999997E-7 : f32
    %77 = vector.broadcast %cst_24 : f32 to vector<1x32xf32>
    %78 = arith.addf %77, %76 : vector<1x32xf32>
    %79 = tpu.reciprocal %78 : vector<1x32xf32> -> vector<1x32xf32>
    %80 = vector.broadcast %79 : vector<1x32xf32> to vector<64x32xf32>
    %81 = arith.mulf %72, %80 : vector<64x32xf32>
    %82 = arith.truncf %81 : vector<64x32xf32> to vector<64x32xbf16>
    %83 = tpu.concatenate %82, %19 in 0 : vector<64x32xbf16>, vector<16x32xbf16> -> vector<80x32xbf16>
    %cst_25 = arith.constant dense<0.000000e+00> : vector<32x256xf32>
    %84 = tpu.matmul %83, %18, %cst_25 {dimension_numbers = #tpu.dot_dimension_numbers<[0], [0], [1], [1], [0, 1, 1, 1], [], []>} : vector<80x32xbf16>, vector<80x256xbf16>, vector<32x256xf32> -> vector<32x256xf32>
    %cst_26 = arith.constant dense<0xFF800000> : vector<256xf32>
    %85 = vector.multi_reduction <maximumf>, %84, %cst_26 [0] : vector<32x256xf32> to vector<256xf32>
    %86 = vector.shape_cast %85 : vector<256xf32> to vector<1x256xf32>
    %87 = vector.broadcast %86 : vector<1x256xf32> to vector<32x256xf32>
    %88 = arith.subf %84, %87 : vector<32x256xf32>
    %89 = math.exp %88 : vector<32x256xf32>
    %cst_27 = arith.constant dense<0.000000e+00> : vector<256xf32>
    %90 = vector.multi_reduction <add>, %89, %cst_27 [0] : vector<32x256xf32> to vector<256xf32>
    %91 = vector.shape_cast %90 : vector<256xf32> to vector<1x256xf32>
    %92 = tpu.reciprocal %91 : vector<1x256xf32> -> vector<1x256xf32>
    %93 = vector.broadcast %92 : vector<1x256xf32> to vector<32x256xf32>
    %94 = arith.mulf %89, %93 : vector<32x256xf32>
    %95 = arith.truncf %94 : vector<32x256xf32> to vector<32x256xbf16>
    %cst_28 = arith.constant dense<0.000000e+00> : vector<80x32xf32>
    %96 = tpu.matmul %18, %95, %cst_28 {dimension_numbers = #tpu.dot_dimension_numbers<[1], [1], [0], [0], [0, 0, 1, 0], [], []>} : vector<80x256xbf16>, vector<32x256xbf16>, vector<80x32xf32> -> vector<80x32xf32>
    %97 = vector.extract_strided_slice %96 {offsets = [64, 0], sizes = [1, 32], strides = [1, 1]} : vector<80x32xf32> to vector<1x32xf32>
    %98 = vector.extract_strided_slice %96 {offsets = [0, 0], sizes = [64, 32], strides = [1, 1]} : vector<80x32xf32> to vector<64x32xf32>
    %cst_29 = arith.constant 9.99999997E-7 : f32
    %99 = vector.broadcast %cst_29 : f32 to vector<1x32xf32>
    %100 = arith.addf %99, %97 : vector<1x32xf32>
    %101 = tpu.reciprocal %100 {approx = true} : vector<1x32xf32> -> vector<1x32xf32>
    %102 = vector.broadcast %101 : vector<1x32xf32> to vector<64x32xf32>
    %103 = arith.mulf %98, %102 : vector<64x32xf32>
    %104 = arith.mulf %103, %103 : vector<64x32xf32>
    %cst_30 = arith.constant dense<0.000000e+00> : vector<32xf32>
    %105 = vector.multi_reduction <add>, %104, %cst_30 [0] : vector<64x32xf32> to vector<32xf32>
    %106 = vector.shape_cast %105 : vector<32xf32> to vector<1x32xf32>
    %107 = math.sqrt %106 : vector<1x32xf32>
    %cst_31 = arith.constant 9.99999997E-7 : f32
    %108 = vector.broadcast %cst_31 : f32 to vector<1x32xf32>
    %109 = arith.addf %108, %107 : vector<1x32xf32>
    %110 = tpu.reciprocal %109 : vector<1x32xf32> -> vector<1x32xf32>
    %111 = vector.broadcast %110 : vector<1x32xf32> to vector<64x32xf32>
    %112 = arith.mulf %103, %111 : vector<64x32xf32>
    %113 = arith.truncf %112 : vector<64x32xf32> to vector<64x32xbf16>
    %cst_32 = arith.constant dense<0.000000e+00> : vector<64x256xf32>
    %114 = tpu.matmul %113, %95, %cst_32 {dimension_numbers = #tpu.dot_dimension_numbers<[1], [0], [0], [1], [0, 0, 1, 1], [], []>} : vector<64x32xbf16>, vector<32x256xbf16>, vector<64x256xf32> -> vector<64x256xf32>
    %cst_33 = arith.constant 0.000000e+00 : f32
    %115 = vector.broadcast %cst_33 : f32 to vector<64x256xf32>
    %116 = arith.maximumf %114, %115 : vector<64x256xf32>
    %117 = arith.truncf %116 : vector<64x256xf32> to vector<64x256xbf16>
    %c0_34 = arith.constant 0 : index
    %c0_35 = arith.constant 0 : index
    %118 = vector.load %arg4[%c0_34, %c0_35] : memref<64x64xf32, #tpu.memory_space<vmem>>, vector<64x64xf32>
    %119 = arith.truncf %118 : vector<64x64xf32> to vector<64x64xbf16>
    %cst_36 = arith.constant dense<0.000000e+00> : vector<64x256xf32>
    %120 = tpu.matmul %119, %117, %cst_36 {dimension_numbers = #tpu.dot_dimension_numbers<[1], [0], [0], [1], [0, 0, 1, 1], [], []>} : vector<64x64xbf16>, vector<64x256xbf16>, vector<64x256xf32> -> vector<64x256xf32>
    %c0_37 = arith.constant 0 : index
    %c0_38 = arith.constant 0 : index
    %c0_39 = arith.constant 0 : index
    %121 = vector.load %arg1[%c0_37, %c0_38, %c0_39] : memref<1x64x256xf32, #tpu.memory_space<vmem>>, vector<1x64x256xf32>
    %122 = vector.shape_cast %121 : vector<1x64x256xf32> to vector<64x256xf32>
    %123 = arith.addf %120, %122 : vector<64x256xf32>
    %cst_40 = arith.constant 0.000000e+00 : f32
    %124 = vector.broadcast %cst_40 : f32 to vector<64x256xf32>
    %125 = arith.maximumf %123, %124 : vector<64x256xf32>
    %c0_41 = arith.constant 0 : index
    %c0_42 = arith.constant 0 : index
    %c0_43 = arith.constant 0 : index
    %126 = vector.load %arg6[%c0_41, %c0_42, %c0_43] : memref<1x64x256xf32, #tpu.memory_space<vmem>>, vector<1x64x256xf32>
    %127 = vector.shape_cast %126 : vector<1x64x256xf32> to vector<64x256xf32>
    %128 = vector.shape_cast %125 : vector<64x256xf32> to vector<1x64x256xf32>
    tpu.vector_store %arg6[%c0_41, %c0_42, %c0_43], %128 {strides = array<i32>} : memref<1x64x256xf32, #tpu.memory_space<vmem>>, vector<1x64x256xf32>,
    %c0_44 = arith.constant 0 : index
    %c0_45 = arith.constant 0 : index
    %c0_46 = arith.constant 0 : index
    %129 = vector.load %arg7[%c0_44, %c0_45, %c0_46] : memref<1x64x32xf32, #tpu.memory_space<vmem>>, vector<1x64x32xf32>
    %130 = vector.shape_cast %129 : vector<1x64x32xf32> to vector<64x32xf32>
    %131 = vector.shape_cast %112 : vector<64x32xf32> to vector<1x64x32xf32>
    tpu.vector_store %arg7[%c0_44, %c0_45, %c0_46], %131 {strides = array<i32>} : memref<1x64x32xf32, #tpu.memory_space<vmem>>, vector<1x64x32xf32>,
    return
  }
  func.func @transform_0(%arg0: i32) -> (i32, i32, i32) {
    %c0_i32 = arith.constant 0 : i32
    %c0_i32_0 = arith.constant 0 : i32
    %c0_i32_1 = arith.constant 0 : i32
    return %arg0, %c0_i32, %c0_i32_0 : i32, i32, i32
  }
  func.func @transform_1(%arg0: i32) -> (i32, i32) {
    %c0_i32 = arith.constant 0 : i32
    %c0_i32_0 = arith.constant 0 : i32
    %c0_i32_1 = arith.constant 0 : i32
    return %c0_i32, %c0_i32_0 : i32, i32
  }
  func.func @transform_2(%arg0: i32) -> (i32, i32) {
    %c0_i32 = arith.constant 0 : i32
    %c0_i32_0 = arith.constant 0 : i32
    %c0_i32_1 = arith.constant 0 : i32
    return %c0_i32, %c0_i32_0 : i32, i32
  }
  func.func @transform_3(%arg0: i32) -> (i32, i32) {
    %c0_i32 = arith.constant 0 : i32
    %c0_i32_0 = arith.constant 0 : i32
    %c0_i32_1 = arith.constant 0 : i32
    return %c0_i32, %c0_i32_0 : i32, i32
  }
  func.func @transform_4(%arg0: i32) -> (i32, i32) {
    %c0_i32 = arith.constant 0 : i32
    %c0_i32_0 = arith.constant 0 : i32
    %c0_i32_1 = arith.constant 0 : i32
    return %c0_i32, %c0_i32_0 : i32, i32
  }
  func.func @transform_5(%arg0: i32) -> (i32, i32, i32) {
    %c0_i32 = arith.constant 0 : i32
    %c0_i32_0 = arith.constant 0 : i32
    %c0_i32_1 = arith.constant 0 : i32
    return %arg0, %c0_i32, %c0_i32_0 : i32, i32, i32
  }
  func.func @transform_6(%arg0: i32) -> (i32, i32, i32) {
    %c0_i32 = arith.constant 0 : i32
    %c0_i32_0 = arith.constant 0 : i32
    %c0_i32_1 = arith.constant 0 : i32
    return %arg0, %c0_i32, %c0_i32_0 : i32, i32, i32
  }
}

</mosaic_0001>

<llo_original>
// kernel: tpu_custom_call.1
$region0: #{tpu_custom_call.1}
  #allocation0 [shape = 'u32[]', space=smem, size = 0x4, offset = 0x4, fixed_abs, tag = 'smem constant byte address 0x4 - core index']
  #allocation1 [shape = 'u32[144,128]{1,0:T(1,128)}', space=vmem, size = 0x12000, scoped, tag = 'internal scratch']
  %s0 = inlined_call_operand.hbm [shape: f32[2,64,256], index: 0, kind: input, shape index: {}]
  %s1 = inlined_call_operand.vmem [shape: f32[64,64], index: 1, kind: input, shape index: {}]
  %s2 = inlined_call_operand.vmem [shape: f32[64,1], index: 2, kind: input, shape index: {}]
  %s3 = inlined_call_operand.vmem [shape: f32[64,64], index: 3, kind: input, shape index: {}]
  %s4 = inlined_call_operand.vmem [shape: f32[64,32], index: 4, kind: input, shape index: {}]
  %s5 = inlined_call_operand.hbm [shape: f32[2,64,256], index: 5, kind: output, shape index: {0}]
  %s6 = inlined_call_operand.vmem [shape: f32[2,64,32], index: 6, kind: output, shape index: {1}]
  %7 = xla_tuple %s5, %s6
  %s8 = sld [smem:[#allocation0]]
  $region65: #{tpu_custom_call.1} parent=0
    _
  %s10 = ssub.s32 1, %s8
  %s11 = scalar_select 0, %s10, %s8
  $region1: #{tpu_custom_call.1} parent=0
    #allocation2 [shape = 'u8[131072]{0}', space=vmem, size = 0x20000, scoped, tag = 'input window, operand 0']
    #allocation3 [shape = 's32[2]{0}', space=sflag, size = 0x8, scoped, tag = 'scoped memory for tpu_custom_call.1']
    #allocation4 [shape = 's32[2]{0}', space=sflag, size = 0x8, scoped, tag = 'scoped memory for tpu_custom_call.1']
    #allocation5 [shape = 'u8[131072]{0}', space=vmem, size = 0x20000, scoped, tag = 'output window, operand 0']
    %12 = vsyncpa [#allocation3], 0
    %s13 = scalar_lea.sflag [#allocation3], 1
    %14 = vsyncpa %s13, 0
    %15 = vsyncpa [#allocation4], 0
    %s16 = scalar_lea.sflag [#allocation4], 1
    %17 = vsyncpa %s16, 0
    loop: start=0, step=1, limit=4
    $region2: #{tpu_custom_call.1} parent=1 // loop_pre_header
      _
    $region3: #{tpu_custom_call.1} parent=1 // loop_header
      %s19 = sphi 0, %s23
      %p20 = scmp.ge.s32.totalorder %s19, 4
      %s29 = sphi 0, %s31
      %s32 = sphi 0, %s29
      %s33 = sphi 0, %s32
      %s49 = sphi 0, %s33
      %s53 = sphi 0, %s53
      %s55 = sphi 0, %s53
      %s56 = sphi 0, %s55
      %s70 = sphi 0, %s56
      %s74 = sphi 0, %s74
      %s76 = sphi 0, %s74
      %s77 = sphi 0, %s76
      %s91 = sphi 0, %s77
      %s95 = sphi 0, %s95
      %s97 = sphi 0, %s95
      %s98 = sphi 0, %s97
      %s112 = sphi 0, %s98
      %s116 = sphi 0, %s116
      %s118 = sphi 0, %s116
      %s119 = sphi 0, %s118
      %s133 = sphi 0, %s119
      %s139 = sphi 0, %s141
      %s142 = sphi 0, %s139
      %s143 = sphi 0, %s142
      %s159 = sphi 0, %s143
      %s165 = sphi 0, %s167
      %s168 = sphi 0, %s165
      %s169 = sphi 0, %s168
      %s185 = sphi 0, %s169
    $region4: #{tpu_custom_call.1} parent=1 // loop_header_branch
      %22 = sbr.rel (%p20) target = $region8
    $region5: #{tpu_custom_call.1} parent=1 // loop_body
      %s24 = ssub.s32 %s19, 1
      %s25 = ssub.s32 %s19, 2
      %s26 = sadd.s32 %s19, 1
      %s27 = ssub.s32 %s19, %s26
      %p28 = scmp.eq.s32.totalorder %s27, 0
      %s30 = sadd.s32 %s29, 1
      %s31 = scalar_select %p28, %s29, %s30
      %p34 = pneg %p28
      %p35 = scmp.eq.s32.totalorder %s19, 1
      %p36 = por %p34, %p35
      %p37 = scmp.ne.s32.totalorder %s29, %s32
      %p38 = scmp.eq.s32.totalorder %s19, 0
      %p39 = por %p37, %p38
      %p40 = scmp.ne.s32.totalorder %s29, %s32
      %p41 = scmp.eq.s32.totalorder %s24, 1
      %p42 = por %p40, %p41
      %p43 = scmp.ne.s32.totalorder %s32, %s33
      %p44 = scmp.eq.s32.totalorder %s24, 0
      %p45 = por %p43, %p44
      %p46 = scmp.ne.s32.totalorder %s32, %s33
      %p47 = scmp.eq.s32.totalorder %s25, 1
      %p48 = por %p46, %p47
      %p50 = scmp.ne.s32.totalorder %s33, %s49
      %p51 = scmp.eq.s32.totalorder %s25, 0
      %p52 = por %p50, %p51
      %s54 = sadd.s32 %s53, 1
      %p57 = scmp.eq.s32.totalorder %s19, 1
      %p58 = scmp.ne.s32.totalorder %s53, %s55
      %p59 = scmp.eq.s32.totalorder %s19, 0
      %p60 = por %p58, %p59
      %p61 = scmp.ne.s32.totalorder %s53, %s55
      %p62 = scmp.eq.s32.totalorder %s24, 1
      %p63 = por %p61, %p62
      %p64 = scmp.ne.s32.totalorder %s55, %s56
      %p65 = scmp.eq.s32.totalorder %s24, 0
      %p66 = por %p64, %p65
      %p67 = scmp.ne.s32.totalorder %s55, %s56
      %p68 = scmp.eq.s32.totalorder %s25, 1
      %p69 = por %p67, %p68
      %p71 = scmp.ne.s32.totalorder %s56, %s70
      %p72 = scmp.eq.s32.totalorder %s25, 0
      %p73 = por %p71, %p72
      %s75 = sadd.s32 %s74, 1
      %p78 = scmp.eq.s32.totalorder %s19, 1
      %p79 = scmp.ne.s32.totalorder %s74, %s76
      %p80 = scmp.eq.s32.totalorder %s19, 0
      %p81 = por %p79, %p80
      %p82 = scmp.ne.s32.totalorder %s74, %s76
      %p83 = scmp.eq.s32.totalorder %s24, 1
      %p84 = por %p82, %p83
      %p85 = scmp.ne.s32.totalorder %s76, %s77
      %p86 = scmp.eq.s32.totalorder %s24, 0
      %p87 = por %p85, %p86
      %p88 = scmp.ne.s32.totalorder %s76, %s77
      %p89 = scmp.eq.s32.totalorder %s25, 1
      %p90 = por %p88, %p89
      %p92 = scmp.ne.s32.totalorder %s77, %s91
      %p93 = scmp.eq.s32.totalorder %s25, 0
      %p94 = por %p92, %p93
      %s96 = sadd.s32 %s95, 1
      %p99 = scmp.eq.s32.totalorder %s19, 1
      %p100 = scmp.ne.s32.totalorder %s95, %s97
      %p101 = scmp.eq.s32.totalorder %s19, 0
      %p102 = por %p100, %p101
      %p103 = scmp.ne.s32.totalorder %s95, %s97
      %p104 = scmp.eq.s32.totalorder %s24, 1
      %p105 = por %p103, %p104
      %p106 = scmp.ne.s32.totalorder %s97, %s98
      %p107 = scmp.eq.s32.totalorder %s24, 0
      %p108 = por %p106, %p107
      %p109 = scmp.ne.s32.totalorder %s97, %s98
      %p110 = scmp.eq.s32.totalorder %s25, 1
      %p111 = por %p109, %p110
      %p113 = scmp.ne.s32.totalorder %s98, %s112
      %p114 = scmp.eq.s32.totalorder %s25, 0
      %p115 = por %p113, %p114
      %s117 = sadd.s32 %s116, 1
      %p120 = scmp.eq.s32.totalorder %s19, 1
      %p121 = scmp.ne.s32.totalorder %s116, %s118
      %p122 = scmp.eq.s32.totalorder %s19, 0
      %p123 = por %p121, %p122
      %p124 = scmp.ne.s32.totalorder %s116, %s118
      %p125 = scmp.eq.s32.totalorder %s24, 1
      %p126 = por %p124, %p125
      %p127 = scmp.ne.s32.totalorder %s118, %s119
      %p128 = scmp.eq.s32.totalorder %s24, 0
      %p129 = por %p127, %p128
      %p130 = scmp.ne.s32.totalorder %s118, %s119
      %p131 = scmp.eq.s32.totalorder %s25, 1
      %p132 = por %p130, %p131
      %p134 = scmp.ne.s32.totalorder %s119, %s133
      %p135 = scmp.eq.s32.totalorder %s25, 0
      %p136 = por %p134, %p135
      %s137 = ssub.s32 %s19, %s26
      %p138 = scmp.eq.s32.totalorder %s137, 0
      %s140 = sadd.s32 %s139, 1
      %s141 = scalar_select %p138, %s139, %s140
      %p144 = pneg %p138
      %p145 = scmp.eq.s32.totalorder %s19, 1
      %p146 = por %p144, %p145
      %p147 = scmp.ne.s32.totalorder %s139, %s142
      %p148 = scmp.eq.s32.totalorder %s19, 0
      %p149 = por %p147, %p148
      %p150 = scmp.ne.s32.totalorder %s139, %s142
      %p151 = scmp.eq.s32.totalorder %s24, 1
      %p152 = por %p150, %p151
      %p153 = scmp.ne.s32.totalorder %s142, %s143
      %p154 = scmp.eq.s32.totalorder %s24, 0
      %p155 = por %p153, %p154
      %p156 = scmp.ne.s32.totalorder %s142, %s143
      %p157 = scmp.eq.s32.totalorder %s25, 1
      %p158 = por %p156, %p157
      %p160 = scmp.ne.s32.totalorder %s143, %s159
      %p161 = scmp.eq.s32.totalorder %s25, 0
      %p162 = por %p160, %p161
      %s163 = ssub.s32 %s19, %s26
      %p164 = scmp.eq.s32.totalorder %s163, 0
      %s166 = sadd.s32 %s165, 1
      %s167 = scalar_select %p164, %s165, %s166
      %p170 = pneg %p164
      %p171 = scmp.eq.s32.totalorder %s19, 1
      %p172 = por %p170, %p171
      %p173 = scmp.ne.s32.totalorder %s165, %s168
      %p174 = scmp.eq.s32.totalorder %s19, 0
      %p175 = por %p173, %p174
      %p176 = scmp.ne.s32.totalorder %s165, %s168
      %p177 = scmp.eq.s32.totalorder %s24, 1
      %p178 = por %p176, %p177
      %p179 = scmp.ne.s32.totalorder %s168, %s169
      %p180 = scmp.eq.s32.totalorder %s24, 0
      %p181 = por %p179, %p180
      %p182 = scmp.ne.s32.totalorder %s168, %s169
      %p183 = scmp.eq.s32.totalorder %s25, 1
      %p184 = por %p182, %p183
      %p186 = scmp.ne.s32.totalorder %s169, %s185
      %p187 = scmp.eq.s32.totalorder %s25, 0
      %p188 = por %p186, %p187
      %p189 = scmp.le.s32.totalorder 1, %s19
      %p190 = scmp.lt.s32.totalorder %s19, 3
      %p191 = pnand %p189, %p190
      %p192 = pneg %p191
      // Predicated region
      $region9: #{tpu_custom_call.1} parent=5 // pred_check
        _
      $region10: #{tpu_custom_call.1} parent=5 // pred_check_branch
        %194 = sbr.rel (%p191) target = $region12
      $region11: #{tpu_custom_call.1} parent=5 // pred_region
        %s195 = ssub.s32 %s19, 1
        // Predicated region
        $region13: #{tpu_custom_call.1} parent=11 // pred_check
          %p196 = pneg %p66
        $region14: #{tpu_custom_call.1} parent=11 // pred_check_branch
          %198 = sbr.rel (%p196) target = $region16
        $region15: #{tpu_custom_call.1} parent=11 // pred_region
          _
        $region16: #{tpu_custom_call.1} parent=11 // pred_fallthru
          _
        // Predicated region
        $region17: #{tpu_custom_call.1} parent=11 // pred_check
          %p199 = pneg %p87
        $region18: #{tpu_custom_call.1} parent=11 // pred_check_branch
          %201 = sbr.rel (%p199) target = $region20
        $region19: #{tpu_custom_call.1} parent=11 // pred_region
          _
        $region20: #{tpu_custom_call.1} parent=11 // pred_fallthru
          _
        // Predicated region
        $region21: #{tpu_custom_call.1} parent=11 // pred_check
          %p202 = pneg %p108
        $region22: #{tpu_custom_call.1} parent=11 // pred_check_branch
          %204 = sbr.rel (%p202) target = $region24
        $region23: #{tpu_custom_call.1} parent=11 // pred_region
          _
        $region24: #{tpu_custom_call.1} parent=11 // pred_fallthru
          _
        // Predicated region
        $region25: #{tpu_custom_call.1} parent=11 // pred_check
          %p205 = pneg %p129
        $region26: #{tpu_custom_call.1} parent=11 // pred_check_branch
          %207 = sbr.rel (%p205) target = $region28
        $region27: #{tpu_custom_call.1} parent=11 // pred_region
          _
        $region28: #{tpu_custom_call.1} parent=11 // pred_fallthru
          _
      $region12: #{tpu_custom_call.1} parent=5 // pred_fallthru
        _
      %p208 = scmp.lt.s32.totalorder %s19, 2
      // Predicated region
      $region29: #{tpu_custom_call.1} parent=5 // pred_check
        %p209 = pneg %p208
      $region30: #{tpu_custom_call.1} parent=5 // pred_check_branch
        %211 = sbr.rel (%p209) target = $region32
      $region31: #{tpu_custom_call.1} parent=5 // pred_region
        // Predicated region
        $region33: #{tpu_custom_call.1} parent=31 // pred_check
          %p212 = pneg %p39
        $region34: #{tpu_custom_call.1} parent=31 // pred_check_branch
          %214 = sbr.rel (%p212) target = $region36
        $region35: #{tpu_custom_call.1} parent=31 // pred_region
          %s215 = sand.u32 %s29, 1
          %s216 = scalar_lea.sflag [#allocation3], %s215
          %s217 = sand.u32 %s29, 1
          %s218 = smul.addr %s217, 128
          %s219 = scalar_lea.vmem [#allocation2], %s218
          %s221 = ssub.s32 2048, 2048
          %222 = vsyncadd %s216, %s221
          %s223 = smul.addr %s19, 16
          %s224 = smul.addr %s223, 128
          %s225 = scalar_lea.hbm %s0, %s224
          %s226 = sshll.u32 %s219, 4
          %s227 = int_to_ptr.vmem [resolvable:$true] %s226
          %232 = dma.hbm_to_vmem [thread:$0]  %s225, 2048, %s227, %s216, 256, 256, 16
        $region36: #{tpu_custom_call.1} parent=31 // pred_fallthru
          _
      $region32: #{tpu_custom_call.1} parent=5 // pred_fallthru
        _
      %p233 = scmp.le.s32.totalorder 1, %s19
      %p234 = scmp.lt.s32.totalorder %s19, 3
      %p235 = pnand %p233, %p234
      %p236 = pneg %p235
      // Predicated region
      $region37: #{tpu_custom_call.1} parent=5 // pred_check
        _
      $region38: #{tpu_custom_call.1} parent=5 // pred_check_branch
        %238 = sbr.rel (%p235) target = $region40
      $region39: #{tpu_custom_call.1} parent=5 // pred_region
        %s239 = ssub.s32 %s19, 1
        %s240 = sand.u32 %s32, 1
        %s241 = scalar_lea.sflag [#allocation3], %s240
        %s242 = sand.u32 %s32, 1
        %s243 = smul.addr %s242, 128
        %s244 = scalar_lea.vmem [#allocation2], %s243
        // Predicated region
        $region41: #{tpu_custom_call.1} parent=39 // pred_check
          %p245 = pneg %p45
        $region42: #{tpu_custom_call.1} parent=39 // pred_check_branch
          %247 = sbr.rel (%p245) target = $region44
        $region43: #{tpu_custom_call.1} parent=39 // pred_region
          %248 = dma.done %s241, 2048
        $region44: #{tpu_custom_call.1} parent=39 // pred_fallthru
          _
        %s249 = sand.u32 %s32, 1
        %s250 = scalar_lea.sflag [#allocation3], %s249
        %s251 = sand.u32 %s32, 1
        %s252 = smul.addr %s251, 128
        %s253 = scalar_lea.vmem [#allocation2], %s252
        %p254 = pneg %p45
        %p255 = pneg %p42
        %p256 = pneg %p66
        %p257 = pneg %p63
        %p258 = pneg %p87
        %p259 = pneg %p84
        %p260 = pneg %p108
        %p261 = pneg %p105
        %p262 = pneg %p129
        %p263 = pneg %p126
        %p264 = pneg %p155
        %p265 = pneg %p152
        %s266 = sand.u32 %s142, 1
        %s267 = scalar_lea.sflag [#allocation4], %s266
        %s268 = sand.u32 %s142, 1
        %s269 = smul.addr %s268, 128
        %s270 = scalar_lea.vmem [#allocation5], %s269
        %p271 = pneg %p181
        %p272 = pneg %p178
        %p273 = scmp.lt.s32.totalorder %s24, 1
        %s274 = scalar_select %p273, %s24, 1
        %s275 = smul.addr %s274, 8
        %s276 = smul.addr %s275, 8
        %s277 = scalar_lea.vmem %s6, %s276
        %p278 = scmp.lt.s32.totalorder %s24, 1
        %s279 = scalar_select %p278, %s24, 1
        %s280 = smul.addr %s279, 8
        %s281 = smul.addr %s280, 8
        %s282 = scalar_lea.vmem %s6, %s281
        %v284 = vld [vmem:[%s2] sm:$0xff]
        %v285 = vld [vmem:[%s2 + $0x8] sm:$0xff]
        %v286 = vld [vmem:[%s2 + $0x10] sm:$0xff]
        %v287 = vld [vmem:[%s2 + $0x18] sm:$0xff]
        %v288 = vld [vmem:[%s2 + $0x20] sm:$0xff]
        %v289 = vld [vmem:[%s2 + $0x28] sm:$0xff]
        %v290 = vld [vmem:[%s2 + $0x30] sm:$0xff]
        %v291 = vld [vmem:[%s2 + $0x38] sm:$0xff]
        %v292 = vld [vmem:[%s4] sm:$0xff]
        %v293 = vld [vmem:[%s4 + $0x8] sm:$0xff]
        %v294 = vld [vmem:[%s4 + $0x10] sm:$0xff]
        %v295 = vld [vmem:[%s4 + $0x18] sm:$0xff]
        %v296 = vld [vmem:[%s4 + $0x20] sm:$0xff]
        %v297 = vld [vmem:[%s4 + $0x28] sm:$0xff]
        %v298 = vld [vmem:[%s4 + $0x30] sm:$0xff]
        %v299 = vld [vmem:[%s4 + $0x38] sm:$0xff]
        %v300 = vld [vmem:[%s1] sm:$0xff]
        %v301 = vld [vmem:[%s1 + $0x8] sm:$0xff]
        %v302 = vld [vmem:[%s1 + $0x10] sm:$0xff]
        %v303 = vld [vmem:[%s1 + $0x18] sm:$0xff]
        %v304 = vld [vmem:[%s1 + $0x20] sm:$0xff]
        %v305 = vld [vmem:[%s1 + $0x28] sm:$0xff]
        %v306 = vld [vmem:[%s1 + $0x30] sm:$0xff]
        %v307 = vld [vmem:[%s1 + $0x38] sm:$0xff]
        %v308 = vpack.c.bf16 %v301, %v300
        %v309 = vpack.c.bf16 %v303, %v302
        %v310 = vpack.c.bf16 %v305, %v304
        %v311 = vpack.c.bf16 %v307, %v306
        %v312 = vld [vmem:[%s244] sm:$0xff]
        %v313 = vld [vmem:[%s244 + $0x8] sm:$0xff]
        %v314 = vld [vmem:[%s244 + $0x10] sm:$0xff]
        %v315 = vld [vmem:[%s244 + $0x18] sm:$0xff]
        %v316 = vld [vmem:[%s244 + $0x20] sm:$0xff]
        %v317 = vld [vmem:[%s244 + $0x28] sm:$0xff]
        %v318 = vld [vmem:[%s244 + $0x30] sm:$0xff]
        %v319 = vld [vmem:[%s244 + $0x38] sm:$0xff]
        %v320 = vld [vmem:[%s244 + $0x40] sm:$0xff]
        %v321 = vld [vmem:[%s244 + $0x48] sm:$0xff]
        %v322 = vld [vmem:[%s244 + $0x50] sm:$0xff]
        %v323 = vld [vmem:[%s244 + $0x58] sm:$0xff]
        %v324 = vld [vmem:[%s244 + $0x60] sm:$0xff]
        %v325 = vld [vmem:[%s244 + $0x68] sm:$0xff]
        %v326 = vld [vmem:[%s244 + $0x70] sm:$0xff]
        %v327 = vld [vmem:[%s244 + $0x78] sm:$0xff]
        %v328 = vpack.c.bf16 %v314, %v312
        %v329 = vpack.c.bf16 %v315, %v313
        %v330 = vpack.c.bf16 %v318, %v316
        %v331 = vpack.c.bf16 %v319, %v317
        %v332 = vpack.c.bf16 %v322, %v320
        %v333 = vpack.c.bf16 %v323, %v321
        %v334 = vpack.c.bf16 %v326, %v324
        %v335 = vpack.c.bf16 %v327, %v325
        %337 = vset.pattern.permute.xlu0 0
        %338 = vperm.xlu0 %337, %v284
        %v339 = vpop.permute.xlu0 %338
        %342 = vset.pattern.permute.xlu0 0
        %343 = vperm.xlu0 %342, %v285
        %v344 = vpop.permute.xlu0 %343
        %347 = vset.pattern.permute.xlu0 0
        %348 = vperm.xlu0 %347, %v286
        %v349 = vpop.permute.xlu0 %348
        %352 = vset.pattern.permute.xlu0 0
        %353 = vperm.xlu0 %352, %v287
        %v354 = vpop.permute.xlu0 %353
        %357 = vset.pattern.permute.xlu0 0
        %358 = vperm.xlu0 %357, %v288
        %v359 = vpop.permute.xlu0 %358
        %362 = vset.pattern.permute.xlu0 0
        %363 = vperm.xlu0 %362, %v289
        %v364 = vpop.permute.xlu0 %363
        %367 = vset.pattern.permute.xlu0 0
        %368 = vperm.xlu0 %367, %v290
        %v369 = vpop.permute.xlu0 %368
        %372 = vset.pattern.permute.xlu0 0
        %373 = vperm.xlu0 %372, %v291
        %v374 = vpop.permute.xlu0 %373
        %vm376 = vcmask 523264
        %v378 = vsel %vm376, %v308, 0
        %v381 = vsel %vm376, %v309, 0
        %v384 = vsel %vm376, %v310, 0
        %v387 = vsel %vm376, %v311, 0
        %389 = vmatprep.subr.bf16.mxu0 %v329
        %390 = vmatpush1.bf16.msra.mxu0 %v328
        %391 = vmatprep.subr.bf16.mxu0 %v331
        %392 = vmatpush1.bf16.msra.mxu0 %v330
        %393 = vmatprep.subr.bf16.mxu0 %v333
        %394 = vmatpush1.bf16.msra.mxu0 %v332
        %395 = vmatprep.subr.bf16.mxu0 %v335
        %396 = vmatpush1.bf16.msra.mxu0 %v334
        %397 = vmatprep.subr.bf16.mxu0 0
        %398 = vmatpush1.bf16.msra.mxu0 0
        %399 = vmatprep.subr.bf16.mxu0 0
        %400 = vmatpush1.bf16.msra.mxu0 0
        %401 = vmatprep.subr.bf16.mxu0 0
        %402 = vmatpush1.bf16.msra.mxu0 0
        %403 = vmatprep.subr.bf16.mxu0 0
        %404 = vmatpush1.bf16.msra.mxu0 0
        %405 = vmatprep.subr.bf16.mxu0 0
        %406 = vmatpush1.bf16.msra.mxu0 0
        %407 = vmatprep.subr.bf16.mxu0 0
        %408 = vmatpush1.bf16.msra.mxu0 0
        %409 = vmatprep.subr.bf16.mxu0 0
        %410 = vmatpush1.bf16.msra.mxu0 0
        %411 = vmatprep.subr.bf16.mxu0 0
        %412 = vmatpush1.bf16.msra.mxu0 0
        %413 = vmatprep.subr.bf16.mxu0 0
        %414 = vmatpush1.bf16.msra.mxu0 0
        %415 = vmatprep.subr.bf16.mxu0 0
        %416 = vmatpush1.bf16.msra.mxu0 0
        %417 = vmatprep.subr.bf16.mxu0 0
        %418 = vmatpush1.bf16.msra.mxu0 0
        %419 = vmatprep.subr.bf16.mxu0 0
        %420 = vmatpush1.bf16.msra.mxu0 0
        %421 = vmatprep.mubr.bf16.mxu0 0
        %422 = vmatmul.mubr.bf16.gmra.mrb[0].mxu0 %v378
        %v423 = vpop.f32.mrb[0].mxu0
        %v424 = vadd.f32 %v339, %v423
        %v425 = vpop.f32.mrb[0].mxu0
        %v426 = vadd.f32 %v339, %v425
        %v427 = vpop.f32.mrb[0].mxu0
        %v428 = vadd.f32 %v344, %v427
        %v429 = vpop.f32.mrb[0].mxu0
        %v430 = vadd.f32 %v344, %v429
        %431 = vmatprep.mubr.bf16.mxu0 0
        %432 = vmatmul.mubr.bf16.gmra.mrb[0].mxu0 %v381
        %v433 = vpop.f32.mrb[0].mxu0
        %v434 = vadd.f32 %v349, %v433
        %v435 = vpop.f32.mrb[0].mxu0
        %v436 = vadd.f32 %v349, %v435
        %v437 = vpop.f32.mrb[0].mxu0
        %v438 = vadd.f32 %v354, %v437
        %v439 = vpop.f32.mrb[0].mxu0
        %v440 = vadd.f32 %v354, %v439
        %441 = vmatprep.mubr.bf16.mxu0 0
        %442 = vmatmul.mubr.bf16.gmra.mrb[0].mxu0 %v384
        %v443 = vpop.f32.mrb[0].mxu0
        %v444 = vadd.f32 %v359, %v443
        %v445 = vpop.f32.mrb[0].mxu0
        %v446 = vadd.f32 %v359, %v445
        %v447 = vpop.f32.mrb[0].mxu0
        %v448 = vadd.f32 %v364, %v447
        %v449 = vpop.f32.mrb[0].mxu0
        %v450 = vadd.f32 %v364, %v449
        %451 = vmatprep.mubr.bf16.mxu0 0
        %452 = vmatmul.mubr.bf16.gmra.mrb[0].mxu0 %v387
        %v453 = vpop.f32.mrb[0].mxu0
        %v454 = vadd.f32 %v369, %v453
        %v455 = vpop.f32.mrb[0].mxu0
        %v456 = vadd.f32 %v369, %v455
        %v457 = vpop.f32.mrb[0].mxu0
        %v458 = vadd.f32 %v374, %v457
        %v459 = vpop.f32.mrb[0].mxu0
        %v460 = vadd.f32 %v374, %v459
        %461 = vdwg.mxu0
        %v462 = vlaneseq
        %v463 = vshrl.u32 %v462, 7
        %v464 = vadd.s32 %v463, 8
        %vm465 = vcmp.eq.s32.totalorder %v463, 0
        %vm466 = vcmp.eq.s32.totalorder %v464, 0
        %v467 = vsel %vm465, 1.0, 0.0
        %v468 = vsel %vm466, 1.0, 0.0
        %v469 = vpack.c.bf16 %v468, %v467
        %v470 = vpack.c.bf16 %v428, %v424
        %v471 = vpack.c.bf16 %v430, %v426
        %v472 = vpack.c.bf16 %v438, %v434
        %v473 = vpack.c.bf16 %v440, %v436
        %v474 = vpack.c.bf16 %v448, %v444
        %v475 = vpack.c.bf16 %v450, %v446
        %v476 = vpack.c.bf16 %v458, %v454
        %v477 = vpack.c.bf16 %v460, %v456
        %v478 = vpack.c.bf16 %v293, %v292
        %v479 = vpack.c.bf16 %v295, %v294
        %v480 = vpack.c.bf16 %v297, %v296
        %v481 = vpack.c.bf16 %v299, %v298
        %482 = vxpose.xlu0.c.b16.start [1/8] %v478, 128
        %483 = vxpose.xlu0.c.b16.cont [2/8] %v479, 128
        %484 = vxpose.xlu0.c.b16.cont [3/8] %v480, 128
        %485 = vxpose.xlu0.c.b16.cont [4/8] %v481, 128
        %486 = vxpose.xlu0.c.b16.cont [5/8] 0, 128
        %487 = vxpose.xlu0.c.b16.cont [6/8] 0, 128
        %488 = vxpose.xlu0.c.b16.cont [7/8] 0, 128
        %489 = vxpose.xlu0.c.b16.end [8/8] 0, 128
        %v490 = vpop.trf.xlu0
        %v491 = vpop.trf.xlu0
        %v492 = vpop.trf.xlu0
        %v493 = vpop.trf.xlu0
        %v494 = vpop.trf.xlu0
        %v495 = vpop.trf.xlu0
        %v496 = vpop.trf.xlu0
        %v497 = vpop.trf.xlu0
        %vm498 = vcmask 654336
        %v500 = vsel %vm498, %v490, 0
        %v503 = vsel %vm498, %v491, 0
        %505 = vmatprep.subr.bf16.mxu0 %v471
        %506 = vmatpush1.bf16.msra.mxu0 %v470
        %507 = vmatprep.subr.bf16.mxu0 %v473
        %508 = vmatpush1.bf16.msra.mxu0 %v472
        %509 = vmatprep.subr.bf16.mxu0 %v475
        %510 = vmatpush1.bf16.msra.mxu0 %v474
        %511 = vmatprep.subr.bf16.mxu0 %v477
        %512 = vmatpush1.bf16.msra.mxu0 %v476
        %513 = vmatprep.subr.bf16.mxu0 %v469
        %514 = vmatpush1.bf16.msra.mxu0 %v469
        %515 = vmatprep.subr.bf16.mxu0 0
        %516 = vmatpush1.bf16.msra.mxu0 0
        %517 = vmatprep.subr.bf16.mxu0 0
        %518 = vmatpush1.bf16.msra.mxu0 0
        %519 = vmatprep.subr.bf16.mxu0 0
        %520 = vmatpush1.bf16.msra.mxu0 0
        %521 = vmatprep.subr.bf16.mxu0 0
        %522 = vmatpush1.bf16.msra.mxu0 0
        %523 = vmatprep.subr.bf16.mxu0 0
        %524 = vmatpush1.bf16.msra.mxu0 0
        %525 = vmatprep.subr.bf16.mxu0 0
        %526 = vmatpush1.bf16.msra.mxu0 0
        %527 = vmatprep.subr.bf16.mxu0 0
        %528 = vmatpush1.bf16.msra.mxu0 0
        %529 = vmatprep.subr.bf16.mxu0 0
        %530 = vmatpush1.bf16.msra.mxu0 0
        %531 = vmatprep.subr.bf16.mxu0 0
        %532 = vmatpush1.bf16.msra.mxu0 0
        %533 = vmatprep.subr.bf16.mxu0 0
        %534 = vmatpush1.bf16.msra.mxu0 0
        %535 = vmatprep.subr.bf16.mxu0 0
        %536 = vmatpush1.bf16.msra.mxu0 0
        %537 = vmatprep.mubr.bf16.mxu0 0
        %538 = vmatmul.mubr.bf16.gmra.mrb[0].mxu0 %v500
        %v539 = vpop.f32.mrb[0].mxu0
        %v540 = vadd.f32 0.0, %v539
        %v541 = vpop.f32.mrb[0].mxu0
        %v542 = vadd.f32 0.0, %v541
        %v543 = vpop.f32.mrb[0].mxu0
        %v544 = vadd.f32 0.0, %v543
        %v545 = vpop.f32.mrb[0].mxu0
        %v546 = vadd.f32 0.0, %v545
        %547 = vmatprep.mubr.bf16.mxu0 0
        %548 = vmatmul.mubr.bf16.gmra.mrb[0].mxu0 %v503
        %v549 = vpop.f32.mrb[0].mxu0
        %v550 = vadd.f32 0.0, %v549
        %v551 = vpop.f32.mrb[0].mxu0
        %v552 = vadd.f32 0.0, %v551
        %v553 = vpop.f32.mrb[0].mxu0
        %v554 = vadd.f32 0.0, %v553
        %v555 = vpop.f32.mrb[0].mxu0
        %v556 = vadd.f32 0.0, %v555
        %557 = vdwg.mxu0
        %v558 = vmax.f32 %v540, %v550
        %v559 = vmax.f32 %v544, %v554
        %v560 = vmax.f32 %v558, %v559
        %v561 = vrot.slane %v560, 4
        %v562 = vmax.f32 %v560, %v561
        %v563 = vrot.slane %v562, 2
        %v564 = vmax.f32 %v562, %v563
        %v565 = vrot.slane %v564, 1
        %v566 = vmax.f32 %v564, %v565
        %v567 = vmax.f32 %v542, %v552
        %v568 = vmax.f32 %v546, %v556
        %v569 = vmax.f32 %v567, %v568
        %v570 = vrot.slane %v569, 4
        %v571 = vmax.f32 %v569, %v570
        %v572 = vrot.slane %v571, 2
        %v573 = vmax.f32 %v571, %v572
        %v574 = vrot.slane %v573, 1
        %v575 = vmax.f32 %v573, %v574
        %v576 = vsub.f32 %v540, %v566
        %v577 = vsub.f32 %v542, %v575
        %v578 = vsub.f32 %v544, %v566
        %v579 = vsub.f32 %v546, %v575
        %v580 = vsub.f32 %v550, %v566
        %v581 = vsub.f32 %v552, %v575
        %v582 = vsub.f32 %v554, %v566
        %v583 = vsub.f32 %v556, %v575
        %v584 = vmul.f32 %v576, 1.442695
        %v585 = vpow.pop %v584
        %v586 = vmul.f32 %v577, 1.442695
        %v587 = vpow.pop %v586
        %v588 = vmul.f32 %v578, 1.442695
        %v589 = vpow.pop %v588
        %v590 = vmul.f32 %v579, 1.442695
        %v591 = vpow.pop %v590
        %v592 = vmul.f32 %v580, 1.442695
        %v593 = vpow.pop %v592
        %v594 = vmul.f32 %v581, 1.442695
        %v595 = vpow.pop %v594
        %v596 = vmul.f32 %v582, 1.442695
        %v597 = vpow.pop %v596
        %v598 = vmul.f32 %v583, 1.442695
        %v599 = vpow.pop %v598
        %v600 = vadd.f32 %v585, %v589
        %v601 = vadd.f32 %v600, %v593
        %v602 = vadd.f32 %v601, %v597
        %v603 = vrot.slane %v602, 4
        %v604 = vadd.f32 %v602, %v603
        %v605 = vrot.slane %v604, 2
        %v606 = vadd.f32 %v604, %v605
        %v607 = vrot.slane %v606, 1
        %v608 = vadd.f32 %v606, %v607
        %v609 = vadd.f32 %v587, %v591
        %v610 = vadd.f32 %v609, %v595
        %v611 = vadd.f32 %v610, %v599
        %v612 = vrot.slane %v611, 4
        %v613 = vadd.f32 %v611, %v612
        %v614 = vrot.slane %v613, 2
        %v615 = vadd.f32 %v613, %v614
        %v616 = vrot.slane %v615, 1
        %v617 = vadd.f32 %v615, %v616
        %v618 = vrcp.pop %v608
        %v619 = vrcp.pop %v617
        %v620 = vmul.f32 %v585, %v618
        %v621 = vmul.f32 %v587, %v619
        %v622 = vmul.f32 %v589, %v618
        %v623 = vmul.f32 %v591, %v619
        %v624 = vmul.f32 %v593, %v618
        %v625 = vmul.f32 %v595, %v619
        %v626 = vmul.f32 %v597, %v618
        %v627 = vmul.f32 %v599, %v619
        %v628 = vpack.c.bf16 %v622, %v620
        %v629 = vpack.c.bf16 %v623, %v621
        %v630 = vpack.c.bf16 %v626, %v624
        %v631 = vpack.c.bf16 %v627, %v625
        %632 = vmatprep.subr.bf16.mxu0 %v629
        %633 = vmatpush1.bf16.xpose.msra.mxu0 %v628
        %634 = vmatprep.subr.bf16.mxu0 %v631
        %635 = vmatpush1.bf16.xpose.msra.mxu0 %v630
        %636 = vmatprep.subr.bf16.mxu0 0
        %637 = vmatpush1.bf16.xpose.msra.mxu0 0
        %638 = vmatprep.subr.bf16.mxu0 0
        %639 = vmatpush1.bf16.xpose.msra.mxu0 0
        %640 = vmatprep.subr.bf16.mxu0 0
        %641 = vmatpush1.bf16.xpose.msra.mxu0 0
        %642 = vmatprep.subr.bf16.mxu0 0
        %643 = vmatpush1.bf16.xpose.msra.mxu0 0
        %644 = vmatprep.subr.bf16.mxu0 0
        %645 = vmatpush1.bf16.xpose.msra.mxu0 0
        %646 = vmatprep.subr.bf16.mxu0 0
        %647 = vmatpush1.bf16.xpose.msra.mxu0 0
        %648 = vmatprep.subr.bf16.mxu0 0
        %649 = vmatpush1.bf16.xpose.msra.mxu0 0
        %650 = vmatprep.subr.bf16.mxu0 0
        %651 = vmatpush1.bf16.xpose.msra.mxu0 0
        %652 = vmatprep.subr.bf16.mxu0 0
        %653 = vmatpush1.bf16.xpose.msra.mxu0 0
        %654 = vmatprep.subr.bf16.mxu0 0
        %655 = vmatpush1.bf16.xpose.msra.mxu0 0
        %656 = vmatprep.subr.bf16.mxu0 0
        %657 = vmatpush1.bf16.xpose.msra.mxu0 0
        %658 = vmatprep.subr.bf16.mxu0 0
        %659 = vmatpush1.bf16.xpose.msra.mxu0 0
        %660 = vmatprep.subr.bf16.mxu0 0
        %661 = vmatpush1.bf16.xpose.msra.mxu0 0
        %662 = vmatprep.subr.bf16.mxu0 0
        %663 = vmatpush1.bf16.xpose.msra.mxu0 0
        %664 = vmatprep.mubr.bf16.mxu0 %v471
        %665 = vmatmul.mubr.bf16.gmra.mrb[0].mxu0 %v470
        %v666 = vpop.f32.mrb[0].mxu0
        %v667 = vadd.f32 0.0, %v666
        %v668 = vpop.f32.mrb[0].mxu0
        %v669 = vpop.f32.mrb[0].mxu0
        %v670 = vadd.f32 0.0, %v669
        %v671 = vpop.f32.mrb[0].mxu0
        %672 = vmatprep.mubr.bf16.mxu0 %v473
        %673 = vmatmul.mubr.bf16.gmra.mrb[0].mxu0 %v472
        %v674 = vpop.f32.mrb[0].mxu0
        %v675 = vadd.f32 0.0, %v674
        %v676 = vpop.f32.mrb[0].mxu0
        %v677 = vpop.f32.mrb[0].mxu0
        %v678 = vadd.f32 0.0, %v677
        %v679 = vpop.f32.mrb[0].mxu0
        %680 = vmatprep.mubr.bf16.mxu0 %v475
        %681 = vmatmul.mubr.bf16.gmra.mrb[0].mxu0 %v474
        %v682 = vpop.f32.mrb[0].mxu0
        %v683 = vadd.f32 0.0, %v682
        %v684 = vpop.f32.mrb[0].mxu0
        %v685 = vpop.f32.mrb[0].mxu0
        %v686 = vadd.f32 0.0, %v685
        %v687 = vpop.f32.mrb[0].mxu0
        %688 = vmatprep.mubr.bf16.mxu0 %v477
        %689 = vmatmul.mubr.bf16.gmra.mrb[0].mxu0 %v476
        %v690 = vpop.f32.mrb[0].mxu0
        %v691 = vadd.f32 0.0, %v690
        %v692 = vpop.f32.mrb[0].mxu0
        %v693 = vpop.f32.mrb[0].mxu0
        %v694 = vadd.f32 0.0, %v693
        %v695 = vpop.f32.mrb[0].mxu0
        %696 = vmatprep.mubr.bf16.mxu0 %v469
        %697 = vmatmul.mubr.bf16.gmra.mrb[0].mxu0 %v469
        %v698 = vpop.f32.mrb[0].mxu0
        %v699 = vadd.f32 0.0, %v698
        %v700 = vpop.f32.mrb[0].mxu0
        %v701 = vpop.f32.mrb[0].mxu0
        %v702 = vpop.f32.mrb[0].mxu0
        %703 = vdwg.mxu0
        %v704 = vadd.f32 %v699, 1e-06
        %v705 = vrcp.pop %v704
        %v706 = vlaneseq
        %v707 = vshrl.u32 %v706, 7
        %v708 = vsub.s32 0, %v707
        %v709 = vrot.slane %v705, %v708
        %v710 = vmul.f32 %v667, %v709
        %v711 = vmul.f32 %v670, %v709
        %v712 = vmul.f32 %v675, %v709
        %v713 = vmul.f32 %v678, %v709
        %v714 = vmul.f32 %v683, %v709
        %v715 = vmul.f32 %v686, %v709
        %v716 = vmul.f32 %v691, %v709
        %v717 = vmul.f32 %v694, %v709
        %v718 = vmul.f32 %v710, %v710
        %v719 = vmul.f32 %v711, %v711
        %v720 = vmul.f32 %v712, %v712
        %v721 = vmul.f32 %v713, %v713
        %v722 = vmul.f32 %v714, %v714
        %v723 = vmul.f32 %v715, %v715
        %v724 = vmul.f32 %v716, %v716
        %v725 = vmul.f32 %v717, %v717
        %vm726 = vcmask 261120
        %v727 = vsel %vm726, %v718, 0.0
        %v728 = vsel %vm726, %v719, 0.0
        %v729 = vadd.f32 %v727, %v728
        %v730 = vsel %vm726, %v720, 0.0
        %v731 = vadd.f32 %v729, %v730
        %v732 = vsel %vm726, %v721, 0.0
        %v733 = vadd.f32 %v731, %v732
        %v734 = vsel %vm726, %v722, 0.0
        %v735 = vadd.f32 %v733, %v734
        %v736 = vsel %vm726, %v723, 0.0
        %v737 = vadd.f32 %v735, %v736
        %v738 = vsel %vm726, %v724, 0.0
        %v739 = vadd.f32 %v737, %v738
        %v740 = vsel %vm726, %v725, 0.0
        %v741 = vadd.f32 %v739, %v740
        %v742 = vrot.slane %v741, 4
        %v743 = vadd.f32 %v741, %v742
        %v744 = vrot.slane %v743, 2
        %v745 = vadd.f32 %v743, %v744
        %v746 = vrot.slane %v745, 1
        %v747 = vadd.f32 %v745, %v746
        %v748 = vrsqrt.pop %v747
        %v749 = vmul.f32 %v747, %v748
        %vm750 = vcmp.eq.f32.partialorder %v747, inf
        %v751 = vsel %vm750, %v747, %v749
        %vm752 = vcmp.eq.f32.partialorder %v747, 0.0
        %v753 = vand.u32 %v747, 2147483648
        %v754 = vsel %vm752, %v753, %v751
        %v755 = vadd.f32 %v754, 1e-06
        %v756 = vrcp.pop %v755
        %v757 = vmul.f32 %v710, %v756
        %v758 = vmul.f32 %v711, %v756
        %v759 = vmul.f32 %v712, %v756
        %v760 = vmul.f32 %v713, %v756
        %v761 = vmul.f32 %v714, %v756
        %v762 = vmul.f32 %v715, %v756
        %v763 = vmul.f32 %v716, %v756
        %v764 = vmul.f32 %v717, %v756
        %v765 = vpack.c.bf16 %v758, %v757
        %v766 = vpack.c.bf16 %v760, %v759
        %v767 = vpack.c.bf16 %v762, %v761
        %v768 = vpack.c.bf16 %v764, %v763
        %769 = vxpose.xlu0.c.b16.start [1/8] %v765, 128
        %770 = vxpose.xlu0.c.b16.cont [2/8] %v766, 128
        %771 = vxpose.xlu0.c.b16.cont [3/8] %v767, 128
        %772 = vxpose.xlu0.c.b16.cont [4/8] %v768, 128
        %773 = vxpose.xlu0.c.b16.cont [5/8] 0, 128
        %774 = vxpose.xlu0.c.b16.cont [6/8] 0, 128
        %775 = vxpose.xlu0.c.b16.cont [7/8] 0, 128
        %776 = vxpose.xlu0.c.b16.end [8/8] 0, 128
        %v777 = vpop.trf.xlu0
        %v778 = vpop.trf.xlu0
        %v779 = vpop.trf.xlu0
        %v780 = vpop.trf.xlu0
        %v781 = vpop.trf.xlu0
        %v782 = vpop.trf.xlu0
        %v783 = vpop.trf.xlu0
        %v784 = vpop.trf.xlu0
        %v786 = vsel %vm498, %v777, 0
        %v789 = vsel %vm498, %v778, 0
        %791 = vmatprep.subr.bf16.mxu0 %v471
        %792 = vmatpush1.bf16.msra.mxu0 %v470
        %793 = vmatprep.subr.bf16.mxu0 %v473
        %794 = vmatpush1.bf16.msra.mxu0 %v472
        %795 = vmatprep.subr.bf16.mxu0 %v475
        %796 = vmatpush1.bf16.msra.mxu0 %v474
        %797 = vmatprep.subr.bf16.mxu0 %v477
        %798 = vmatpush1.bf16.msra.mxu0 %v476
        %799 = vmatprep.subr.bf16.mxu0 %v469
        %800 = vmatpush1.bf16.msra.mxu0 %v469
        %801 = vmatprep.subr.bf16.mxu0 0
        %802 = vmatpush1.bf16.msra.mxu0 0
        %803 = vmatprep.subr.bf16.mxu0 0
        %804 = vmatpush1.bf16.msra.mxu0 0
        %805 = vmatprep.subr.bf16.mxu0 0
        %806 = vmatpush1.bf16.msra.mxu0 0
        %807 = vmatprep.subr.bf16.mxu0 0
        %808 = vmatpush1.bf16.msra.mxu0 0
        %809 = vmatprep.subr.bf16.mxu0 0
        %810 = vmatpush1.bf16.msra.mxu0 0
        %811 = vmatprep.subr.bf16.mxu0 0
        %812 = vmatpush1.bf16.msra.mxu0 0
        %813 = vmatprep.subr.bf16.mxu0 0
        %814 = vmatpush1.bf16.msra.mxu0 0
        %815 = vmatprep.subr.bf16.mxu0 0
        %816 = vmatpush1.bf16.msra.mxu0 0
        %817 = vmatprep.subr.bf16.mxu0 0
        %818 = vmatpush1.bf16.msra.mxu0 0
        %819 = vmatprep.subr.bf16.mxu0 0
        %820 = vmatpush1.bf16.msra.mxu0 0
        %821 = vmatprep.subr.bf16.mxu0 0
        %822 = vmatpush1.bf16.msra.mxu0 0
        %823 = vmatprep.mubr.bf16.mxu0 0
        %824 = vmatmul.mubr.bf16.gmra.mrb[0].mxu0 %v786
        %v825 = vpop.f32.mrb[0].mxu0
        %v826 = vadd.f32 0.0, %v825
        %v827 = vpop.f32.mrb[0].mxu0
        %v828 = vadd.f32 0.0, %v827
        %v829 = vpop.f32.mrb[0].mxu0
        %v830 = vadd.f32 0.0, %v829
        %v831 = vpop.f32.mrb[0].mxu0
        %v832 = vadd.f32 0.0, %v831
        %833 = vmatprep.mubr.bf16.mxu0 0
        %834 = vmatmul.mubr.bf16.gmra.mrb[0].mxu0 %v789
        %v835 = vpop.f32.mrb[0].mxu0
        %v836 = vadd.f32 0.0, %v835
        %v837 = vpop.f32.mrb[0].mxu0
        %v838 = vadd.f32 0.0, %v837
        %v839 = vpop.f32.mrb[0].mxu0
        %v840 = vadd.f32 0.0, %v839
        %v841 = vpop.f32.mrb[0].mxu0
        %v842 = vadd.f32 0.0, %v841
        %843 = vdwg.mxu0
        %v844 = vmax.f32 %v826, %v836
        %v845 = vmax.f32 %v830, %v840
        %v846 = vmax.f32 %v844, %v845
        %v847 = vrot.slane %v846, 4
        %v848 = vmax.f32 %v846, %v847
        %v849 = vrot.slane %v848, 2
        %v850 = vmax.f32 %v848, %v849
        %v851 = vrot.slane %v850, 1
        %v852 = vmax.f32 %v850, %v851
        %v853 = vmax.f32 %v828, %v838
        %v854 = vmax.f32 %v832, %v842
        %v855 = vmax.f32 %v853, %v854
        %v856 = vrot.slane %v855, 4
        %v857 = vmax.f32 %v855, %v856
        %v858 = vrot.slane %v857, 2
        %v859 = vmax.f32 %v857, %v858
        %v860 = vrot.slane %v859, 1
        %v861 = vmax.f32 %v859, %v860
        %v862 = vsub.f32 %v826, %v852
        %v863 = vsub.f32 %v828, %v861
        %v864 = vsub.f32 %v830, %v852
        %v865 = vsub.f32 %v832, %v861
        %v866 = vsub.f32 %v836, %v852
        %v867 = vsub.f32 %v838, %v861
        %v868 = vsub.f32 %v840, %v852
        %v869 = vsub.f32 %v842, %v861
        %v870 = vmul.f32 %v862, 1.442695
        %v871 = vpow.pop %v870
        %v872 = vmul.f32 %v863, 1.442695
        %v873 = vpow.pop %v872
        %v874 = vmul.f32 %v864, 1.442695
        %v875 = vpow.pop %v874
        %v876 = vmul.f32 %v865, 1.442695
        %v877 = vpow.pop %v876
        %v878 = vmul.f32 %v866, 1.442695
        %v879 = vpow.pop %v878
        %v880 = vmul.f32 %v867, 1.442695
        %v881 = vpow.pop %v880
        %v882 = vmul.f32 %v868, 1.442695
        %v883 = vpow.pop %v882
        %v884 = vmul.f32 %v869, 1.442695
        %v885 = vpow.pop %v884
        %v886 = vadd.f32 %v871, %v875
        %v887 = vadd.f32 %v886, %v879
        %v888 = vadd.f32 %v887, %v883
        %v889 = vrot.slane %v888, 4
        %v890 = vadd.f32 %v888, %v889
        %v891 = vrot.slane %v890, 2
        %v892 = vadd.f32 %v890, %v891
        %v893 = vrot.slane %v892, 1
        %v894 = vadd.f32 %v892, %v893
        %v895 = vadd.f32 %v873, %v877
        %v896 = vadd.f32 %v895, %v881
        %v897 = vadd.f32 %v896, %v885
        %v898 = vrot.slane %v897, 4
        %v899 = vadd.f32 %v897, %v898
        %v900 = vrot.slane %v899, 2
        %v901 = vadd.f32 %v899, %v900
        %v902 = vrot.slane %v901, 1
        %v903 = vadd.f32 %v901, %v902
        %v904 = vrcp.pop %v894
        %v905 = vrcp.pop %v903
        %v906 = vmul.f32 %v871, %v904
        %v907 = vmul.f32 %v873, %v905
        %v908 = vmul.f32 %v875, %v904
        %v909 = vmul.f32 %v877, %v905
        %v910 = vmul.f32 %v879, %v904
        %v911 = vmul.f32 %v881, %v905
        %v912 = vmul.f32 %v883, %v904
        %v913 = vmul.f32 %v885, %v905
        %v914 = vpack.c.bf16 %v908, %v906
        %v915 = vpack.c.bf16 %v909, %v907
        %v916 = vpack.c.bf16 %v912, %v910
        %v917 = vpack.c.bf16 %v913, %v911
        %918 = vmatprep.subr.bf16.mxu0 %v915
        %919 = vmatpush1.bf16.xpose.msra.mxu0 %v914
        %920 = vmatprep.subr.bf16.mxu0 %v917
        %921 = vmatpush1.bf16.xpose.msra.mxu0 %v916
        %922 = vmatprep.subr.bf16.mxu0 0
        %923 = vmatpush1.bf16.xpose.msra.mxu0 0
        %924 = vmatprep.subr.bf16.mxu0 0
        %925 = vmatpush1.bf16.xpose.msra.mxu0 0
        %926 = vmatprep.subr.bf16.mxu0 0
        %927 = vmatpush1.bf16.xpose.msra.mxu0 0
        %928 = vmatprep.subr.bf16.mxu0 0
        %929 = vmatpush1.bf16.xpose.msra.mxu0 0
        %930 = vmatprep.subr.bf16.mxu0 0
        %931 = vmatpush1.bf16.xpose.msra.mxu0 0
        %932 = vmatprep.subr.bf16.mxu0 0
        %933 = vmatpush1.bf16.xpose.msra.mxu0 0
        %934 = vmatprep.subr.bf16.mxu0 0
        %935 = vmatpush1.bf16.xpose.msra.mxu0 0
        %936 = vmatprep.subr.bf16.mxu0 0
        %937 = vmatpush1.bf16.xpose.msra.mxu0 0
        %938 = vmatprep.subr.bf16.mxu0 0
        %939 = vmatpush1.bf16.xpose.msra.mxu0 0
        %940 = vmatprep.subr.bf16.mxu0 0
        %941 = vmatpush1.bf16.xpose.msra.mxu0 0
        %942 = vmatprep.subr.bf16.mxu0 0
        %943 = vmatpush1.bf16.xpose.msra.mxu0 0
        %944 = vmatprep.subr.bf16.mxu0 0
        %945 = vmatpush1.bf16.xpose.msra.mxu0 0
        %946 = vmatprep.subr.bf16.mxu0 0
        %947 = vmatpush1.bf16.xpose.msra.mxu0 0
        %948 = vmatprep.subr.bf16.mxu0 0
        %949 = vmatpush1.bf16.xpose.msra.mxu0 0
        %950 = vmatprep.mubr.bf16.mxu0 %v471
        %951 = vmatmul.mubr.bf16.gmra.mrb[0].mxu0 %v470
        %v952 = vpop.f32.mrb[0].mxu0
        %v953 = vadd.f32 0.0, %v952
        %v954 = vpop.f32.mrb[0].mxu0
        %v955 = vpop.f32.mrb[0].mxu0
        %v956 = vadd.f32 0.0, %v955
        %v957 = vpop.f32.mrb[0].mxu0
        %958 = vmatprep.mubr.bf16.mxu0 %v473
        %959 = vmatmul.mubr.bf16.gmra.mrb[0].mxu0 %v472
        %v960 = vpop.f32.mrb[0].mxu0
        %v961 = vadd.f32 0.0, %v960
        %v962 = vpop.f32.mrb[0].mxu0
        %v963 = vpop.f32.mrb[0].mxu0
        %v964 = vadd.f32 0.0, %v963
        %v965 = vpop.f32.mrb[0].mxu0
        %966 = vmatprep.mubr.bf16.mxu0 %v475
        %967 = vmatmul.mubr.bf16.gmra.mrb[0].mxu0 %v474
        %v968 = vpop.f32.mrb[0].mxu0
        %v969 = vadd.f32 0.0, %v968
        %v970 = vpop.f32.mrb[0].mxu0
        %v971 = vpop.f32.mrb[0].mxu0
        %v972 = vadd.f32 0.0, %v971
        %v973 = vpop.f32.mrb[0].mxu0
        %974 = vmatprep.mubr.bf16.mxu0 %v477
        %975 = vmatmul.mubr.bf16.gmra.mrb[0].mxu0 %v476
        %v976 = vpop.f32.mrb[0].mxu0
        %v977 = vadd.f32 0.0, %v976
        %v978 = vpop.f32.mrb[0].mxu0
        %v979 = vpop.f32.mrb[0].mxu0
        %v980 = vadd.f32 0.0, %v979
        %v981 = vpop.f32.mrb[0].mxu0
        %982 = vmatprep.mubr.bf16.mxu0 %v469
        %983 = vmatmul.mubr.bf16.gmra.mrb[0].mxu0 %v469
        %v984 = vpop.f32.mrb[0].mxu0
        %v985 = vadd.f32 0.0, %v984
        %v986 = vpop.f32.mrb[0].mxu0
        %v987 = vpop.f32.mrb[0].mxu0
        %v988 = vpop.f32.mrb[0].mxu0
        %989 = vdwg.mxu0
        %v990 = vadd.f32 %v985, 1e-06
        %v991 = vrcp.pop %v990
        %v992 = vlaneseq
        %v993 = vshrl.u32 %v992, 7
        %v994 = vsub.s32 0, %v993
        %v995 = vrot.slane %v991, %v994
        %v996 = vmul.f32 %v953, %v995
        %v997 = vmul.f32 %v956, %v995
        %v998 = vmul.f32 %v961, %v995
        %v999 = vmul.f32 %v964, %v995
        %v1000 = vmul.f32 %v969, %v995
        %v1001 = vmul.f32 %v972, %v995
        %v1002 = vmul.f32 %v977, %v995
        %v1003 = vmul.f32 %v980, %v995
        %v1004 = vmul.f32 %v996, %v996
        %v1005 = vmul.f32 %v997, %v997
        %v1006 = vmul.f32 %v998, %v998
        %v1007 = vmul.f32 %v999, %v999
        %v1008 = vmul.f32 %v1000, %v1000
        %v1009 = vmul.f32 %v1001, %v1001
        %v1010 = vmul.f32 %v1002, %v1002
        %v1011 = vmul.f32 %v1003, %v1003
        %v1012 = vsel %vm726, %v1004, 0.0
        %v1013 = vsel %vm726, %v1005, 0.0
        %v1014 = vadd.f32 %v1012, %v1013
        %v1015 = vsel %vm726, %v1006, 0.0
        %v1016 = vadd.f32 %v1014, %v1015
        %v1017 = vsel %vm726, %v1007, 0.0
        %v1018 = vadd.f32 %v1016, %v1017
        %v1019 = vsel %vm726, %v1008, 0.0
        %v1020 = vadd.f32 %v1018, %v1019
        %v1021 = vsel %vm726, %v1009, 0.0
        %v1022 = vadd.f32 %v1020, %v1021
        %v1023 = vsel %vm726, %v1010, 0.0
        %v1024 = vadd.f32 %v1022, %v1023
        %v1025 = vsel %vm726, %v1011, 0.0
        %v1026 = vadd.f32 %v1024, %v1025
        %v1027 = vrot.slane %v1026, 4
        %v1028 = vadd.f32 %v1026, %v1027
        %v1029 = vrot.slane %v1028, 2
        %v1030 = vadd.f32 %v1028, %v1029
        %v1031 = vrot.slane %v1030, 1
        %v1032 = vadd.f32 %v1030, %v1031
        %v1033 = vrsqrt.pop %v1032
        %v1034 = vmul.f32 %v1032, %v1033
        %vm1035 = vcmp.eq.f32.partialorder %v1032, inf
        %v1036 = vsel %vm1035, %v1032, %v1034
        %vm1037 = vcmp.eq.f32.partialorder %v1032, 0.0
        %v1038 = vand.u32 %v1032, 2147483648
        %v1039 = vsel %vm1037, %v1038, %v1036
        %v1040 = vadd.f32 %v1039, 1e-06
        %v1041 = vrcp.pop %v1040
        %v1042 = vmul.f32 %v996, %v1041
        %v1043 = vmul.f32 %v997, %v1041
        %v1044 = vmul.f32 %v998, %v1041
        %v1045 = vmul.f32 %v999, %v1041
        %v1046 = vmul.f32 %v1000, %v1041
        %v1047 = vmul.f32 %v1001, %v1041
        %v1048 = vmul.f32 %v1002, %v1041
        %v1049 = vmul.f32 %v1003, %v1041
        %v1050 = vpack.c.bf16 %v1043, %v1042
        %v1051 = vpack.c.bf16 %v1045, %v1044
        %v1052 = vpack.c.bf16 %v1047, %v1046
        %v1053 = vpack.c.bf16 %v1049, %v1048
        %1054 = vxpose.xlu0.c.b16.start [1/8] %v1050, 128
        %1055 = vxpose.xlu0.c.b16.cont [2/8] %v1051, 128
        %1056 = vxpose.xlu0.c.b16.cont [3/8] %v1052, 128
        %1057 = vxpose.xlu0.c.b16.cont [4/8] %v1053, 128
        %1058 = vxpose.xlu0.c.b16.cont [5/8] 0, 128
        %1059 = vxpose.xlu0.c.b16.cont [6/8] 0, 128
        %1060 = vxpose.xlu0.c.b16.cont [7/8] 0, 128
        %1061 = vxpose.xlu0.c.b16.end [8/8] 0, 128
        %v1062 = vpop.trf.xlu0
        %v1063 = vpop.trf.xlu0
        %v1064 = vpop.trf.xlu0
        %v1065 = vpop.trf.xlu0
        %v1066 = vpop.trf.xlu0
        %v1067 = vpop.trf.xlu0
        %v1068 = vpop.trf.xlu0
        %v1069 = vpop.trf.xlu0
        %v1071 = vsel %vm498, %v1062, 0
        %v1074 = vsel %vm498, %v1063, 0
        %1076 = vmatprep.subr.bf16.mxu0 %v471
        %1077 = vmatpush1.bf16.msra.mxu0 %v470
        %1078 = vmatprep.subr.bf16.mxu0 %v473
        %1079 = vmatpush1.bf16.msra.mxu0 %v472
        %1080 = vmatprep.subr.bf16.mxu0 %v475
        %1081 = vmatpush1.bf16.msra.mxu0 %v474
        %1082 = vmatprep.subr.bf16.mxu0 %v477
        %1083 = vmatpush1.bf16.msra.mxu0 %v476
        %1084 = vmatprep.subr.bf16.mxu0 %v469
        %1085 = vmatpush1.bf16.msra.mxu0 %v469
        %1086 = vmatprep.subr.bf16.mxu0 0
        %1087 = vmatpush1.bf16.msra.mxu0 0
        %1088 = vmatprep.subr.bf16.mxu0 0
        %1089 = vmatpush1.bf16.msra.mxu0 0
        %1090 = vmatprep.subr.bf16.mxu0 0
        %1091 = vmatpush1.bf16.msra.mxu0 0
        %1092 = vmatprep.subr.bf16.mxu0 0
        %1093 = vmatpush1.bf16.msra.mxu0 0
        %1094 = vmatprep.subr.bf16.mxu0 0
        %1095 = vmatpush1.bf16.msra.mxu0 0
        %1096 = vmatprep.subr.bf16.mxu0 0
        %1097 = vmatpush1.bf16.msra.mxu0 0
        %1098 = vmatprep.subr.bf16.mxu0 0
        %1099 = vmatpush1.bf16.msra.mxu0 0
        %1100 = vmatprep.subr.bf16.mxu0 0
        %1101 = vmatpush1.bf16.msra.mxu0 0
        %1102 = vmatprep.subr.bf16.mxu0 0
        %1103 = vmatpush1.bf16.msra.mxu0 0
        %1104 = vmatprep.subr.bf16.mxu0 0
        %1105 = vmatpush1.bf16.msra.mxu0 0
        %1106 = vmatprep.subr.bf16.mxu0 0
        %1107 = vmatpush1.bf16.msra.mxu0 0
        %1108 = vmatprep.mubr.bf16.mxu0 0
        %1109 = vmatmul.mubr.bf16.gmra.mrb[0].mxu0 %v1071
        %v1110 = vpop.f32.mrb[0].mxu0
        %v1111 = vadd.f32 0.0, %v1110
        %v1112 = vpop.f32.mrb[0].mxu0
        %v1113 = vadd.f32 0.0, %v1112
        %v1114 = vpop.f32.mrb[0].mxu0
        %v1115 = vadd.f32 0.0, %v1114
        %v1116 = vpop.f32.mrb[0].mxu0
        %v1117 = vadd.f32 0.0, %v1116
        %1118 = vmatprep.mubr.bf16.mxu0 0
        %1119 = vmatmul.mubr.bf16.gmra.mrb[0].mxu0 %v1074
        %v1120 = vpop.f32.mrb[0].mxu0
        %v1121 = vadd.f32 0.0, %v1120
        %v1122 = vpop.f32.mrb[0].mxu0
        %v1123 = vadd.f32 0.0, %v1122
        %v1124 = vpop.f32.mrb[0].mxu0
        %v1125 = vadd.f32 0.0, %v1124
        %v1126 = vpop.f32.mrb[0].mxu0
        %v1127 = vadd.f32 0.0, %v1126
        %1128 = vdwg.mxu0
        %v1129 = vmax.f32 %v1111, %v1121
        %v1130 = vmax.f32 %v1115, %v1125
        %v1131 = vmax.f32 %v1129, %v1130
        %v1132 = vrot.slane %v1131, 4
        %v1133 = vmax.f32 %v1131, %v1132
        %v1134 = vrot.slane %v1133, 2
        %v1135 = vmax.f32 %v1133, %v1134
        %v1136 = vrot.slane %v1135, 1
        %v1137 = vmax.f32 %v1135, %v1136
        %v1138 = vmax.f32 %v1113, %v1123
        %v1139 = vmax.f32 %v1117, %v1127
        %v1140 = vmax.f32 %v1138, %v1139
        %v1141 = vrot.slane %v1140, 4
        %v1142 = vmax.f32 %v1140, %v1141
        %v1143 = vrot.slane %v1142, 2
        %v1144 = vmax.f32 %v1142, %v1143
        %v1145 = vrot.slane %v1144, 1
        %v1146 = vmax.f32 %v1144, %v1145
        %v1147 = vsub.f32 %v1111, %v1137
        %v1148 = vsub.f32 %v1113, %v1146
        %v1149 = vsub.f32 %v1115, %v1137
        %v1150 = vsub.f32 %v1117, %v1146
        %v1151 = vsub.f32 %v1121, %v1137
        %v1152 = vsub.f32 %v1123, %v1146
        %v1153 = vsub.f32 %v1125, %v1137
        %v1154 = vsub.f32 %v1127, %v1146
        %v1155 = vmul.f32 %v1147, 1.442695
        %v1156 = vpow.pop %v1155
        %v1157 = vmul.f32 %v1148, 1.442695
        %v1158 = vpow.pop %v1157
        %v1159 = vmul.f32 %v1149, 1.442695
        %v1160 = vpow.pop %v1159
        %v1161 = vmul.f32 %v1150, 1.442695
        %v1162 = vpow.pop %v1161
        %v1163 = vmul.f32 %v1151, 1.442695
        %v1164 = vpow.pop %v1163
        %v1165 = vmul.f32 %v1152, 1.442695
        %v1166 = vpow.pop %v1165
        %v1167 = vmul.f32 %v1153, 1.442695
        %v1168 = vpow.pop %v1167
        %v1169 = vmul.f32 %v1154, 1.442695
        %v1170 = vpow.pop %v1169
        %v1171 = vadd.f32 %v1156, %v1160
        %v1172 = vadd.f32 %v1171, %v1164
        %v1173 = vadd.f32 %v1172, %v1168
        %v1174 = vrot.slane %v1173, 4
        %v1175 = vadd.f32 %v1173, %v1174
        %v1176 = vrot.slane %v1175, 2
        %v1177 = vadd.f32 %v1175, %v1176
        %v1178 = vrot.slane %v1177, 1
        %v1179 = vadd.f32 %v1177, %v1178
        %v1180 = vadd.f32 %v1158, %v1162
        %v1181 = vadd.f32 %v1180, %v1166
        %v1182 = vadd.f32 %v1181, %v1170
        %v1183 = vrot.slane %v1182, 4
        %v1184 = vadd.f32 %v1182, %v1183
        %v1185 = vrot.slane %v1184, 2
        %v1186 = vadd.f32 %v1184, %v1185
        %v1187 = vrot.slane %v1186, 1
        %v1188 = vadd.f32 %v1186, %v1187
        %v1189 = vrcp.pop %v1179
        %v1190 = vrcp.pop %v1188
        %v1191 = vmul.f32 %v1156, %v1189
        %v1192 = vmul.f32 %v1158, %v1190
        %v1193 = vmul.f32 %v1160, %v1189
        %v1194 = vmul.f32 %v1162, %v1190
        %v1195 = vmul.f32 %v1164, %v1189
        %v1196 = vmul.f32 %v1166, %v1190
        %v1197 = vmul.f32 %v1168, %v1189
        %v1198 = vmul.f32 %v1170, %v1190
        %v1199 = vpack.c.bf16 %v1193, %v1191
        %v1200 = vpack.c.bf16 %v1194, %v1192
        %v1201 = vpack.c.bf16 %v1197, %v1195
        %v1202 = vpack.c.bf16 %v1198, %v1196
        %1203 = vmatprep.subr.bf16.mxu0 %v1200
        %1204 = vmatpush1.bf16.xpose.msra.mxu0 %v1199
        %1205 = vmatprep.subr.bf16.mxu0 %v1202
        %1206 = vmatpush1.bf16.xpose.msra.mxu0 %v1201
        %1207 = vmatprep.subr.bf16.mxu0 0
        %1208 = vmatpush1.bf16.xpose.msra.mxu0 0
        %1209 = vmatprep.subr.bf16.mxu0 0
        %1210 = vmatpush1.bf16.xpose.msra.mxu0 0
        %1211 = vmatprep.subr.bf16.mxu0 0
        %1212 = vmatpush1.bf16.xpose.msra.mxu0 0
        %1213 = vmatprep.subr.bf16.mxu0 0
        %1214 = vmatpush1.bf16.xpose.msra.mxu0 0
        %1215 = vmatprep.subr.bf16.mxu0 0
        %1216 = vmatpush1.bf16.xpose.msra.mxu0 0
        %1217 = vmatprep.subr.bf16.mxu0 0
        %1218 = vmatpush1.bf16.xpose.msra.mxu0 0
        %1219 = vmatprep.subr.bf16.mxu0 0
        %1220 = vmatpush1.bf16.xpose.msra.mxu0 0
        %1221 = vmatprep.subr.bf16.mxu0 0
        %1222 = vmatpush1.bf16.xpose.msra.mxu0 0
        %1223 = vmatprep.subr.bf16.mxu0 0
        %1224 = vmatpush1.bf16.xpose.msra.mxu0 0
        %1225 = vmatprep.subr.bf16.mxu0 0
        %1226 = vmatpush1.bf16.xpose.msra.mxu0 0
        %1227 = vmatprep.subr.bf16.mxu0 0
        %1228 = vmatpush1.bf16.xpose.msra.mxu0 0
        %1229 = vmatprep.subr.bf16.mxu0 0
        %1230 = vmatpush1.bf16.xpose.msra.mxu0 0
        %1231 = vmatprep.subr.bf16.mxu0 0
        %1232 = vmatpush1.bf16.xpose.msra.mxu0 0
        %1233 = vmatprep.subr.bf16.mxu0 0
        %1234 = vmatpush1.bf16.xpose.msra.mxu0 0
        %1235 = vmatprep.mubr.bf16.mxu0 %v471
        %1236 = vmatmul.mubr.bf16.gmra.mrb[0].mxu0 %v470
        %v1237 = vpop.f32.mrb[0].mxu0
        %v1238 = vadd.f32 0.0, %v1237
        %v1239 = vpop.f32.mrb[0].mxu0
        %v1240 = vpop.f32.mrb[0].mxu0
        %v1241 = vadd.f32 0.0, %v1240
        %v1242 = vpop.f32.mrb[0].mxu0
        %1243 = vmatprep.mubr.bf16.mxu0 %v473
        %1244 = vmatmul.mubr.bf16.gmra.mrb[0].mxu0 %v472
        %v1245 = vpop.f32.mrb[0].mxu0
        %v1246 = vadd.f32 0.0, %v1245
        %v1247 = vpop.f32.mrb[0].mxu0
        %v1248 = vpop.f32.mrb[0].mxu0
        %v1249 = vadd.f32 0.0, %v1248
        %v1250 = vpop.f32.mrb[0].mxu0
        %1251 = vmatprep.mubr.bf16.mxu0 %v475
        %1252 = vmatmul.mubr.bf16.gmra.mrb[0].mxu0 %v474
        %v1253 = vpop.f32.mrb[0].mxu0
        %v1254 = vadd.f32 0.0, %v1253
        %v1255 = vpop.f32.mrb[0].mxu0
        %v1256 = vpop.f32.mrb[0].mxu0
        %v1257 = vadd.f32 0.0, %v1256
        %v1258 = vpop.f32.mrb[0].mxu0
        %1259 = vmatprep.mubr.bf16.mxu0 %v477
        %1260 = vmatmul.mubr.bf16.gmra.mrb[0].mxu0 %v476
        %v1261 = vpop.f32.mrb[0].mxu0
        %v1262 = vadd.f32 0.0, %v1261
        %v1263 = vpop.f32.mrb[0].mxu0
        %v1264 = vpop.f32.mrb[0].mxu0
        %v1265 = vadd.f32 0.0, %v1264
        %v1266 = vpop.f32.mrb[0].mxu0
        %1267 = vmatprep.mubr.bf16.mxu0 %v469
        %1268 = vmatmul.mubr.bf16.gmra.mrb[0].mxu0 %v469
        %v1269 = vpop.f32.mrb[0].mxu0
        %v1270 = vadd.f32 0.0, %v1269
        %v1271 = vpop.f32.mrb[0].mxu0
        %v1272 = vpop.f32.mrb[0].mxu0
        %v1273 = vpop.f32.mrb[0].mxu0
        %1274 = vdwg.mxu0
        %v1275 = vadd.f32 %v1270, 1e-06
        %v1276 = vrcp.pop %v1275
        %v1277 = vlaneseq
        %v1278 = vshrl.u32 %v1277, 7
        %v1279 = vsub.s32 0, %v1278
        %v1280 = vrot.slane %v1276, %v1279
        %v1281 = vmul.f32 %v1238, %v1280
        %v1282 = vmul.f32 %v1241, %v1280
        %v1283 = vmul.f32 %v1246, %v1280
        %v1284 = vmul.f32 %v1249, %v1280
        %v1285 = vmul.f32 %v1254, %v1280
        %v1286 = vmul.f32 %v1257, %v1280
        %v1287 = vmul.f32 %v1262, %v1280
        %v1288 = vmul.f32 %v1265, %v1280
        %v1289 = vmul.f32 %v1281, %v1281
        %v1290 = vmul.f32 %v1282, %v1282
        %v1291 = vmul.f32 %v1283, %v1283
        %v1292 = vmul.f32 %v1284, %v1284
        %v1293 = vmul.f32 %v1285, %v1285
        %v1294 = vmul.f32 %v1286, %v1286
        %v1295 = vmul.f32 %v1287, %v1287
        %v1296 = vmul.f32 %v1288, %v1288
        %v1297 = vsel %vm726, %v1289, 0.0
        %v1298 = vsel %vm726, %v1290, 0.0
        %v1299 = vadd.f32 %v1297, %v1298
        %v1300 = vsel %vm726, %v1291, 0.0
        %v1301 = vadd.f32 %v1299, %v1300
        %v1302 = vsel %vm726, %v1292, 0.0
        %v1303 = vadd.f32 %v1301, %v1302
        %v1304 = vsel %vm726, %v1293, 0.0
        %v1305 = vadd.f32 %v1303, %v1304
        %v1306 = vsel %vm726, %v1294, 0.0
        %v1307 = vadd.f32 %v1305, %v1306
        %v1308 = vsel %vm726, %v1295, 0.0
        %v1309 = vadd.f32 %v1307, %v1308
        %v1310 = vsel %vm726, %v1296, 0.0
        %v1311 = vadd.f32 %v1309, %v1310
        %v1312 = vrot.slane %v1311, 4
        %v1313 = vadd.f32 %v1311, %v1312
        %v1314 = vrot.slane %v1313, 2
        %v1315 = vadd.f32 %v1313, %v1314
        %v1316 = vrot.slane %v1315, 1
        %v1317 = vadd.f32 %v1315, %v1316
        %v1318 = vrsqrt.pop %v1317
        %v1319 = vmul.f32 %v1317, %v1318
        %vm1320 = vcmp.eq.f32.partialorder %v1317, inf
        %v1321 = vsel %vm1320, %v1317, %v1319
        %vm1322 = vcmp.eq.f32.partialorder %v1317, 0.0
        %v1323 = vand.u32 %v1317, 2147483648
        %v1324 = vsel %vm1322, %v1323, %v1321
        %v1325 = vadd.f32 %v1324, 1e-06
        %v1326 = vrcp.pop %v1325
        %v1327 = vmul.f32 %v1281, %v1326
        %v1328 = vmul.f32 %v1282, %v1326
        %v1329 = vmul.f32 %v1283, %v1326
        %v1330 = vmul.f32 %v1284, %v1326
        %v1331 = vmul.f32 %v1285, %v1326
        %v1332 = vmul.f32 %v1286, %v1326
        %v1333 = vmul.f32 %v1287, %v1326
        %v1334 = vmul.f32 %v1288, %v1326
        %v1335 = vpack.c.bf16 %v1328, %v1327
        %v1336 = vpack.c.bf16 %v1330, %v1329
        %v1337 = vpack.c.bf16 %v1332, %v1331
        %v1338 = vpack.c.bf16 %v1334, %v1333
        %v1340 = vsel %vm726, %v1335, 0
        %v1343 = vsel %vm726, %v1336, 0
        %v1346 = vsel %vm726, %v1337, 0
        %v1349 = vsel %vm726, %v1338, 0
        %1351 = vmatprep.subr.bf16.mxu0 %v1200
        %1352 = vmatpush1.bf16.msra.mxu0 %v1199
        %1353 = vmatprep.subr.bf16.mxu0 %v1202
        %1354 = vmatpush1.bf16.msra.mxu0 %v1201
        %1355 = vmatprep.subr.bf16.mxu0 0
        %1356 = vmatpush1.bf16.msra.mxu0 0
        %1357 = vmatprep.subr.bf16.mxu0 0
        %1358 = vmatpush1.bf16.msra.mxu0 0
        %1359 = vmatprep.subr.bf16.mxu0 0
        %1360 = vmatpush1.bf16.msra.mxu0 0
        %1361 = vmatprep.subr.bf16.mxu0 0
        %1362 = vmatpush1.bf16.msra.mxu0 0
        %1363 = vmatprep.subr.bf16.mxu0 0
        %1364 = vmatpush1.bf16.msra.mxu0 0
        %1365 = vmatprep.subr.bf16.mxu0 0
        %1366 = vmatpush1.bf16.msra.mxu0 0
        %1367 = vmatprep.subr.bf16.mxu0 0
        %1368 = vmatpush1.bf16.msra.mxu0 0
        %1369 = vmatprep.subr.bf16.mxu0 0
        %1370 = vmatpush1.bf16.msra.mxu0 0
        %1371 = vmatprep.subr.bf16.mxu0 0
        %1372 = vmatpush1.bf16.msra.mxu0 0
        %1373 = vmatprep.subr.bf16.mxu0 0
        %1374 = vmatpush1.bf16.msra.mxu0 0
        %1375 = vmatprep.subr.bf16.mxu0 0
        %1376 = vmatpush1.bf16.msra.mxu0 0
        %1377 = vmatprep.subr.bf16.mxu0 0
        %1378 = vmatpush1.bf16.msra.mxu0 0
        %1379 = vmatprep.subr.bf16.mxu0 0
        %1380 = vmatpush1.bf16.msra.mxu0 0
        %1381 = vmatprep.subr.bf16.mxu0 0
        %1382 = vmatpush1.bf16.msra.mxu0 0
        %1383 = vmatprep.mubr.bf16.mxu0 0
        %1384 = vmatmul.mubr.bf16.gmra.mrb[0].mxu0 %v1340
        %v1385 = vpop.f32.mrb[0].mxu0
        %v1386 = vadd.f32 0.0, %v1385
        %v1387 = vpop.f32.mrb[0].mxu0
        %v1388 = vadd.f32 0.0, %v1387
        %v1389 = vpop.f32.mrb[0].mxu0
        %v1390 = vadd.f32 0.0, %v1389
        %v1391 = vpop.f32.mrb[0].mxu0
        %v1392 = vadd.f32 0.0, %v1391
        %1393 = vmatprep.mubr.bf16.mxu0 0
        %1394 = vmatmul.mubr.bf16.gmra.mrb[0].mxu0 %v1343
        %v1395 = vpop.f32.mrb[0].mxu0
        %v1396 = vadd.f32 0.0, %v1395
        %v1397 = vpop.f32.mrb[0].mxu0
        %v1398 = vadd.f32 0.0, %v1397
        %v1399 = vpop.f32.mrb[0].mxu0
        %v1400 = vadd.f32 0.0, %v1399
        %v1401 = vpop.f32.mrb[0].mxu0
        %v1402 = vadd.f32 0.0, %v1401
        %1403 = vmatprep.mubr.bf16.mxu0 0
        %1404 = vmatmul.mubr.bf16.gmra.mrb[0].mxu0 %v1346
        %v1405 = vpop.f32.mrb[0].mxu0
        %v1406 = vadd.f32 0.0, %v1405
        %v1407 = vpop.f32.mrb[0].mxu0
        %v1408 = vadd.f32 0.0, %v1407
        %v1409 = vpop.f32.mrb[0].mxu0
        %v1410 = vadd.f32 0.0, %v1409
        %v1411 = vpop.f32.mrb[0].mxu0
        %v1412 = vadd.f32 0.0, %v1411
        %1413 = vmatprep.mubr.bf16.mxu0 0
        %1414 = vmatmul.mubr.bf16.gmra.mrb[0].mxu0 %v1349
        %v1415 = vpop.f32.mrb[0].mxu0
        %v1416 = vadd.f32 0.0, %v1415
        %v1417 = vpop.f32.mrb[0].mxu0
        %v1418 = vadd.f32 0.0, %v1417
        %v1419 = vpop.f32.mrb[0].mxu0
        %v1420 = vadd.f32 0.0, %v1419
        %v1421 = vpop.f32.mrb[0].mxu0
        %v1422 = vadd.f32 0.0, %v1421
        %1423 = vdwg.mxu0
        %v1424 = vmax.f32 %v1386, 0.0
        %v1425 = vmax.f32 %v1388, 0.0
        %v1426 = vmax.f32 %v1390, 0.0
        %v1427 = vmax.f32 %v1392, 0.0
        %v1428 = vmax.f32 %v1396, 0.0
        %v1429 = vmax.f32 %v1398, 0.0
        %v1430 = vmax.f32 %v1400, 0.0
        %v1431 = vmax.f32 %v1402, 0.0
        %v1432 = vmax.f32 %v1406, 0.0
        %v1433 = vmax.f32 %v1408, 0.0
        %v1434 = vmax.f32 %v1410, 0.0
        %v1435 = vmax.f32 %v1412, 0.0
        %v1436 = vmax.f32 %v1416, 0.0
        %v1437 = vmax.f32 %v1418, 0.0
        %v1438 = vmax.f32 %v1420, 0.0
        %v1439 = vmax.f32 %v1422, 0.0
        %v1440 = vpack.c.bf16 %v1426, %v1424
        %v1441 = vpack.c.bf16 %v1427, %v1425
        %v1442 = vpack.c.bf16 %v1430, %v1428
        %v1443 = vpack.c.bf16 %v1431, %v1429
        %v1444 = vpack.c.bf16 %v1434, %v1432
        %v1445 = vpack.c.bf16 %v1435, %v1433
        %v1446 = vpack.c.bf16 %v1438, %v1436
        %v1447 = vpack.c.bf16 %v1439, %v1437
        %v1448 = vld [vmem:[%s3] sm:$0xff]
        %v1449 = vld [vmem:[%s3 + $0x8] sm:$0xff]
        %v1450 = vld [vmem:[%s3 + $0x10] sm:$0xff]
        %v1451 = vld [vmem:[%s3 + $0x18] sm:$0xff]
        %v1452 = vld [vmem:[%s3 + $0x20] sm:$0xff]
        %v1453 = vld [vmem:[%s3 + $0x28] sm:$0xff]
        %v1454 = vld [vmem:[%s3 + $0x30] sm:$0xff]
        %v1455 = vld [vmem:[%s3 + $0x38] sm:$0xff]
        %v1456 = vpack.c.bf16 %v1449, %v1448
        %v1457 = vpack.c.bf16 %v1451, %v1450
        %v1458 = vpack.c.bf16 %v1453, %v1452
        %v1459 = vpack.c.bf16 %v1455, %v1454
        %v1461 = vsel %vm376, %v1456, 0
        %v1464 = vsel %vm376, %v1457, 0
        %v1467 = vsel %vm376, %v1458, 0
        %v1470 = vsel %vm376, %v1459, 0
        %1472 = vmatprep.subr.bf16.mxu0 %v1441
        %1473 = vmatpush1.bf16.msra.mxu0 %v1440
        %1474 = vmatprep.subr.bf16.mxu0 %v1443
        %1475 = vmatpush1.bf16.msra.mxu0 %v1442
        %1476 = vmatprep.subr.bf16.mxu0 %v1445
        %1477 = vmatpush1.bf16.msra.mxu0 %v1444
        %1478 = vmatprep.subr.bf16.mxu0 %v1447
        %1479 = vmatpush1.bf16.msra.mxu0 %v1446
        %1480 = vmatprep.subr.bf16.mxu0 0
        %1481 = vmatpush1.bf16.msra.mxu0 0
        %1482 = vmatprep.subr.bf16.mxu0 0
        %1483 = vmatpush1.bf16.msra.mxu0 0
        %1484 = vmatprep.subr.bf16.mxu0 0
        %1485 = vmatpush1.bf16.msra.mxu0 0
        %1486 = vmatprep.subr.bf16.mxu0 0
        %1487 = vmatpush1.bf16.msra.mxu0 0
        %1488 = vmatprep.subr.bf16.mxu0 0
        %1489 = vmatpush1.bf16.msra.mxu0 0
        %1490 = vmatprep.subr.bf16.mxu0 0
        %1491 = vmatpush1.bf16.msra.mxu0 0
        %1492 = vmatprep.subr.bf16.mxu0 0
        %1493 = vmatpush1.bf16.msra.mxu0 0
        %1494 = vmatprep.subr.bf16.mxu0 0
        %1495 = vmatpush1.bf16.msra.mxu0 0
        %1496 = vmatprep.subr.bf16.mxu0 0
        %1497 = vmatpush1.bf16.msra.mxu0 0
        %1498 = vmatprep.subr.bf16.mxu0 0
        %1499 = vmatpush1.bf16.msra.mxu0 0
        %1500 = vmatprep.subr.bf16.mxu0 0
        %1501 = vmatpush1.bf16.msra.mxu0 0
        %1502 = vmatprep.subr.bf16.mxu0 0
        %1503 = vmatpush1.bf16.msra.mxu0 0
        %1504 = vmatprep.mubr.bf16.mxu0 0
        %1505 = vmatmul.mubr.bf16.gmra.mrb[0].mxu0 %v1461
        %v1506 = vpop.f32.mrb[0].mxu0
        %v1507 = vadd.f32 %v312, %v1506
        %v1508 = vpop.f32.mrb[0].mxu0
        %v1509 = vadd.f32 %v313, %v1508
        %v1510 = vpop.f32.mrb[0].mxu0
        %v1511 = vadd.f32 %v314, %v1510
        %v1512 = vpop.f32.mrb[0].mxu0
        %v1513 = vadd.f32 %v315, %v1512
        %1514 = vmatprep.mubr.bf16.mxu0 0
        %1515 = vmatmul.mubr.bf16.gmra.mrb[0].mxu0 %v1464
        %v1516 = vpop.f32.mrb[0].mxu0
        %v1517 = vadd.f32 %v316, %v1516
        %v1518 = vpop.f32.mrb[0].mxu0
        %v1519 = vadd.f32 %v317, %v1518
        %v1520 = vpop.f32.mrb[0].mxu0
        %v1521 = vadd.f32 %v318, %v1520
        %v1522 = vpop.f32.mrb[0].mxu0
        %v1523 = vadd.f32 %v319, %v1522
        %1524 = vmatprep.mubr.bf16.mxu0 0
        %1525 = vmatmul.mubr.bf16.gmra.mrb[0].mxu0 %v1467
        %v1526 = vpop.f32.mrb[0].mxu0
        %v1527 = vadd.f32 %v320, %v1526
        %v1528 = vpop.f32.mrb[0].mxu0
        %v1529 = vadd.f32 %v321, %v1528
        %v1530 = vpop.f32.mrb[0].mxu0
        %v1531 = vadd.f32 %v322, %v1530
        %v1532 = vpop.f32.mrb[0].mxu0
        %v1533 = vadd.f32 %v323, %v1532
        %1534 = vmatprep.mubr.bf16.mxu0 0
        %1535 = vmatmul.mubr.bf16.gmra.mrb[0].mxu0 %v1470
        %v1536 = vpop.f32.mrb[0].mxu0
        %v1537 = vadd.f32 %v324, %v1536
        %v1538 = vpop.f32.mrb[0].mxu0
        %v1539 = vadd.f32 %v325, %v1538
        %v1540 = vpop.f32.mrb[0].mxu0
        %v1541 = vadd.f32 %v326, %v1540
        %v1542 = vpop.f32.mrb[0].mxu0
        %v1543 = vadd.f32 %v327, %v1542
        %1544 = vdwg.mxu0
        %v1545 = vmax.f32 %v1507, 0.0
        %v1546 = vmax.f32 %v1509, 0.0
        %v1547 = vmax.f32 %v1511, 0.0
        %v1548 = vmax.f32 %v1513, 0.0
        %v1549 = vmax.f32 %v1517, 0.0
        %v1550 = vmax.f32 %v1519, 0.0
        %v1551 = vmax.f32 %v1521, 0.0
        %v1552 = vmax.f32 %v1523, 0.0
        %v1553 = vmax.f32 %v1527, 0.0
        %v1554 = vmax.f32 %v1529, 0.0
        %v1555 = vmax.f32 %v1531, 0.0
        %v1556 = vmax.f32 %v1533, 0.0
        %v1557 = vmax.f32 %v1537, 0.0
        %v1558 = vmax.f32 %v1539, 0.0
        %v1559 = vmax.f32 %v1541, 0.0
        %v1560 = vmax.f32 %v1543, 0.0
        %1561 = vst [vmem:[%s270] sm:$0xff] %v1545
        %1562 = vst [vmem:[%s270 + $0x8] sm:$0xff] %v1546
        %1563 = vst [vmem:[%s270 + $0x10] sm:$0xff] %v1547
        %1564 = vst [vmem:[%s270 + $0x18] sm:$0xff] %v1548
        %1565 = vst [vmem:[%s270 + $0x20] sm:$0xff] %v1549
        %1566 = vst [vmem:[%s270 + $0x28] sm:$0xff] %v1550
        %1567 = vst [vmem:[%s270 + $0x30] sm:$0xff] %v1551
        %1568 = vst [vmem:[%s270 + $0x38] sm:$0xff] %v1552
        %1569 = vst [vmem:[%s270 + $0x40] sm:$0xff] %v1553
        %1570 = vst [vmem:[%s270 + $0x48] sm:$0xff] %v1554
        %1571 = vst [vmem:[%s270 + $0x50] sm:$0xff] %v1555
        %1572 = vst [vmem:[%s270 + $0x58] sm:$0xff] %v1556
        %1573 = vst [vmem:[%s270 + $0x60] sm:$0xff] %v1557
        %1574 = vst [vmem:[%s270 + $0x68] sm:$0xff] %v1558
        %1575 = vst [vmem:[%s270 + $0x70] sm:$0xff] %v1559
        %1576 = vst [vmem:[%s270 + $0x78] sm:$0xff] %v1560
        %1577 = vst.msk [vmem:[%s282] sm:$0xff] %vm726, %v1327
        %1578 = vst.msk [vmem:[%s282 + $0x8] sm:$0xff] %vm726, %v1328
        %1579 = vst.msk [vmem:[%s282 + $0x10] sm:$0xff] %vm726, %v1329
        %1580 = vst.msk [vmem:[%s282 + $0x18] sm:$0xff] %vm726, %v1330
        %1581 = vst.msk [vmem:[%s282 + $0x20] sm:$0xff] %vm726, %v1331
        %1582 = vst.msk [vmem:[%s282 + $0x28] sm:$0xff] %vm726, %v1332
        %1583 = vst.msk [vmem:[%s282 + $0x30] sm:$0xff] %vm726, %v1333
        %1584 = vst.msk [vmem:[%s282 + $0x38] sm:$0xff] %vm726, %v1334
        %s1585 = sand.u32 %s142, 1
        %s1586 = scalar_lea.sflag [#allocation4], %s1585
        %s1587 = sand.u32 %s142, 1
        %s1588 = smul.addr %s1587, 128
        %s1589 = scalar_lea.vmem [#allocation5], %s1588
        %p1590 = scmp.lt.s32.totalorder %s24, 1
        %s1591 = scalar_select %p1590, %s24, 1
        %s1592 = smul.addr %s1591, 8
        %s1593 = smul.addr %s1592, 8
        %s1594 = scalar_lea.vmem %s6, %s1593
        // Predicated region
        $region45: #{tpu_custom_call.1} parent=39 // pred_check
          %p1595 = pneg %p152
        $region46: #{tpu_custom_call.1} parent=39 // pred_check_branch
          %1597 = sbr.rel (%p1595) target = $region48
        $region47: #{tpu_custom_call.1} parent=39 // pred_region
          %s1599 = ssub.s32 2048, 2048
          %1600 = vsyncadd %s1586, %s1599
          %s1601 = smul.addr %s24, 16
          %s1602 = smul.addr %s1601, 128
          %s1603 = scalar_lea.hbm %s5, %s1602
          %s1604 = sshll.u32 %s1589, 4
          %s1605 = int_to_ptr.vmem [resolvable:$true] %s1604
          %1610 = dma.vmem_to_hbm [thread:$0]  %s1605, 2048, %s1603, %s1586, 256, 256, 16
        $region48: #{tpu_custom_call.1} parent=39 // pred_fallthru
          _
        // Predicated region
        $region49: #{tpu_custom_call.1} parent=39 // pred_check
          %p1611 = pneg %p178
        $region50: #{tpu_custom_call.1} parent=39 // pred_check_branch
          %1613 = sbr.rel (%p1611) target = $region52
        $region51: #{tpu_custom_call.1} parent=39 // pred_region
          _
        $region52: #{tpu_custom_call.1} parent=39 // pred_fallthru
          _
      $region40: #{tpu_custom_call.1} parent=5 // pred_fallthru
        _
      %p1614 = scmp.le.s32.totalorder 2, %s19
      // Predicated region
      $region53: #{tpu_custom_call.1} parent=5 // pred_check
        %p1615 = pneg %p1614
      $region54: #{tpu_custom_call.1} parent=5 // pred_check_branch
        %1617 = sbr.rel (%p1615) target = $region56
      $region55: #{tpu_custom_call.1} parent=5 // pred_region
        %s1618 = ssub.s32 %s19, 2
        // Predicated region
        $region57: #{tpu_custom_call.1} parent=55 // pred_check
          %p1619 = pneg %p158
        $region58: #{tpu_custom_call.1} parent=55 // pred_check_branch
          %1621 = sbr.rel (%p1619) target = $region60
        $region59: #{tpu_custom_call.1} parent=55 // pred_region
          %s1622 = sand.u32 %s143, 1
          %s1623 = scalar_lea.sflag [#allocation4], %s1622
          %s1624 = sand.u32 %s143, 1
          %s1625 = smul.addr %s1624, 128
          %s1626 = scalar_lea.vmem [#allocation5], %s1625
          %1627 = dma.done %s1623, 2048
        $region60: #{tpu_custom_call.1} parent=55 // pred_fallthru
          _
        // Predicated region
        $region61: #{tpu_custom_call.1} parent=55 // pred_check
          %p1628 = pneg %p184
        $region62: #{tpu_custom_call.1} parent=55 // pred_check_branch
          %1630 = sbr.rel (%p1628) target = $region64
        $region63: #{tpu_custom_call.1} parent=55 // pred_region
          %p1631 = scmp.lt.s32.totalorder %s25, 1
          %s1632 = scalar_select %p1631, %s25, 1
          %s1633 = smul.addr %s1632, 8
          %s1634 = smul.addr %s1633, 8
          %s1635 = scalar_lea.vmem %s6, %s1634
        $region64: #{tpu_custom_call.1} parent=55 // pred_fallthru
          _
      $region56: #{tpu_custom_call.1} parent=5 // pred_fallthru
        _
    $region6: #{tpu_custom_call.1} parent=1 // loop_footer
      %s23 = sadd.s32 1, %s19
    $region7: #{tpu_custom_call.1} parent=1 // loop_footer_branch
      %18 = sbr.rel target = $region3
    $region8: #{tpu_custom_call.1} parent=1 // loop_exit
      _
    %1636 = vsyncpa [#allocation3], 1
    %s1637 = scalar_lea.sflag [#allocation3], 1
    %1638 = vsyncpa %s1637, 1
    %1639 = vsyncpa [#allocation4], 1
    %s1640 = scalar_lea.sflag [#allocation4], 1
    %1641 = vsyncpa %s1640, 1

// kernel: tpu_custom_call.1
$region0: #{tpu_custom_call.1}
  #allocation0 [shape = 'u32[]', space=smem, size = 0x4, offset = 0x4, fixed_abs, tag = 'smem constant byte address 0x4 - core index']
  #allocation1 [shape = 'u32[144,128]{1,0:T(1,128)}', space=vmem, size = 0x12000, scoped, tag = 'internal scratch']
  %s0 = inlined_call_operand.hbm [shape: f32[2,64,256], index: 0, kind: input, shape index: {}]
  %s1 = inlined_call_operand.vmem [shape: f32[64,64], index: 1, kind: input, shape index: {}]
  %s2 = inlined_call_operand.vmem [shape: f32[64,1], index: 2, kind: input, shape index: {}]
  %s3 = inlined_call_operand.vmem [shape: f32[64,64], index: 3, kind: input, shape index: {}]
  %s4 = inlined_call_operand.vmem [shape: f32[64,32], index: 4, kind: input, shape index: {}]
  %s5 = inlined_call_operand.hbm [shape: f32[2,64,256], index: 5, kind: output, shape index: {0}]
  %s6 = inlined_call_operand.vmem [shape: f32[2,64,32], index: 6, kind: output, shape index: {1}]
  %7 = xla_tuple %s5, %s6
  %s8 = sld [smem:[#allocation0]]
  $region65: #{tpu_custom_call.1} parent=0
    _
  %s10 = ssub.s32 1, %s8
  %s11 = scalar_select 0, %s10, %s8
  $region1: #{tpu_custom_call.1} parent=0
    #allocation2 [shape = 'u8[131072]{0}', space=vmem, size = 0x20000, scoped, tag = 'input window, operand 0']
    #allocation3 [shape = 's32[2]{0}', space=sflag, size = 0x8, scoped, tag = 'scoped memory for tpu_custom_call.1']
    #allocation4 [shape = 's32[2]{0}', space=sflag, size = 0x8, scoped, tag = 'scoped memory for tpu_custom_call.1']
    #allocation5 [shape = 'u8[131072]{0}', space=vmem, size = 0x20000, scoped, tag = 'output window, operand 0']
    %12 = vsyncpa [#allocation3], 0
    %s13 = scalar_lea.sflag [#allocation3], 1
    %14 = vsyncpa %s13, 0
    %15 = vsyncpa [#allocation4], 0
    %s16 = scalar_lea.sflag [#allocation4], 1
    %17 = vsyncpa %s16, 0
    loop: start=0, step=1, limit=4
    $region2: #{tpu_custom_call.1} parent=1 // loop_pre_header
      _
    $region3: #{tpu_custom_call.1} parent=1 // loop_header
      %s19 = sphi 0, %s23
      %p20 = scmp.ge.s32.totalorder %s19, 4
      %s29 = sphi 0, %s31
      %s32 = sphi 0, %s29
      %s33 = sphi 0, %s32
      %s49 = sphi 0, %s33
      %s53 = sphi 0, %s53
      %s55 = sphi 0, %s53
      %s56 = sphi 0, %s55
      %s70 = sphi 0, %s56
      %s74 = sphi 0, %s74
      %s76 = sphi 0, %s74
      %s77 = sphi 0, %s76
      %s91 = sphi 0, %s77
      %s95 = sphi 0, %s95
      %s97 = sphi 0, %s95
      %s98 = sphi 0, %s97
      %s112 = sphi 0, %s98
      %s116 = sphi 0, %s116
      %s118 = sphi 0, %s116
      %s119 = sphi 0, %s118
      %s133 = sphi 0, %s119
      %s139 = sphi 0, %s141
      %s142 = sphi 0, %s139
      %s143 = sphi 0, %s142
      %s159 = sphi 0, %s143
      %s165 = sphi 0, %s167
      %s168 = sphi 0, %s165
      %s169 = sphi 0, %s168
      %s185 = sphi 0, %s169
    $region4: #{tpu_custom_call.1} parent=1 // loop_header_branch
      %22 = sbr.rel (%p20) target = $region8
    $region5: #{tpu_custom_call.1} parent=1 // loop_body
      %s24 = ssub.s32 %s19, 1
      %s25 = ssub.s32 %s19, 2
      %s26 = sadd.s32 %s19, 1
      %s27 = ssub.s32 %s19, %s26
      %p28 = scmp.eq.s32.totalorder %s27, 0
      %s30 = sadd.s32 %s29, 1
      %s31 = scalar_select %p28, %s29, %s30
      %p34 = pneg %p28
      %p35 = scmp.eq.s32.totalorder %s19, 1
      %p36 = por %p34, %p35
      %p37 = scmp.ne.s32.totalorder %s29, %s32
      %p38 = scmp.eq.s32.totalorder %s19, 0
      %p39 = por %p37, %p38
      %p40 = scmp.ne.s32.totalorder %s29, %s32
      %p41 = scmp.eq.s32.totalorder %s24, 1
      %p42 = por %p40, %p41
      %p43 = scmp.ne.s32.totalorder %s32, %s33
      %p44 = scmp.eq.s32.totalorder %s24, 0
      %p45 = por %p43, %p44
      %p46 = scmp.ne.s32.totalorder %s32, %s33
      %p47 = scmp.eq.s32.totalorder %s25, 1
      %p48 = por %p46, %p47
      %p50 = scmp.ne.s32.totalorder %s33, %s49
      %p51 = scmp.eq.s32.totalorder %s25, 0
      %p52 = por %p50, %p51
      %s54 = sadd.s32 %s53, 1
      %p57 = scmp.eq.s32.totalorder %s19, 1
      %p58 = scmp.ne.s32.totalorder %s53, %s55
      %p59 = scmp.eq.s32.totalorder %s19, 0
      %p60 = por %p58, %p59
      %p61 = scmp.ne.s32.totalorder %s53, %s55
      %p62 = scmp.eq.s32.totalorder %s24, 1
      %p63 = por %p61, %p62
      %p64 = scmp.ne.s32.totalorder %s55, %s56
      %p65 = scmp.eq.s32.totalorder %s24, 0
      %p66 = por %p64, %p65
      %p67 = scmp.ne.s32.totalorder %s55, %s56
      %p68 = scmp.eq.s32.totalorder %s25, 1
      %p69 = por %p67, %p68
      %p71 = scmp.ne.s32.totalorder %s56, %s70
      %p72 = scmp.eq.s32.totalorder %s25, 0
      %p73 = por %p71, %p72
      %s75 = sadd.s32 %s74, 1
      %p78 = scmp.eq.s32.totalorder %s19, 1
      %p79 = scmp.ne.s32.totalorder %s74, %s76
      %p80 = scmp.eq.s32.totalorder %s19, 0
      %p81 = por %p79, %p80
      %p82 = scmp.ne.s32.totalorder %s74, %s76
      %p83 = scmp.eq.s32.totalorder %s24, 1
      %p84 = por %p82, %p83
      %p85 = scmp.ne.s32.totalorder %s76, %s77
      %p86 = scmp.eq.s32.totalorder %s24, 0
      %p87 = por %p85, %p86
      %p88 = scmp.ne.s32.totalorder %s76, %s77
      %p89 = scmp.eq.s32.totalorder %s25, 1
      %p90 = por %p88, %p89
      %p92 = scmp.ne.s32.totalorder %s77, %s91
      %p93 = scmp.eq.s32.totalorder %s25, 0
      %p94 = por %p92, %p93
      %s96 = sadd.s32 %s95, 1
      %p99 = scmp.eq.s32.totalorder %s19, 1
      %p100 = scmp.ne.s32.totalorder %s95, %s97
      %p101 = scmp.eq.s32.totalorder %s19, 0
      %p102 = por %p100, %p101
      %p103 = scmp.ne.s32.totalorder %s95, %s97
      %p104 = scmp.eq.s32.totalorder %s24, 1
      %p105 = por %p103, %p104
      %p106 = scmp.ne.s32.totalorder %s97, %s98
      %p107 = scmp.eq.s32.totalorder %s24, 0
      %p108 = por %p106, %p107
      %p109 = scmp.ne.s32.totalorder %s97, %s98
      %p110 = scmp.eq.s32.totalorder %s25, 1
      %p111 = por %p109, %p110
      %p113 = scmp.ne.s32.totalorder %s98, %s112
      %p114 = scmp.eq.s32.totalorder %s25, 0
      %p115 = por %p113, %p114
      %s117 = sadd.s32 %s116, 1
      %p120 = scmp.eq.s32.totalorder %s19, 1
      %p121 = scmp.ne.s32.totalorder %s116, %s118
      %p122 = scmp.eq.s32.totalorder %s19, 0
      %p123 = por %p121, %p122
      %p124 = scmp.ne.s32.totalorder %s116, %s118
      %p125 = scmp.eq.s32.totalorder %s24, 1
      %p126 = por %p124, %p125
      %p127 = scmp.ne.s32.totalorder %s118, %s119
      %p128 = scmp.eq.s32.totalorder %s24, 0
      %p129 = por %p127, %p128
      %p130 = scmp.ne.s32.totalorder %s118, %s119
      %p131 = scmp.eq.s32.totalorder %s25, 1
      %p132 = por %p130, %p131
      %p134 = scmp.ne.s32.totalorder %s119, %s133
      %p135 = scmp.eq.s32.totalorder %s25, 0
      %p136 = por %p134, %p135
      %s137 = ssub.s32 %s19, %s26
      %p138 = scmp.eq.s32.totalorder %s137, 0
      %s140 = sadd.s32 %s139, 1
      %s141 = scalar_select %p138, %s139, %s140
      %p144 = pneg %p138
      %p145 = scmp.eq.s32.totalorder %s19, 1
      %p146 = por %p144, %p145
      %p147 = scmp.ne.s32.totalorder %s139, %s142
      %p148 = scmp.eq.s32.totalorder %s19, 0
      %p149 = por %p147, %p148
      %p150 = scmp.ne.s32.totalorder %s139, %s142
      %p151 = scmp.eq.s32.totalorder %s24, 1
      %p152 = por %p150, %p151
      %p153 = scmp.ne.s32.totalorder %s142, %s143
      %p154 = scmp.eq.s32.totalorder %s24, 0
      %p155 = por %p153, %p154
      %p156 = scmp.ne.s32.totalorder %s142, %s143
      %p157 = scmp.eq.s32.totalorder %s25, 1
      %p158 = por %p156, %p157
      %p160 = scmp.ne.s32.totalorder %s143, %s159
      %p161 = scmp.eq.s32.totalorder %s25, 0
      %p162 = por %p160, %p161
      %s163 = ssub.s32 %s19, %s26
      %p164 = scmp.eq.s32.totalorder %s163, 0
      %s166 = sadd.s32 %s165, 1
      %s167 = scalar_select %p164, %s165, %s166
      %p170 = pneg %p164
      %p171 = scmp.eq.s32.totalorder %s19, 1
      %p172 = por %p170, %p171
      %p173 = scmp.ne.s32.totalorder %s165, %s168
      %p174 = scmp.eq.s32.totalorder %s19, 0
      %p175 = por %p173, %p174
      %p176 = scmp.ne.s32.totalorder %s165, %s168
      %p177 = scmp.eq.s32.totalorder %s24, 1
      %p178 = por %p176, %p177
      %p179 = scmp.ne.s32.totalorder %s168, %s169
      %p180 = scmp.eq.s32.totalorder %s24, 0
      %p181 = por %p179, %p180
      %p182 = scmp.ne.s32.totalorder %s168, %s169
      %p183 = scmp.eq.s32.totalorder %s25, 1
      %p184 = por %p182, %p183
      %p186 = scmp.ne.s32.totalorder %s169, %s185
      %p187 = scmp.eq.s32.totalorder %s25, 0
      %p188 = por %p186, %p187
      %p189 = scmp.le.s32.totalorder 1, %s19
      %p190 = scmp.lt.s32.totalorder %s19, 3
      %p191 = pnand %p189, %p190
      %p192 = pneg %p191
      // Predicated region
      $region9: #{tpu_custom_call.1} parent=5 // pred_check
        _
      $region10: #{tpu_custom_call.1} parent=5 // pred_check_branch
        %194 = sbr.rel (%p191) target = $region12
      $region11: #{tpu_custom_call.1} parent=5 // pred_region
        %s195 = ssub.s32 %s19, 1
        // Predicated region
        $region13: #{tpu_custom_call.1} parent=11 // pred_check
          %p196 = pneg %p66
        $region14: #{tpu_custom_call.1} parent=11 // pred_check_branch
          %198 = sbr.rel (%p196) target = $region16
        $region15: #{tpu_custom_call.1} parent=11 // pred_region
          _
        $region16: #{tpu_custom_call.1} parent=11 // pred_fallthru
          _
        // Predicated region
        $region17: #{tpu_custom_call.1} parent=11 // pred_check
          %p199 = pneg %p87
        $region18: #{tpu_custom_call.1} parent=11 // pred_check_branch
          %201 = sbr.rel (%p199) target = $region20
        $region19: #{tpu_custom_call.1} parent=11 // pred_region
          _
        $region20: #{tpu_custom_call.1} parent=11 // pred_fallthru
          _
        // Predicated region
        $region21: #{tpu_custom_call.1} parent=11 // pred_check
          %p202 = pneg %p108
        $region22: #{tpu_custom_call.1} parent=11 // pred_check_branch
          %204 = sbr.rel (%p202) target = $region24
        $region23: #{tpu_custom_call.1} parent=11 // pred_region
          _
        $region24: #{tpu_custom_call.1} parent=11 // pred_fallthru
          _
        // Predicated region
        $region25: #{tpu_custom_call.1} parent=11 // pred_check
          %p205 = pneg %p129
        $region26: #{tpu_custom_call.1} parent=11 // pred_check_branch
          %207 = sbr.rel (%p205) target = $region28
        $region27: #{tpu_custom_call.1} parent=11 // pred_region
          _
        $region28: #{tpu_custom_call.1} parent=11 // pred_fallthru
          _
      $region12: #{tpu_custom_call.1} parent=5 // pred_fallthru
        _
      %p208 = scmp.lt.s32.totalorder %s19, 2
      // Predicated region
      $region29: #{tpu_custom_call.1} parent=5 // pred_check
        %p209 = pneg %p208
      $region30: #{tpu_custom_call.1} parent=5 // pred_check_branch
        %211 = sbr.rel (%p209) target = $region32
      $region31: #{tpu_custom_call.1} parent=5 // pred_region
        // Predicated region
        $region33: #{tpu_custom_call.1} parent=31 // pred_check
          %p212 = pneg %p39
        $region34: #{tpu_custom_call.1} parent=31 // pred_check_branch
          %214 = sbr.rel (%p212) target = $region36
        $region35: #{tpu_custom_call.1} parent=31 // pred_region
          %s215 = sand.u32 %s29, 1
          %s216 = scalar_lea.sflag [#allocation3], %s215
          %s217 = sand.u32 %s29, 1
          %s218 = smul.addr %s217, 128
          %s219 = scalar_lea.vmem [#allocation2], %s218
          %s221 = ssub.s32 2048, 2048
          %222 = vsyncadd %s216, %s221
          %s223 = smul.addr %s19, 16
          %s224 = smul.addr %s223, 128
          %s225 = scalar_lea.hbm %s0, %s224
          %s226 = sshll.u32 %s219, 4
          %s227 = int_to_ptr.vmem [resolvable:$true] %s226
          %232 = dma.hbm_to_vmem [thread:$0]  %s225, 2048, %s227, %s216, 256, 256, 16
        $region36: #{tpu_custom_call.1} parent=31 // pred_fallthru
          _
      $region32: #{tpu_custom_call.1} parent=5 // pred_fallthru
        _
      %p233 = scmp.le.s32.totalorder 1, %s19
      %p234 = scmp.lt.s32.totalorder %s19, 3
      %p235 = pnand %p233, %p234
      %p236 = pneg %p235
      // Predicated region
      $region37: #{tpu_custom_call.1} parent=5 // pred_check
        _
      $region38: #{tpu_custom_call.1} parent=5 // pred_check_branch
        %238 = sbr.rel (%p235) target = $region40
      $region39: #{tpu_custom_call.1} parent=5 // pred_region
        %s239 = ssub.s32 %s19, 1
        %s240 = sand.u32 %s32, 1
        %s241 = scalar_lea.sflag [#allocation3], %s240
        %s242 = sand.u32 %s32, 1
        %s243 = smul.addr %s242, 128
        %s244 = scalar_lea.vmem [#allocation2], %s243
        // Predicated region
        $region41: #{tpu_custom_call.1} parent=39 // pred_check
          %p245 = pneg %p45
        $region42: #{tpu_custom_call.1} parent=39 // pred_check_branch
          %247 = sbr.rel (%p245) target = $region44
        $region43: #{tpu_custom_call.1} parent=39 // pred_region
          %248 = dma.done %s241, 2048
        $region44: #{tpu_custom_call.1} parent=39 // pred_fallthru
          _
        %s249 = sand.u32 %s32, 1
        %s250 = scalar_lea.sflag [#allocation3], %s249
        %s251 = sand.u32 %s32, 1
        %s252 = smul.addr %s251, 128
        %s253 = scalar_lea.vmem [#allocation2], %s252
        %p254 = pneg %p45
        %p255 = pneg %p42
        %p256 = pneg %p66
        %p257 = pneg %p63
        %p258 = pneg %p87
        %p259 = pneg %p84
        %p260 = pneg %p108
        %p261 = pneg %p105
        %p262 = pneg %p129
        %p263 = pneg %p126
        %p264 = pneg %p155
        %p265 = pneg %p152
        %s266 = sand.u32 %s142, 1
        %s267 = scalar_lea.sflag [#allocation4], %s266
        %s268 = sand.u32 %s142, 1
        %s269 = smul.addr %s268, 128
        %s270 = scalar_lea.vmem [#allocation5], %s269
        %p271 = pneg %p181
        %p272 = pneg %p178
        %p273 = scmp.lt.s32.totalorder %s24, 1
        %s274 = scalar_select %p273, %s24, 1
        %s275 = smul.addr %s274, 8
        %s276 = smul.addr %s275, 8
        %s277 = scalar_lea.vmem %s6, %s276
        %p278 = scmp.lt.s32.totalorder %s24, 1
        %s279 = scalar_select %p278, %s24, 1
        %s280 = smul.addr %s279, 8
        %s281 = smul.addr %s280, 8
        %s282 = scalar_lea.vmem %s6, %s281
        %v284 = vld [vmem:[%s2] sm:$0xff]
        %v285 = vld [vmem:[%s2 + $0x8] sm:$0xff]
        %v286 = vld [vmem:[%s2 + $0x10] sm:$0xff]
        %v287 = vld [vmem:[%s2 + $0x18] sm:$0xff]
        %v288 = vld [vmem:[%s2 + $0x20] sm:$0xff]
        %v289 = vld [vmem:[%s2 + $0x28] sm:$0xff]
        %v290 = vld [vmem:[%s2 + $0x30] sm:$0xff]
        %v291 = vld [vmem:[%s2 + $0x38] sm:$0xff]
        %v292 = vld [vmem:[%s4] sm:$0xff]
        %v293 = vld [vmem:[%s4 + $0x8] sm:$0xff]
        %v294 = vld [vmem:[%s4 + $0x10] sm:$0xff]
        %v295 = vld [vmem:[%s4 + $0x18] sm:$0xff]
        %v296 = vld [vmem:[%s4 + $0x20] sm:$0xff]
        %v297 = vld [vmem:[%s4 + $0x28] sm:$0xff]
        %v298 = vld [vmem:[%s4 + $0x30] sm:$0xff]
        %v299 = vld [vmem:[%s4 + $0x38] sm:$0xff]
        %v300 = vld [vmem:[%s1] sm:$0xff]
        %v301 = vld [vmem:[%s1 + $0x8] sm:$0xff]
        %v302 = vld [vmem:[%s1 + $0x10] sm:$0xff]
        %v303 = vld [vmem:[%s1 + $0x18] sm:$0xff]
        %v304 = vld [vmem:[%s1 + $0x20] sm:$0xff]
        %v305 = vld [vmem:[%s1 + $0x28] sm:$0xff]
        %v306 = vld [vmem:[%s1 + $0x30] sm:$0xff]
        %v307 = vld [vmem:[%s1 + $0x38] sm:$0xff]
        %v308 = vpack.c.bf16 %v301, %v300
        %v309 = vpack.c.bf16 %v303, %v302
        %v310 = vpack.c.bf16 %v305, %v304
        %v311 = vpack.c.bf16 %v307, %v306
        %v312 = vld [vmem:[%s244] sm:$0xff]
        %v313 = vld [vmem:[%s244 + $0x8] sm:$0xff]
        %v314 = vld [vmem:[%s244 + $0x10] sm:$0xff]
        %v315 = vld [vmem:[%s244 + $0x18] sm:$0xff]
        %v316 = vld [vmem:[%s244 + $0x20] sm:$0xff]
        %v317 = vld [vmem:[%s244 + $0x28] sm:$0xff]
        %v318 = vld [vmem:[%s244 + $0x30] sm:$0xff]
        %v319 = vld [vmem:[%s244 + $0x38] sm:$0xff]
        %v320 = vld [vmem:[%s244 + $0x40] sm:$0xff]
        %v321 = vld [vmem:[%s244 + $0x48] sm:$0xff]
        %v322 = vld [vmem:[%s244 + $0x50] sm:$0xff]
        %v323 = vld [vmem:[%s244 + $0x58] sm:$0xff]
        %v324 = vld [vmem:[%s244 + $0x60] sm:$0xff]
        %v325 = vld [vmem:[%s244 + $0x68] sm:$0xff]
        %v326 = vld [vmem:[%s244 + $0x70] sm:$0xff]
        %v327 = vld [vmem:[%s244 + $0x78] sm:$0xff]
        %v328 = vpack.c.bf16 %v314, %v312
        %v329 = vpack.c.bf16 %v315, %v313
        %v330 = vpack.c.bf16 %v318, %v316
        %v331 = vpack.c.bf16 %v319, %v317
        %v332 = vpack.c.bf16 %v322, %v320
        %v333 = vpack.c.bf16 %v323, %v321
        %v334 = vpack.c.bf16 %v326, %v324
        %v335 = vpack.c.bf16 %v327, %v325
        %337 = vset.pattern.permute.xlu0 0
        %338 = vperm.xlu0 %337, %v284
        %v339 = vpop.permute.xlu0 %338
        %342 = vset.pattern.permute.xlu0 0
        %343 = vperm.xlu0 %342, %v285
        %v344 = vpop.permute.xlu0 %343
        %347 = vset.pattern.permute.xlu0 0
        %348 = vperm.xlu0 %347, %v286
        %v349 = vpop.permute.xlu0 %348
        %352 = vset.pattern.permute.xlu0 0
        %353 = vperm.xlu0 %352, %v287
        %v354 = vpop.permute.xlu0 %353
        %357 = vset.pattern.permute.xlu0 0
        %358 = vperm.xlu0 %357, %v288
        %v359 = vpop.permute.xlu0 %358
        %362 = vset.pattern.permute.xlu0 0
        %363 = vperm.xlu0 %362, %v289
        %v364 = vpop.permute.xlu0 %363
        %367 = vset.pattern.permute.xlu0 0
        %368 = vperm.xlu0 %367, %v290
        %v369 = vpop.permute.xlu0 %368
        %372 = vset.pattern.permute.xlu0 0
        %373 = vperm.xlu0 %372, %v291
        %v374 = vpop.permute.xlu0 %373
        %vm376 = vcmask 523264
        %v378 = vsel %vm376, %v308, 0
        %v381 = vsel %vm376, %v309, 0
        %v384 = vsel %vm376, %v310, 0
        %v387 = vsel %vm376, %v311, 0
        %389 = vmatprep.subr.bf16.mxu0 %v329
        %390 = vmatpush1.bf16.msra.mxu0 %v328
        %391 = vmatprep.subr.bf16.mxu0 %v331
        %392 = vmatpush1.bf16.msra.mxu0 %v330
        %393 = vmatprep.subr.bf16.mxu0 %v333
        %394 = vmatpush1.bf16.msra.mxu0 %v332
        %395 = vmatprep.subr.bf16.mxu0 %v335
        %396 = vmatpush1.bf16.msra.mxu0 %v334
        %397 = vmatprep.subr.bf16.mxu0 0
        %398 = vmatpush1.bf16.msra.mxu0 0
        %399 = vmatprep.subr.bf16.mxu0 0
        %400 = vmatpush1.bf16.msra.mxu0 0
        %401 = vmatprep.subr.bf16.mxu0 0
        %402 = vmatpush1.bf16.msra.mxu0 0
        %403 = vmatprep.subr.bf16.mxu0 0
        %404 = vmatpush1.bf16.msra.mxu0 0
        %405 = vmatprep.subr.bf16.mxu0 0
        %406 = vmatpush1.bf16.msra.mxu0 0
        %407 = vmatprep.subr.bf16.mxu0 0
        %408 = vmatpush1.bf16.msra.mxu0 0
        %409 = vmatprep.subr.bf16.mxu0 0
        %410 = vmatpush1.bf16.msra.mxu0 0
        %411 = vmatprep.subr.bf16.mxu0 0
        %412 = vmatpush1.bf16.msra.mxu0 0
        %413 = vmatprep.subr.bf16.mxu0 0
        %414 = vmatpush1.bf16.msra.mxu0 0
        %415 = vmatprep.subr.bf16.mxu0 0
        %416 = vmatpush1.bf16.msra.mxu0 0
        %417 = vmatprep.subr.bf16.mxu0 0
        %418 = vmatpush1.bf16.msra.mxu0 0
        %419 = vmatprep.subr.bf16.mxu0 0
        %420 = vmatpush1.bf16.msra.mxu0 0
        %421 = vmatprep.mubr.bf16.mxu0 0
        %422 = vmatmul.mubr.bf16.gmra.mrb[0].mxu0 %v378
        %v423 = vpop.f32.mrb[0].mxu0
        %v424 = vadd.f32 %v339, %v423
        %v425 = vpop.f32.mrb[0].mxu0
        %v426 = vadd.f32 %v339, %v425
        %v427 = vpop.f32.mrb[0].mxu0
        %v428 = vadd.f32 %v344, %v427
        %v429 = vpop.f32.mrb[0].mxu0
        %v430 = vadd.f32 %v344, %v429
        %431 = vmatprep.mubr.bf16.mxu0 0
        %432 = vmatmul.mubr.bf16.gmra.mrb[0].mxu0 %v381
        %v433 = vpop.f32.mrb[0].mxu0
        %v434 = vadd.f32 %v349, %v433
        %v435 = vpop.f32.mrb[0].mxu0
        %v436 = vadd.f32 %v349, %v435
        %v437 = vpop.f32.mrb[0].mxu0
        %v438 = vadd.f32 %v354, %v437
        %v439 = vpop.f32.mrb[0].mxu0
        %v440 = vadd.f32 %v354, %v439
        %441 = vmatprep.mubr.bf16.mxu0 0
        %442 = vmatmul.mubr.bf16.gmra.mrb[0].mxu0 %v384
        %v443 = vpop.f32.mrb[0].mxu0
        %v444 = vadd.f32 %v359, %v443
        %v445 = vpop.f32.mrb[0].mxu0
        %v446 = vadd.f32 %v359, %v445
        %v447 = vpop.f32.mrb[0].mxu0
        %v448 = vadd.f32 %v364, %v447
        %v449 = vpop.f32.mrb[0].mxu0
        %v450 = vadd.f32 %v364, %v449
        %451 = vmatprep.mubr.bf16.mxu0 0
        %452 = vmatmul.mubr.bf16.gmra.mrb[0].mxu0 %v387
        %v453 = vpop.f32.mrb[0].mxu0
        %v454 = vadd.f32 %v369, %v453
        %v455 = vpop.f32.mrb[0].mxu0
        %v456 = vadd.f32 %v369, %v455
        %v457 = vpop.f32.mrb[0].mxu0
        %v458 = vadd.f32 %v374, %v457
        %v459 = vpop.f32.mrb[0].mxu0
        %v460 = vadd.f32 %v374, %v459
        %461 = vdwg.mxu0
        %v462 = vlaneseq
        %v463 = vshrl.u32 %v462, 7
        %v464 = vadd.s32 %v463, 8
        %vm465 = vcmp.eq.s32.totalorder %v463, 0
        %vm466 = vcmp.eq.s32.totalorder %v464, 0
        %v467 = vsel %vm465, 1.0, 0.0
        %v468 = vsel %vm466, 1.0, 0.0
        %v469 = vpack.c.bf16 %v468, %v467
        %v470 = vpack.c.bf16 %v428, %v424
        %v471 = vpack.c.bf16 %v430, %v426
        %v472 = vpack.c.bf16 %v438, %v434
        %v473 = vpack.c.bf16 %v440, %v436
        %v474 = vpack.c.bf16 %v448, %v444
        %v475 = vpack.c.bf16 %v450, %v446
        %v476 = vpack.c.bf16 %v458, %v454
        %v477 = vpack.c.bf16 %v460, %v456
        %v478 = vpack.c.bf16 %v293, %v292
        %v479 = vpack.c.bf16 %v295, %v294
        %v480 = vpack.c.bf16 %v297, %v296
        %v481 = vpack.c.bf16 %v299, %v298
        %482 = vxpose.xlu0.c.b16.start [1/8] %v478, 128
        %483 = vxpose.xlu0.c.b16.cont [2/8] %v479, 128
        %484 = vxpose.xlu0.c.b16.cont [3/8] %v480, 128
        %485 = vxpose.xlu0.c.b16.cont [4/8] %v481, 128
        %486 = vxpose.xlu0.c.b16.cont [5/8] 0, 128
        %487 = vxpose.xlu0.c.b16.cont [6/8] 0, 128
        %488 = vxpose.xlu0.c.b16.cont [7/8] 0, 128
        %489 = vxpose.xlu0.c.b16.end [8/8] 0, 128
        %v490 = vpop.trf.xlu0
        %v491 = vpop.trf.xlu0
        %v492 = vpop.trf.xlu0
        %v493 = vpop.trf.xlu0
        %v494 = vpop.trf.xlu0
        %v495 = vpop.trf.xlu0
        %v496 = vpop.trf.xlu0
        %v497 = vpop.trf.xlu0
        %vm498 = vcmask 654336
        %v500 = vsel %vm498, %v490, 0
        %v503 = vsel %vm498, %v491, 0
        %505 = vmatprep.subr.bf16.mxu0 %v471
        %506 = vmatpush1.bf16.msra.mxu0 %v470
        %507 = vmatprep.subr.bf16.mxu0 %v473
        %508 = vmatpush1.bf16.msra.mxu0 %v472
        %509 = vmatprep.subr.bf16.mxu0 %v475
        %510 = vmatpush1.bf16.msra.mxu0 %v474
        %511 = vmatprep.subr.bf16.mxu0 %v477
        %512 = vmatpush1.bf16.msra.mxu0 %v476
        %513 = vmatprep.subr.bf16.mxu0 %v469
        %514 = vmatpush1.bf16.msra.mxu0 %v469
        %515 = vmatprep.subr.bf16.mxu0 0
        %516 = vmatpush1.bf16.msra.mxu0 0
        %517 = vmatprep.subr.bf16.mxu0 0
        %518 = vmatpush1.bf16.msra.mxu0 0
        %519 = vmatprep.subr.bf16.mxu0 0
        %520 = vmatpush1.bf16.msra.mxu0 0
        %521 = vmatprep.subr.bf16.mxu0 0
        %522 = vmatpush1.bf16.msra.mxu0 0
        %523 = vmatprep.subr.bf16.mxu0 0
        %524 = vmatpush1.bf16.msra.mxu0 0
        %525 = vmatprep.subr.bf16.mxu0 0
        %526 = vmatpush1.bf16.msra.mxu0 0
        %527 = vmatprep.subr.bf16.mxu0 0
        %528 = vmatpush1.bf16.msra.mxu0 0
        %529 = vmatprep.subr.bf16.mxu0 0
        %530 = vmatpush1.bf16.msra.mxu0 0
        %531 = vmatprep.subr.bf16.mxu0 0
        %532 = vmatpush1.bf16.msra.mxu0 0
        %533 = vmatprep.subr.bf16.mxu0 0
        %534 = vmatpush1.bf16.msra.mxu0 0
        %535 = vmatprep.subr.bf16.mxu0 0
        %536 = vmatpush1.bf16.msra.mxu0 0
        %537 = vmatprep.mubr.bf16.mxu0 0
        %538 = vmatmul.mubr.bf16.gmra.mrb[0].mxu0 %v500
        %v539 = vpop.f32.mrb[0].mxu0
        %v540 = vadd.f32 0.0, %v539
        %v541 = vpop.f32.mrb[0].mxu0
        %v542 = vadd.f32 0.0, %v541
        %v543 = vpop.f32.mrb[0].mxu0
        %v544 = vadd.f32 0.0, %v543
        %v545 = vpop.f32.mrb[0].mxu0
        %v546 = vadd.f32 0.0, %v545
        %547 = vmatprep.mubr.bf16.mxu0 0
        %548 = vmatmul.mubr.bf16.gmra.mrb[0].mxu0 %v503
        %v549 = vpop.f32.mrb[0].mxu0
        %v550 = vadd.f32 0.0, %v549
        %v551 = vpop.f32.mrb[0].mxu0
        %v552 = vadd.f32 0.0, %v551
        %v553 = vpop.f32.mrb[0].mxu0
        %v554 = vadd.f32 0.0, %v553
        %v555 = vpop.f32.mrb[0].mxu0
        %v556 = vadd.f32 0.0, %v555
        %557 = vdwg.mxu0
        %v558 = vmax.f32 %v540, %v550
        %v559 = vmax.f32 %v544, %v554
        %v560 = vmax.f32 %v558, %v559
        %v561 = vrot.slane %v560, 4
        %v562 = vmax.f32 %v560, %v561
        %v563 = vrot.slane %v562, 2
        %v564 = vmax.f32 %v562, %v563
        %v565 = vrot.slane %v564, 1
        %v566 = vmax.f32 %v564, %v565
        %v567 = vmax.f32 %v542, %v552
        %v568 = vmax.f32 %v546, %v556
        %v569 = vmax.f32 %v567, %v568
        %v570 = vrot.slane %v569, 4
        %v571 = vmax.f32 %v569, %v570
        %v572 = vrot.slane %v571, 2
        %v573 = vmax.f32 %v571, %v572
        %v574 = vrot.slane %v573, 1
        %v575 = vmax.f32 %v573, %v574
        %v576 = vsub.f32 %v540, %v566
        %v577 = vsub.f32 %v542, %v575
        %v578 = vsub.f32 %v544, %v566
        %v579 = vsub.f32 %v546, %v575
        %v580 = vsub.f32 %v550, %v566
        %v581 = vsub.f32 %v552, %v575
        %v582 = vsub.f32 %v554, %v566
        %v583 = vsub.f32 %v556, %v575
        %v584 = vmul.f32 %v576, 1.442695
        %v585 = vpow.pop %v584
        %v586 = vmul.f32 %v577, 1.442695
        %v587 = vpow.pop %v586
        %v588 = vmul.f32 %v578, 1.442695
        %v589 = vpow.pop %v588
        %v590 = vmul.f32 %v579, 1.442695
        %v591 = vpow.pop %v590
        %v592 = vmul.f32 %v580, 1.442695
        %v593 = vpow.pop %v592
        %v594 = vmul.f32 %v581, 1.442695
        %v595 = vpow.pop %v594
        %v596 = vmul.f32 %v582, 1.442695
        %v597 = vpow.pop %v596
        %v598 = vmul.f32 %v583, 1.442695
        %v599 = vpow.pop %v598
        %v600 = vadd.f32 %v585, %v589
        %v601 = vadd.f32 %v600, %v593
        %v602 = vadd.f32 %v601, %v597
        %v603 = vrot.slane %v602, 4
        %v604 = vadd.f32 %v602, %v603
        %v605 = vrot.slane %v604, 2
        %v606 = vadd.f32 %v604, %v605
        %v607 = vrot.slane %v606, 1
        %v608 = vadd.f32 %v606, %v607
        %v609 = vadd.f32 %v587, %v591
        %v610 = vadd.f32 %v609, %v595
        %v611 = vadd.f32 %v610, %v599
        %v612 = vrot.slane %v611, 4
        %v613 = vadd.f32 %v611, %v612
        %v614 = vrot.slane %v613, 2
        %v615 = vadd.f32 %v613, %v614
        %v616 = vrot.slane %v615, 1
        %v617 = vadd.f32 %v615, %v616
        %v618 = vrcp.pop %v608
        %v619 = vrcp.pop %v617
        %v620 = vmul.f32 %v585, %v618
        %v621 = vmul.f32 %v587, %v619
        %v622 = vmul.f32 %v589, %v618
        %v623 = vmul.f32 %v591, %v619
        %v624 = vmul.f32 %v593, %v618
        %v625 = vmul.f32 %v595, %v619
        %v626 = vmul.f32 %v597, %v618
        %v627 = vmul.f32 %v599, %v619
        %v628 = vpack.c.bf16 %v622, %v620
        %v629 = vpack.c.bf16 %v623, %v621
        %v630 = vpack.c.bf16 %v626, %v624
        %v631 = vpack.c.bf16 %v627, %v625
        %632 = vmatprep.subr.bf16.mxu0 %v629
        %633 = vmatpush1.bf16.xpose.msra.mxu0 %v628
        %634 = vmatprep.subr.bf16.mxu0 %v631
        %635 = vmatpush1.bf16.xpose.msra.mxu0 %v630
        %636 = vmatprep.subr.bf16.mxu0 0
        %637 = vmatpush1.bf16.xpose.msra.mxu0 0
        %638 = vmatprep.subr.bf16.mxu0 0
        %639 = vmatpush1.bf16.xpose.msra.mxu0 0
        %640 = vmatprep.subr.bf16.mxu0 0
        %641 = vmatpush1.bf16.xpose.msra.mxu0 0
        %642 = vmatprep.subr.bf16.mxu0 0
        %643 = vmatpush1.bf16.xpose.msra.mxu0 0
        %644 = vmatprep.subr.bf16.mxu0 0
        %645 = vmatpush1.bf16.xpose.msra.mxu0 0
        %646 = vmatprep.subr.bf16.mxu0 0
        %647 = vmatpush1.bf16.xpose.msra.mxu0 0
        %648 = vmatprep.subr.bf16.mxu0 0
        %649 = vmatpush1.bf16.xpose.msra.mxu0 0
        %650 = vmatprep.subr.bf16.mxu0 0
        %651 = vmatpush1.bf16.xpose.msra.mxu0 0
        %652 = vmatprep.subr.bf16.mxu0 0
        %653 = vmatpush1.bf16.xpose.msra.mxu0 0
        %654 = vmatprep.subr.bf16.mxu0 0
        %655 = vmatpush1.bf16.xpose.msra.mxu0 0
        %656 = vmatprep.subr.bf16.mxu0 0
        %657 = vmatpush1.bf16.xpose.msra.mxu0 0
        %658 = vmatprep.subr.bf16.mxu0 0
        %659 = vmatpush1.bf16.xpose.msra.mxu0 0
        %660 = vmatprep.subr.bf16.mxu0 0
        %661 = vmatpush1.bf16.xpose.msra.mxu0 0
        %662 = vmatprep.subr.bf16.mxu0 0
        %663 = vmatpush1.bf16.xpose.msra.mxu0 0
        %664 = vmatprep.mubr.bf16.mxu0 %v471
        %665 = vmatmul.mubr.bf16.gmra.mrb[0].mxu0 %v470
        %v666 = vpop.f32.mrb[0].mxu0
        %v667 = vadd.f32 0.0, %v666
        %v668 = vpop.f32.mrb[0].mxu0
        %v669 = vpop.f32.mrb[0].mxu0
        %v670 = vadd.f32 0.0, %v669
        %v671 = vpop.f32.mrb[0].mxu0
        %672 = vmatprep.mubr.bf16.mxu0 %v473
        %673 = vmatmul.mubr.bf16.gmra.mrb[0].mxu0 %v472
        %v674 = vpop.f32.mrb[0].mxu0
        %v675 = vadd.f32 0.0, %v674
        %v676 = vpop.f32.mrb[0].mxu0
        %v677 = vpop.f32.mrb[0].mxu0
        %v678 = vadd.f32 0.0, %v677
        %v679 = vpop.f32.mrb[0].mxu0
        %680 = vmatprep.mubr.bf16.mxu0 %v475
        %681 = vmatmul.mubr.bf16.gmra.mrb[0].mxu0 %v474
        %v682 = vpop.f32.mrb[0].mxu0
        %v683 = vadd.f32 0.0, %v682
        %v684 = vpop.f32.mrb[0].mxu0
        %v685 = vpop.f32.mrb[0].mxu0
        %v686 = vadd.f32 0.0, %v685
        %v687 = vpop.f32.mrb[0].mxu0
        %688 = vmatprep.mubr.bf16.mxu0 %v477
        %689 = vmatmul.mubr.bf16.gmra.mrb[0].mxu0 %v476
        %v690 = vpop.f32.mrb[0].mxu0
        %v691 = vadd.f32 0.0, %v690
        %v692 = vpop.f32.mrb[0].mxu0
        %v693 = vpop.f32.mrb[0].mxu0
        %v694 = vadd.f32 0.0, %v693
        %v695 = vpop.f32.mrb[0].mxu0
        %696 = vmatprep.mubr.bf16.mxu0 %v469
        %697 = vmatmul.mubr.bf16.gmra.mrb[0].mxu0 %v469
        %v698 = vpop.f32.mrb[0].mxu0
        %v699 = vadd.f32 0.0, %v698
        %v700 = vpop.f32.mrb[0].mxu0
        %v701 = vpop.f32.mrb[0].mxu0
        %v702 = vpop.f32.mrb[0].mxu0
        %703 = vdwg.mxu0
        %v704 = vadd.f32 %v699, 1e-06
        %v705 = vrcp.pop %v704
        %v706 = vlaneseq
        %v707 = vshrl.u32 %v706, 7
        %v708 = vsub.s32 0, %v707
        %v709 = vrot.slane %v705, %v708
        %v710 = vmul.f32 %v667, %v709
        %v711 = vmul.f32 %v670, %v709
        %v712 = vmul.f32 %v675, %v709
        %v713 = vmul.f32 %v678, %v709
        %v714 = vmul.f32 %v683, %v709
        %v715 = vmul.f32 %v686, %v709
        %v716 = vmul.f32 %v691, %v709
        %v717 = vmul.f32 %v694, %v709
        %v718 = vmul.f32 %v710, %v710
        %v719 = vmul.f32 %v711, %v711
        %v720 = vmul.f32 %v712, %v712
        %v721 = vmul.f32 %v713, %v713
        %v722 = vmul.f32 %v714, %v714
        %v723 = vmul.f32 %v715, %v715
        %v724 = vmul.f32 %v716, %v716
        %v725 = vmul.f32 %v717, %v717
        %vm726 = vcmask 261120
        %v727 = vsel %vm726, %v718, 0.0
        %v728 = vsel %vm726, %v719, 0.0
        %v729 = vadd.f32 %v727, %v728
        %v730 = vsel %vm726, %v720, 0.0
        %v731 = vadd.f32 %v729, %v730
        %v732 = vsel %vm726, %v721, 0.0
        %v733 = vadd.f32 %v731, %v732
        %v734 = vsel %vm726, %v722, 0.0
        %v735 = vadd.f32 %v733, %v734
        %v736 = vsel %vm726, %v723, 0.0
        %v737 = vadd.f32 %v735, %v736
        %v738 = vsel %vm726, %v724, 0.0
        %v739 = vadd.f32 %v737, %v738
        %v740 = vsel %vm726, %v725, 0.0
        %v741 = vadd.f32 %v739, %v740
        %v742 = vrot.slane %v741, 4
        %v743 = vadd.f32 %v741, %v742
        %v744 = vrot.slane %v743, 2
        %v745 = vadd.f32 %v743, %v744
        %v746 = vrot.slane %v745, 1
        %v747 = vadd.f32 %v745, %v746
        %v748 = vrsqrt.pop %v747
        %v749 = vmul.f32 %v747, %v748
        %vm750 = vcmp.eq.f32.partialorder %v747, inf
        %v751 = vsel %vm750, %v747, %v749
        %vm752 = vcmp.eq.f32.partialorder %v747, 0.0
        %v753 = vand.u32 %v747, 2147483648
        %v754 = vsel %vm752, %v753, %v751
        %v755 = vadd.f32 %v754, 1e-06
        %v756 = vrcp.pop %v755
        %v757 = vmul.f32 %v710, %v756
        %v758 = vmul.f32 %v711, %v756
        %v759 = vmul.f32 %v712, %v756
        %v760 = vmul.f32 %v713, %v756
        %v761 = vmul.f32 %v714, %v756
        %v762 = vmul.f32 %v715, %v756
        %v763 = vmul.f32 %v716, %v756
        %v764 = vmul.f32 %v717, %v756
        %v765 = vpack.c.bf16 %v758, %v757
        %v766 = vpack.c.bf16 %v760, %v759
        %v767 = vpack.c.bf16 %v762, %v761
        %v768 = vpack.c.bf16 %v764, %v763
        %769 = vxpose.xlu0.c.b16.start [1/8] %v765, 128
        %770 = vxpose.xlu0.c.b16.cont [2/8] %v766, 128
        %771 = vxpose.xlu0.c.b16.cont [3/8] %v767, 128
        %772 = vxpose.xlu0.c.b16.cont [4/8] %v768, 128
        %773 = vxpose.xlu0.c.b16.cont [5/8] 0, 128
        %774 = vxpose.xlu0.c.b16.cont [6/8] 0, 128
        %775 = vxpose.xlu0.c.b16.cont [7/8] 0, 128
        %776 = vxpose.xlu0.c.b16.end [8/8] 0, 128
        %v777 = vpop.trf.xlu0
        %v778 = vpop.trf.xlu0
        %v779 = vpop.trf.xlu0
        %v780 = vpop.trf.xlu0
        %v781 = vpop.trf.xlu0
        %v782 = vpop.trf.xlu0
        %v783 = vpop.trf.xlu0
        %v784 = vpop.trf.xlu0
        %v786 = vsel %vm498, %v777, 0
        %v789 = vsel %vm498, %v778, 0
        %791 = vmatprep.subr.bf16.mxu0 %v471
        %792 = vmatpush1.bf16.msra.mxu0 %v470
        %793 = vmatprep.subr.bf16.mxu0 %v473
        %794 = vmatpush1.bf16.msra.mxu0 %v472
        %795 = vmatprep.subr.bf16.mxu0 %v475
        %796 = vmatpush1.bf16.msra.mxu0 %v474
        %797 = vmatprep.subr.bf16.mxu0 %v477
        %798 = vmatpush1.bf16.msra.mxu0 %v476
        %799 = vmatprep.subr.bf16.mxu0 %v469
        %800 = vmatpush1.bf16.msra.mxu0 %v469
        %801 = vmatprep.subr.bf16.mxu0 0
        %802 = vmatpush1.bf16.msra.mxu0 0
        %803 = vmatprep.subr.bf16.mxu0 0
        %804 = vmatpush1.bf16.msra.mxu0 0
        %805 = vmatprep.subr.bf16.mxu0 0
        %806 = vmatpush1.bf16.msra.mxu0 0
        %807 = vmatprep.subr.bf16.mxu0 0
        %808 = vmatpush1.bf16.msra.mxu0 0
        %809 = vmatprep.subr.bf16.mxu0 0
        %810 = vmatpush1.bf16.msra.mxu0 0
        %811 = vmatprep.subr.bf16.mxu0 0
        %812 = vmatpush1.bf16.msra.mxu0 0
        %813 = vmatprep.subr.bf16.mxu0 0
        %814 = vmatpush1.bf16.msra.mxu0 0
        %815 = vmatprep.subr.bf16.mxu0 0
        %816 = vmatpush1.bf16.msra.mxu0 0
        %817 = vmatprep.subr.bf16.mxu0 0
        %818 = vmatpush1.bf16.msra.mxu0 0
        %819 = vmatprep.subr.bf16.mxu0 0
        %820 = vmatpush1.bf16.msra.mxu0 0
        %821 = vmatprep.subr.bf16.mxu0 0
        %822 = vmatpush1.bf16.msra.mxu0 0
        %823 = vmatprep.mubr.bf16.mxu0 0
        %824 = vmatmul.mubr.bf16.gmra.mrb[0].mxu0 %v786
        %v825 = vpop.f32.mrb[0].mxu0
        %v826 = vadd.f32 0.0, %v825
        %v827 = vpop.f32.mrb[0].mxu0
        %v828 = vadd.f32 0.0, %v827
        %v829 = vpop.f32.mrb[0].mxu0
        %v830 = vadd.f32 0.0, %v829
        %v831 = vpop.f32.mrb[0].mxu0
        %v832 = vadd.f32 0.0, %v831
        %833 = vmatprep.mubr.bf16.mxu0 0
        %834 = vmatmul.mubr.bf16.gmra.mrb[0].mxu0 %v789
        %v835 = vpop.f32.mrb[0].mxu0
        %v836 = vadd.f32 0.0, %v835
        %v837 = vpop.f32.mrb[0].mxu0
        %v838 = vadd.f32 0.0, %v837
        %v839 = vpop.f32.mrb[0].mxu0
        %v840 = vadd.f32 0.0, %v839
        %v841 = vpop.f32.mrb[0].mxu0
        %v842 = vadd.f32 0.0, %v841
        %843 = vdwg.mxu0
        %v844 = vmax.f32 %v826, %v836
        %v845 = vmax.f32 %v830, %v840
        %v846 = vmax.f32 %v844, %v845
        %v847 = vrot.slane %v846, 4
        %v848 = vmax.f32 %v846, %v847
        %v849 = vrot.slane %v848, 2
        %v850 = vmax.f32 %v848, %v849
        %v851 = vrot.slane %v850, 1
        %v852 = vmax.f32 %v850, %v851
        %v853 = vmax.f32 %v828, %v838
        %v854 = vmax.f32 %v832, %v842
        %v855 = vmax.f32 %v853, %v854
        %v856 = vrot.slane %v855, 4
        %v857 = vmax.f32 %v855, %v856
        %v858 = vrot.slane %v857, 2
        %v859 = vmax.f32 %v857, %v858
        %v860 = vrot.slane %v859, 1
        %v861 = vmax.f32 %v859, %v860
        %v862 = vsub.f32 %v826, %v852
        %v863 = vsub.f32 %v828, %v861
        %v864 = vsub.f32 %v830, %v852
        %v865 = vsub.f32 %v832, %v861
        %v866 = vsub.f32 %v836, %v852
        %v867 = vsub.f32 %v838, %v861
        %v868 = vsub.f32 %v840, %v852
        %v869 = vsub.f32 %v842, %v861
        %v870 = vmul.f32 %v862, 1.442695
        %v871 = vpow.pop %v870
        %v872 = vmul.f32 %v863, 1.442695
        %v873 = vpow.pop %v872
        %v874 = vmul.f32 %v864, 1.442695
        %v875 = vpow.pop %v874
        %v876 = vmul.f32 %v865, 1.442695
        %v877 = vpow.pop %v876
        %v878 = vmul.f32 %v866, 1.442695
        %v879 = vpow.pop %v878
        %v880 = vmul.f32 %v867, 1.442695
        %v881 = vpow.pop %v880
        %v882 = vmul.f32 %v868, 1.442695
        %v883 = vpow.pop %v882
        %v884 = vmul.f32 %v869, 1.442695
        %v885 = vpow.pop %v884
        %v886 = vadd.f32 %v871, %v875
        %v887 = vadd.f32 %v886, %v879
        %v888 = vadd.f32 %v887, %v883
        %v889 = vrot.slane %v888, 4
        %v890 = vadd.f32 %v888, %v889
        %v891 = vrot.slane %v890, 2
        %v892 = vadd.f32 %v890, %v891
        %v893 = vrot.slane %v892, 1
        %v894 = vadd.f32 %v892, %v893
        %v895 = vadd.f32 %v873, %v877
        %v896 = vadd.f32 %v895, %v881
        %v897 = vadd.f32 %v896, %v885
        %v898 = vrot.slane %v897, 4
        %v899 = vadd.f32 %v897, %v898
        %v900 = vrot.slane %v899, 2
        %v901 = vadd.f32 %v899, %v900
        %v902 = vrot.slane %v901, 1
        %v903 = vadd.f32 %v901, %v902
        %v904 = vrcp.pop %v894
        %v905 = vrcp.pop %v903
        %v906 = vmul.f32 %v871, %v904
        %v907 = vmul.f32 %v873, %v905
        %v908 = vmul.f32 %v875, %v904
        %v909 = vmul.f32 %v877, %v905
        %v910 = vmul.f32 %v879, %v904
        %v911 = vmul.f32 %v881, %v905
        %v912 = vmul.f32 %v883, %v904
        %v913 = vmul.f32 %v885, %v905
        %v914 = vpack.c.bf16 %v908, %v906
        %v915 = vpack.c.bf16 %v909, %v907
        %v916 = vpack.c.bf16 %v912, %v910
        %v917 = vpack.c.bf16 %v913, %v911
        %918 = vmatprep.subr.bf16.mxu0 %v915
        %919 = vmatpush1.bf16.xpose.msra.mxu0 %v914
        %920 = vmatprep.subr.bf16.mxu0 %v917
        %921 = vmatpush1.bf16.xpose.msra.mxu0 %v916
        %922 = vmatprep.subr.bf16.mxu0 0
        %923 = vmatpush1.bf16.xpose.msra.mxu0 0
        %924 = vmatprep.subr.bf16.mxu0 0
        %925 = vmatpush1.bf16.xpose.msra.mxu0 0
        %926 = vmatprep.subr.bf16.mxu0 0
        %927 = vmatpush1.bf16.xpose.msra.mxu0 0
        %928 = vmatprep.subr.bf16.mxu0 0
        %929 = vmatpush1.bf16.xpose.msra.mxu0 0
        %930 = vmatprep.subr.bf16.mxu0 0
        %931 = vmatpush1.bf16.xpose.msra.mxu0 0
        %932 = vmatprep.subr.bf16.mxu0 0
        %933 = vmatpush1.bf16.xpose.msra.mxu0 0
        %934 = vmatprep.subr.bf16.mxu0 0
        %935 = vmatpush1.bf16.xpose.msra.mxu0 0
        %936 = vmatprep.subr.bf16.mxu0 0
        %937 = vmatpush1.bf16.xpose.msra.mxu0 0
        %938 = vmatprep.subr.bf16.mxu0 0
        %939 = vmatpush1.bf16.xpose.msra.mxu0 0
        %940 = vmatprep.subr.bf16.mxu0 0
        %941 = vmatpush1.bf16.xpose.msra.mxu0 0
        %942 = vmatprep.subr.bf16.mxu0 0
        %943 = vmatpush1.bf16.xpose.msra.mxu0 0
        %944 = vmatprep.subr.bf16.mxu0 0
        %945 = vmatpush1.bf16.xpose.msra.mxu0 0
        %946 = vmatprep.subr.bf16.mxu0 0
        %947 = vmatpush1.bf16.xpose.msra.mxu0 0
        %948 = vmatprep.subr.bf16.mxu0 0
        %949 = vmatpush1.bf16.xpose.msra.mxu0 0
        %950 = vmatprep.mubr.bf16.mxu0 %v471
        %951 = vmatmul.mubr.bf16.gmra.mrb[0].mxu0 %v470
        %v952 = vpop.f32.mrb[0].mxu0
        %v953 = vadd.f32 0.0, %v952
        %v954 = vpop.f32.mrb[0].mxu0
        %v955 = vpop.f32.mrb[0].mxu0
        %v956 = vadd.f32 0.0, %v955
        %v957 = vpop.f32.mrb[0].mxu0
        %958 = vmatprep.mubr.bf16.mxu0 %v473
        %959 = vmatmul.mubr.bf16.gmra.mrb[0].mxu0 %v472
        %v960 = vpop.f32.mrb[0].mxu0
        %v961 = vadd.f32 0.0, %v960
        %v962 = vpop.f32.mrb[0].mxu0
        %v963 = vpop.f32.mrb[0].mxu0
        %v964 = vadd.f32 0.0, %v963
        %v965 = vpop.f32.mrb[0].mxu0
        %966 = vmatprep.mubr.bf16.mxu0 %v475
        %967 = vmatmul.mubr.bf16.gmra.mrb[0].mxu0 %v474
        %v968 = vpop.f32.mrb[0].mxu0
        %v969 = vadd.f32 0.0, %v968
        %v970 = vpop.f32.mrb[0].mxu0
        %v971 = vpop.f32.mrb[0].mxu0
        %v972 = vadd.f32 0.0, %v971
        %v973 = vpop.f32.mrb[0].mxu0
        %974 = vmatprep.mubr.bf16.mxu0 %v477
        %975 = vmatmul.mubr.bf16.gmra.mrb[0].mxu0 %v476
        %v976 = vpop.f32.mrb[0].mxu0
        %v977 = vadd.f32 0.0, %v976
        %v978 = vpop.f32.mrb[0].mxu0
        %v979 = vpop.f32.mrb[0].mxu0
        %v980 = vadd.f32 0.0, %v979
        %v981 = vpop.f32.mrb[0].mxu0
        %982 = vmatprep.mubr.bf16.mxu0 %v469
        %983 = vmatmul.mubr.bf16.gmra.mrb[0].mxu0 %v469
        %v984 = vpop.f32.mrb[0].mxu0
        %v985 = vadd.f32 0.0, %v984
        %v986 = vpop.f32.mrb[0].mxu0
        %v987 = vpop.f32.mrb[0].mxu0
        %v988 = vpop.f32.mrb[0].mxu0
        %989 = vdwg.mxu0
        %v990 = vadd.f32 %v985, 1e-06
        %v991 = vrcp.pop %v990
        %v992 = vlaneseq
        %v993 = vshrl.u32 %v992, 7
        %v994 = vsub.s32 0, %v993
        %v995 = vrot.slane %v991, %v994
        %v996 = vmul.f32 %v953, %v995
        %v997 = vmul.f32 %v956, %v995
        %v998 = vmul.f32 %v961, %v995
        %v999 = vmul.f32 %v964, %v995
        %v1000 = vmul.f32 %v969, %v995
        %v1001 = vmul.f32 %v972, %v995
        %v1002 = vmul.f32 %v977, %v995
        %v1003 = vmul.f32 %v980, %v995
        %v1004 = vmul.f32 %v996, %v996
        %v1005 = vmul.f32 %v997, %v997
        %v1006 = vmul.f32 %v998, %v998
        %v1007 = vmul.f32 %v999, %v999
        %v1008 = vmul.f32 %v1000, %v1000
        %v1009 = vmul.f32 %v1001, %v1001
        %v1010 = vmul.f32 %v1002, %v1002
        %v1011 = vmul.f32 %v1003, %v1003
        %v1012 = vsel %vm726, %v1004, 0.0
        %v1013 = vsel %vm726, %v1005, 0.0
        %v1014 = vadd.f32 %v1012, %v1013
        %v1015 = vsel %vm726, %v1006, 0.0
        %v1016 = vadd.f32 %v1014, %v1015
        %v1017 = vsel %vm726, %v1007, 0.0
        %v1018 = vadd.f32 %v1016, %v1017
        %v1019 = vsel %vm726, %v1008, 0.0
        %v1020 = vadd.f32 %v1018, %v1019
        %v1021 = vsel %vm726, %v1009, 0.0
        %v1022 = vadd.f32 %v1020, %v1021
        %v1023 = vsel %vm726, %v1010, 0.0
        %v1024 = vadd.f32 %v1022, %v1023
        %v1025 = vsel %vm726, %v1011, 0.0
        %v1026 = vadd.f32 %v1024, %v1025
        %v1027 = vrot.slane %v1026, 4
        %v1028 = vadd.f32 %v1026, %v1027
        %v1029 = vrot.slane %v1028, 2
        %v1030 = vadd.f32 %v1028, %v1029
        %v1031 = vrot.slane %v1030, 1
        %v1032 = vadd.f32 %v1030, %v1031
        %v1033 = vrsqrt.pop %v1032
        %v1034 = vmul.f32 %v1032, %v1033
        %vm1035 = vcmp.eq.f32.partialorder %v1032, inf
        %v1036 = vsel %vm1035, %v1032, %v1034
        %vm1037 = vcmp.eq.f32.partialorder %v1032, 0.0
        %v1038 = vand.u32 %v1032, 2147483648
        %v1039 = vsel %vm1037, %v1038, %v1036
        %v1040 = vadd.f32 %v1039, 1e-06
        %v1041 = vrcp.pop %v1040
        %v1042 = vmul.f32 %v996, %v1041
        %v1043 = vmul.f32 %v997, %v1041
        %v1044 = vmul.f32 %v998, %v1041
        %v1045 = vmul.f32 %v999, %v1041
        %v1046 = vmul.f32 %v1000, %v1041
        %v1047 = vmul.f32 %v1001, %v1041
        %v1048 = vmul.f32 %v1002, %v1041
        %v1049 = vmul.f32 %v1003, %v1041
        %v1050 = vpack.c.bf16 %v1043, %v1042
        %v1051 = vpack.c.bf16 %v1045, %v1044
        %v1052 = vpack.c.bf16 %v1047, %v1046
        %v1053 = vpack.c.bf16 %v1049, %v1048
        %1054 = vxpose.xlu0.c.b16.start [1/8] %v1050, 128
        %1055 = vxpose.xlu0.c.b16.cont [2/8] %v1051, 128
        %1056 = vxpose.xlu0.c.b16.cont [3/8] %v1052, 128
        %1057 = vxpose.xlu0.c.b16.cont [4/8] %v1053, 128
        %1058 = vxpose.xlu0.c.b16.cont [5/8] 0, 128
        %1059 = vxpose.xlu0.c.b16.cont [6/8] 0, 128
        %1060 = vxpose.xlu0.c.b16.cont [7/8] 0, 128
        %1061 = vxpose.xlu0.c.b16.end [8/8] 0, 128
        %v1062 = vpop.trf.xlu0
        %v1063 = vpop.trf.xlu0
        %v1064 = vpop.trf.xlu0
        %v1065 = vpop.trf.xlu0
        %v1066 = vpop.trf.xlu0
        %v1067 = vpop.trf.xlu0
        %v1068 = vpop.trf.xlu0
        %v1069 = vpop.trf.xlu0
        %v1071 = vsel %vm498, %v1062, 0
        %v1074 = vsel %vm498, %v1063, 0
        %1076 = vmatprep.subr.bf16.mxu0 %v471
        %1077 = vmatpush1.bf16.msra.mxu0 %v470
        %1078 = vmatprep.subr.bf16.mxu0 %v473
        %1079 = vmatpush1.bf16.msra.mxu0 %v472
        %1080 = vmatprep.subr.bf16.mxu0 %v475
        %1081 = vmatpush1.bf16.msra.mxu0 %v474
        %1082 = vmatprep.subr.bf16.mxu0 %v477
        %1083 = vmatpush1.bf16.msra.mxu0 %v476
        %1084 = vmatprep.subr.bf16.mxu0 %v469
        %1085 = vmatpush1.bf16.msra.mxu0 %v469
        %1086 = vmatprep.subr.bf16.mxu0 0
        %1087 = vmatpush1.bf16.msra.mxu0 0
        %1088 = vmatprep.subr.bf16.mxu0 0
        %1089 = vmatpush1.bf16.msra.mxu0 0
        %1090 = vmatprep.subr.bf16.mxu0 0
        %1091 = vmatpush1.bf16.msra.mxu0 0
        %1092 = vmatprep.subr.bf16.mxu0 0
        %1093 = vmatpush1.bf16.msra.mxu0 0
        %1094 = vmatprep.subr.bf16.mxu0 0
        %1095 = vmatpush1.bf16.msra.mxu0 0
        %1096 = vmatprep.subr.bf16.mxu0 0
        %1097 = vmatpush1.bf16.msra.mxu0 0
        %1098 = vmatprep.subr.bf16.mxu0 0
        %1099 = vmatpush1.bf16.msra.mxu0 0
        %1100 = vmatprep.subr.bf16.mxu0 0
        %1101 = vmatpush1.bf16.msra.mxu0 0
        %1102 = vmatprep.subr.bf16.mxu0 0
        %1103 = vmatpush1.bf16.msra.mxu0 0
        %1104 = vmatprep.subr.bf16.mxu0 0
        %1105 = vmatpush1.bf16.msra.mxu0 0
        %1106 = vmatprep.subr.bf16.mxu0 0
        %1107 = vmatpush1.bf16.msra.mxu0 0
        %1108 = vmatprep.mubr.bf16.mxu0 0
        %1109 = vmatmul.mubr.bf16.gmra.mrb[0].mxu0 %v1071
        %v1110 = vpop.f32.mrb[0].mxu0
        %v1111 = vadd.f32 0.0, %v1110
        %v1112 = vpop.f32.mrb[0].mxu0
        %v1113 = vadd.f32 0.0, %v1112
        %v1114 = vpop.f32.mrb[0].mxu0
        %v1115 = vadd.f32 0.0, %v1114
        %v1116 = vpop.f32.mrb[0].mxu0
        %v1117 = vadd.f32 0.0, %v1116
        %1118 = vmatprep.mubr.bf16.mxu0 0
        %1119 = vmatmul.mubr.bf16.gmra.mrb[0].mxu0 %v1074
        %v1120 = vpop.f32.mrb[0].mxu0
        %v1121 = vadd.f32 0.0, %v1120
        %v1122 = vpop.f32.mrb[0].mxu0
        %v1123 = vadd.f32 0.0, %v1122
        %v1124 = vpop.f32.mrb[0].mxu0
        %v1125 = vadd.f32 0.0, %v1124
        %v1126 = vpop.f32.mrb[0].mxu0
        %v1127 = vadd.f32 0.0, %v1126
        %1128 = vdwg.mxu0
        %v1129 = vmax.f32 %v1111, %v1121
        %v1130 = vmax.f32 %v1115, %v1125
        %v1131 = vmax.f32 %v1129, %v1130
        %v1132 = vrot.slane %v1131, 4
        %v1133 = vmax.f32 %v1131, %v1132
        %v1134 = vrot.slane %v1133, 2
        %v1135 = vmax.f32 %v1133, %v1134
        %v1136 = vrot.slane %v1135, 1
        %v1137 = vmax.f32 %v1135, %v1136
        %v1138 = vmax.f32 %v1113, %v1123
        %v1139 = vmax.f32 %v1117, %v1127
        %v1140 = vmax.f32 %v1138, %v1139
        %v1141 = vrot.slane %v1140, 4
        %v1142 = vmax.f32 %v1140, %v1141
        %v1143 = vrot.slane %v1142, 2
        %v1144 = vmax.f32 %v1142, %v1143
        %v1145 = vrot.slane %v1144, 1
        %v1146 = vmax.f32 %v1144, %v1145
        %v1147 = vsub.f32 %v1111, %v1137
        %v1148 = vsub.f32 %v1113, %v1146
        %v1149 = vsub.f32 %v1115, %v1137
        %v1150 = vsub.f32 %v1117, %v1146
        %v1151 = vsub.f32 %v1121, %v1137
        %v1152 = vsub.f32 %v1123, %v1146
        %v1153 = vsub.f32 %v1125, %v1137
        %v1154 = vsub.f32 %v1127, %v1146
        %v1155 = vmul.f32 %v1147, 1.442695
        %v1156 = vpow.pop %v1155
        %v1157 = vmul.f32 %v1148, 1.442695
        %v1158 = vpow.pop %v1157
        %v1159 = vmul.f32 %v1149, 1.442695
        %v1160 = vpow.pop %v1159
        %v1161 = vmul.f32 %v1150, 1.442695
        %v1162 = vpow.pop %v1161
        %v1163 = vmul.f32 %v1151, 1.442695
        %v1164 = vpow.pop %v1163
        %v1165 = vmul.f32 %v1152, 1.442695
        %v1166 = vpow.pop %v1165
        %v1167 = vmul.f32 %v1153, 1.442695
        %v1168 = vpow.pop %v1167
        %v1169 = vmul.f32 %v1154, 1.442695
        %v1170 = vpow.pop %v1169
        %v1171 = vadd.f32 %v1156, %v1160
        %v1172 = vadd.f32 %v1171, %v1164
        %v1173 = vadd.f32 %v1172, %v1168
        %v1174 = vrot.slane %v1173, 4
        %v1175 = vadd.f32 %v1173, %v1174
        %v1176 = vrot.slane %v1175, 2
        %v1177 = vadd.f32 %v1175, %v1176
        %v1178 = vrot.slane %v1177, 1
        %v1179 = vadd.f32 %v1177, %v1178
        %v1180 = vadd.f32 %v1158, %v1162
        %v1181 = vadd.f32 %v1180, %v1166
        %v1182 = vadd.f32 %v1181, %v1170
        %v1183 = vrot.slane %v1182, 4
        %v1184 = vadd.f32 %v1182, %v1183
        %v1185 = vrot.slane %v1184, 2
        %v1186 = vadd.f32 %v1184, %v1185
        %v1187 = vrot.slane %v1186, 1
        %v1188 = vadd.f32 %v1186, %v1187
        %v1189 = vrcp.pop %v1179
        %v1190 = vrcp.pop %v1188
        %v1191 = vmul.f32 %v1156, %v1189
        %v1192 = vmul.f32 %v1158, %v1190
        %v1193 = vmul.f32 %v1160, %v1189
        %v1194 = vmul.f32 %v1162, %v1190
        %v1195 = vmul.f32 %v1164, %v1189
        %v1196 = vmul.f32 %v1166, %v1190
        %v1197 = vmul.f32 %v1168, %v1189
        %v1198 = vmul.f32 %v1170, %v1190
        %v1199 = vpack.c.bf16 %v1193, %v1191
        %v1200 = vpack.c.bf16 %v1194, %v1192
        %v1201 = vpack.c.bf16 %v1197, %v1195
        %v1202 = vpack.c.bf16 %v1198, %v1196
        %1203 = vmatprep.subr.bf16.mxu0 %v1200
        %1204 = vmatpush1.bf16.xpose.msra.mxu0 %v1199
        %1205 = vmatprep.subr.bf16.mxu0 %v1202
        %1206 = vmatpush1.bf16.xpose.msra.mxu0 %v1201
        %1207 = vmatprep.subr.bf16.mxu0 0
        %1208 = vmatpush1.bf16.xpose.msra.mxu0 0
        %1209 = vmatprep.subr.bf16.mxu0 0
        %1210 = vmatpush1.bf16.xpose.msra.mxu0 0
        %1211 = vmatprep.subr.bf16.mxu0 0
        %1212 = vmatpush1.bf16.xpose.msra.mxu0 0
        %1213 = vmatprep.subr.bf16.mxu0 0
        %1214 = vmatpush1.bf16.xpose.msra.mxu0 0
        %1215 = vmatprep.subr.bf16.mxu0 0
        %1216 = vmatpush1.bf16.xpose.msra.mxu0 0
        %1217 = vmatprep.subr.bf16.mxu0 0
        %1218 = vmatpush1.bf16.xpose.msra.mxu0 0
        %1219 = vmatprep.subr.bf16.mxu0 0
        %1220 = vmatpush1.bf16.xpose.msra.mxu0 0
        %1221 = vmatprep.subr.bf16.mxu0 0
        %1222 = vmatpush1.bf16.xpose.msra.mxu0 0
        %1223 = vmatprep.subr.bf16.mxu0 0
        %1224 = vmatpush1.bf16.xpose.msra.mxu0 0
        %1225 = vmatprep.subr.bf16.mxu0 0
        %1226 = vmatpush1.bf16.xpose.msra.mxu0 0
        %1227 = vmatprep.subr.bf16.mxu0 0
        %1228 = vmatpush1.bf16.xpose.msra.mxu0 0
        %1229 = vmatprep.subr.bf16.mxu0 0
        %1230 = vmatpush1.bf16.xpose.msra.mxu0 0
        %1231 = vmatprep.subr.bf16.mxu0 0
        %1232 = vmatpush1.bf16.xpose.msra.mxu0 0
        %1233 = vmatprep.subr.bf16.mxu0 0
        %1234 = vmatpush1.bf16.xpose.msra.mxu0 0
        %1235 = vmatprep.mubr.bf16.mxu0 %v471
        %1236 = vmatmul.mubr.bf16.gmra.mrb[0].mxu0 %v470
        %v1237 = vpop.f32.mrb[0].mxu0
        %v1238 = vadd.f32 0.0, %v1237
        %v1239 = vpop.f32.mrb[0].mxu0
        %v1240 = vpop.f32.mrb[0].mxu0
        %v1241 = vadd.f32 0.0, %v1240
        %v1242 = vpop.f32.mrb[0].mxu0
        %1243 = vmatprep.mubr.bf16.mxu0 %v473
        %1244 = vmatmul.mubr.bf16.gmra.mrb[0].mxu0 %v472
        %v1245 = vpop.f32.mrb[0].mxu0
        %v1246 = vadd.f32 0.0, %v1245
        %v1247 = vpop.f32.mrb[0].mxu0
        %v1248 = vpop.f32.mrb[0].mxu0
        %v1249 = vadd.f32 0.0, %v1248
        %v1250 = vpop.f32.mrb[0].mxu0
        %1251 = vmatprep.mubr.bf16.mxu0 %v475
        %1252 = vmatmul.mubr.bf16.gmra.mrb[0].mxu0 %v474
        %v1253 = vpop.f32.mrb[0].mxu0
        %v1254 = vadd.f32 0.0, %v1253
        %v1255 = vpop.f32.mrb[0].mxu0
        %v1256 = vpop.f32.mrb[0].mxu0
        %v1257 = vadd.f32 0.0, %v1256
        %v1258 = vpop.f32.mrb[0].mxu0
        %1259 = vmatprep.mubr.bf16.mxu0 %v477
        %1260 = vmatmul.mubr.bf16.gmra.mrb[0].mxu0 %v476
        %v1261 = vpop.f32.mrb[0].mxu0
        %v1262 = vadd.f32 0.0, %v1261
        %v1263 = vpop.f32.mrb[0].mxu0
        %v1264 = vpop.f32.mrb[0].mxu0
        %v1265 = vadd.f32 0.0, %v1264
        %v1266 = vpop.f32.mrb[0].mxu0
        %1267 = vmatprep.mubr.bf16.mxu0 %v469
        %1268 = vmatmul.mubr.bf16.gmra.mrb[0].mxu0 %v469
        %v1269 = vpop.f32.mrb[0].mxu0
        %v1270 = vadd.f32 0.0, %v1269
        %v1271 = vpop.f32.mrb[0].mxu0
        %v1272 = vpop.f32.mrb[0].mxu0
        %v1273 = vpop.f32.mrb[0].mxu0
        %1274 = vdwg.mxu0
        %v1275 = vadd.f32 %v1270, 1e-06
        %v1276 = vrcp.pop %v1275
        %v1277 = vlaneseq
        %v1278 = vshrl.u32 %v1277, 7
        %v1279 = vsub.s32 0, %v1278
        %v1280 = vrot.slane %v1276, %v1279
        %v1281 = vmul.f32 %v1238, %v1280
        %v1282 = vmul.f32 %v1241, %v1280
        %v1283 = vmul.f32 %v1246, %v1280
        %v1284 = vmul.f32 %v1249, %v1280
        %v1285 = vmul.f32 %v1254, %v1280
        %v1286 = vmul.f32 %v1257, %v1280
        %v1287 = vmul.f32 %v1262, %v1280
        %v1288 = vmul.f32 %v1265, %v1280
        %v1289 = vmul.f32 %v1281, %v1281
        %v1290 = vmul.f32 %v1282, %v1282
        %v1291 = vmul.f32 %v1283, %v1283
        %v1292 = vmul.f32 %v1284, %v1284
        %v1293 = vmul.f32 %v1285, %v1285
        %v1294 = vmul.f32 %v1286, %v1286
        %v1295 = vmul.f32 %v1287, %v1287
        %v1296 = vmul.f32 %v1288, %v1288
        %v1297 = vsel %vm726, %v1289, 0.0
        %v1298 = vsel %vm726, %v1290, 0.0
        %v1299 = vadd.f32 %v1297, %v1298
        %v1300 = vsel %vm726, %v1291, 0.0
        %v1301 = vadd.f32 %v1299, %v1300
        %v1302 = vsel %vm726, %v1292, 0.0
        %v1303 = vadd.f32 %v1301, %v1302
        %v1304 = vsel %vm726, %v1293, 0.0
        %v1305 = vadd.f32 %v1303, %v1304
        %v1306 = vsel %vm726, %v1294, 0.0
        %v1307 = vadd.f32 %v1305, %v1306
        %v1308 = vsel %vm726, %v1295, 0.0
        %v1309 = vadd.f32 %v1307, %v1308
        %v1310 = vsel %vm726, %v1296, 0.0
        %v1311 = vadd.f32 %v1309, %v1310
        %v1312 = vrot.slane %v1311, 4
        %v1313 = vadd.f32 %v1311, %v1312
        %v1314 = vrot.slane %v1313, 2
        %v1315 = vadd.f32 %v1313, %v1314
        %v1316 = vrot.slane %v1315, 1
        %v1317 = vadd.f32 %v1315, %v1316
        %v1318 = vrsqrt.pop %v1317
        %v1319 = vmul.f32 %v1317, %v1318
        %vm1320 = vcmp.eq.f32.partialorder %v1317, inf
        %v1321 = vsel %vm1320, %v1317, %v1319
        %vm1322 = vcmp.eq.f32.partialorder %v1317, 0.0
        %v1323 = vand.u32 %v1317, 2147483648
        %v1324 = vsel %vm1322, %v1323, %v1321
        %v1325 = vadd.f32 %v1324, 1e-06
        %v1326 = vrcp.pop %v1325
        %v1327 = vmul.f32 %v1281, %v1326
        %v1328 = vmul.f32 %v1282, %v1326
        %v1329 = vmul.f32 %v1283, %v1326
        %v1330 = vmul.f32 %v1284, %v1326
        %v1331 = vmul.f32 %v1285, %v1326
        %v1332 = vmul.f32 %v1286, %v1326
        %v1333 = vmul.f32 %v1287, %v1326
        %v1334 = vmul.f32 %v1288, %v1326
        %v1335 = vpack.c.bf16 %v1328, %v1327
        %v1336 = vpack.c.bf16 %v1330, %v1329
        %v1337 = vpack.c.bf16 %v1332, %v1331
        %v1338 = vpack.c.bf16 %v1334, %v1333
        %v1340 = vsel %vm726, %v1335, 0
        %v1343 = vsel %vm726, %v1336, 0
        %v1346 = vsel %vm726, %v1337, 0
        %v1349 = vsel %vm726, %v1338, 0
        %1351 = vmatprep.subr.bf16.mxu0 %v1200
        %1352 = vmatpush1.bf16.msra.mxu0 %v1199
        %1353 = vmatprep.subr.bf16.mxu0 %v1202
        %1354 = vmatpush1.bf16.msra.mxu0 %v1201
        %1355 = vmatprep.subr.bf16.mxu0 0
        %1356 = vmatpush1.bf16.msra.mxu0 0
        %1357 = vmatprep.subr.bf16.mxu0 0
        %1358 = vmatpush1.bf16.msra.mxu0 0
        %1359 = vmatprep.subr.bf16.mxu0 0
        %1360 = vmatpush1.bf16.msra.mxu0 0
        %1361 = vmatprep.subr.bf16.mxu0 0
        %1362 = vmatpush1.bf16.msra.mxu0 0
        %1363 = vmatprep.subr.bf16.mxu0 0
        %1364 = vmatpush1.bf16.msra.mxu0 0
        %1365 = vmatprep.subr.bf16.mxu0 0
        %1366 = vmatpush1.bf16.msra.mxu0 0
        %1367 = vmatprep.subr.bf16.mxu0 0
        %1368 = vmatpush1.bf16.msra.mxu0 0
        %1369 = vmatprep.subr.bf16.mxu0 0
        %1370 = vmatpush1.bf16.msra.mxu0 0
        %1371 = vmatprep.subr.bf16.mxu0 0
        %1372 = vmatpush1.bf16.msra.mxu0 0
        %1373 = vmatprep.subr.bf16.mxu0 0
        %1374 = vmatpush1.bf16.msra.mxu0 0
        %1375 = vmatprep.subr.bf16.mxu0 0
        %1376 = vmatpush1.bf16.msra.mxu0 0
        %1377 = vmatprep.subr.bf16.mxu0 0
        %1378 = vmatpush1.bf16.msra.mxu0 0
        %1379 = vmatprep.subr.bf16.mxu0 0
        %1380 = vmatpush1.bf16.msra.mxu0 0
        %1381 = vmatprep.subr.bf16.mxu0 0
        %1382 = vmatpush1.bf16.msra.mxu0 0
        %1383 = vmatprep.mubr.bf16.mxu0 0
        %1384 = vmatmul.mubr.bf16.gmra.mrb[0].mxu0 %v1340
        %v1385 = vpop.f32.mrb[0].mxu0
        %v1386 = vadd.f32 0.0, %v1385
        %v1387 = vpop.f32.mrb[0].mxu0
        %v1388 = vadd.f32 0.0, %v1387
        %v1389 = vpop.f32.mrb[0].mxu0
        %v1390 = vadd.f32 0.0, %v1389
        %v1391 = vpop.f32.mrb[0].mxu0
        %v1392 = vadd.f32 0.0, %v1391
        %1393 = vmatprep.mubr.bf16.mxu0 0
        %1394 = vmatmul.mubr.bf16.gmra.mrb[0].mxu0 %v1343
        %v1395 = vpop.f32.mrb[0].mxu0
        %v1396 = vadd.f32 0.0, %v1395
        %v1397 = vpop.f32.mrb[0].mxu0
        %v1398 = vadd.f32 0.0, %v1397
        %v1399 = vpop.f32.mrb[0].mxu0
        %v1400 = vadd.f32 0.0, %v1399
        %v1401 = vpop.f32.mrb[0].mxu0
        %v1402 = vadd.f32 0.0, %v1401
        %1403 = vmatprep.mubr.bf16.mxu0 0
        %1404 = vmatmul.mubr.bf16.gmra.mrb[0].mxu0 %v1346
        %v1405 = vpop.f32.mrb[0].mxu0
        %v1406 = vadd.f32 0.0, %v1405
        %v1407 = vpop.f32.mrb[0].mxu0
        %v1408 = vadd.f32 0.0, %v1407
        %v1409 = vpop.f32.mrb[0].mxu0
        %v1410 = vadd.f32 0.0, %v1409
        %v1411 = vpop.f32.mrb[0].mxu0
        %v1412 = vadd.f32 0.0, %v1411
        %1413 = vmatprep.mubr.bf16.mxu0 0
        %1414 = vmatmul.mubr.bf16.gmra.mrb[0].mxu0 %v1349
        %v1415 = vpop.f32.mrb[0].mxu0
        %v1416 = vadd.f32 0.0, %v1415
        %v1417 = vpop.f32.mrb[0].mxu0
        %v1418 = vadd.f32 0.0, %v1417
        %v1419 = vpop.f32.mrb[0].mxu0
        %v1420 = vadd.f32 0.0, %v1419
        %v1421 = vpop.f32.mrb[0].mxu0
        %v1422 = vadd.f32 0.0, %v1421
        %1423 = vdwg.mxu0
        %v1424 = vmax.f32 %v1386, 0.0
        %v1425 = vmax.f32 %v1388, 0.0
        %v1426 = vmax.f32 %v1390, 0.0
        %v1427 = vmax.f32 %v1392, 0.0
        %v1428 = vmax.f32 %v1396, 0.0
        %v1429 = vmax.f32 %v1398, 0.0
        %v1430 = vmax.f32 %v1400, 0.0
        %v1431 = vmax.f32 %v1402, 0.0
        %v1432 = vmax.f32 %v1406, 0.0
        %v1433 = vmax.f32 %v1408, 0.0
        %v1434 = vmax.f32 %v1410, 0.0
        %v1435 = vmax.f32 %v1412, 0.0
        %v1436 = vmax.f32 %v1416, 0.0
        %v1437 = vmax.f32 %v1418, 0.0
        %v1438 = vmax.f32 %v1420, 0.0
        %v1439 = vmax.f32 %v1422, 0.0
        %v1440 = vpack.c.bf16 %v1426, %v1424
        %v1441 = vpack.c.bf16 %v1427, %v1425
        %v1442 = vpack.c.bf16 %v1430, %v1428
        %v1443 = vpack.c.bf16 %v1431, %v1429
        %v1444 = vpack.c.bf16 %v1434, %v1432
        %v1445 = vpack.c.bf16 %v1435, %v1433
        %v1446 = vpack.c.bf16 %v1438, %v1436
        %v1447 = vpack.c.bf16 %v1439, %v1437
        %v1448 = vld [vmem:[%s3] sm:$0xff]
        %v1449 = vld [vmem:[%s3 + $0x8] sm:$0xff]
        %v1450 = vld [vmem:[%s3 + $0x10] sm:$0xff]
        %v1451 = vld [vmem:[%s3 + $0x18] sm:$0xff]
        %v1452 = vld [vmem:[%s3 + $0x20] sm:$0xff]
        %v1453 = vld [vmem:[%s3 + $0x28] sm:$0xff]
        %v1454 = vld [vmem:[%s3 + $0x30] sm:$0xff]
        %v1455 = vld [vmem:[%s3 + $0x38] sm:$0xff]
        %v1456 = vpack.c.bf16 %v1449, %v1448
        %v1457 = vpack.c.bf16 %v1451, %v1450
        %v1458 = vpack.c.bf16 %v1453, %v1452
        %v1459 = vpack.c.bf16 %v1455, %v1454
        %v1461 = vsel %vm376, %v1456, 0
        %v1464 = vsel %vm376, %v1457, 0
        %v1467 = vsel %vm376, %v1458, 0
        %v1470 = vsel %vm376, %v1459, 0
        %1472 = vmatprep.subr.bf16.mxu0 %v1441
        %1473 = vmatpush1.bf16.msra.mxu0 %v1440
        %1474 = vmatprep.subr.bf16.mxu0 %v1443
        %1475 = vmatpush1.bf16.msra.mxu0 %v1442
        %1476 = vmatprep.subr.bf16.mxu0 %v1445
        %1477 = vmatpush1.bf16.msra.mxu0 %v1444
        %1478 = vmatprep.subr.bf16.mxu0 %v1447
        %1479 = vmatpush1.bf16.msra.mxu0 %v1446
        %1480 = vmatprep.subr.bf16.mxu0 0
        %1481 = vmatpush1.bf16.msra.mxu0 0
        %1482 = vmatprep.subr.bf16.mxu0 0
        %1483 = vmatpush1.bf16.msra.mxu0 0
        %1484 = vmatprep.subr.bf16.mxu0 0
        %1485 = vmatpush1.bf16.msra.mxu0 0
        %1486 = vmatprep.subr.bf16.mxu0 0
        %1487 = vmatpush1.bf16.msra.mxu0 0
        %1488 = vmatprep.subr.bf16.mxu0 0
        %1489 = vmatpush1.bf16.msra.mxu0 0
        %1490 = vmatprep.subr.bf16.mxu0 0
        %1491 = vmatpush1.bf16.msra.mxu0 0
        %1492 = vmatprep.subr.bf16.mxu0 0
        %1493 = vmatpush1.bf16.msra.mxu0 0
        %1494 = vmatprep.subr.bf16.mxu0 0
        %1495 = vmatpush1.bf16.msra.mxu0 0
        %1496 = vmatprep.subr.bf16.mxu0 0
        %1497 = vmatpush1.bf16.msra.mxu0 0
        %1498 = vmatprep.subr.bf16.mxu0 0
        %1499 = vmatpush1.bf16.msra.mxu0 0
        %1500 = vmatprep.subr.bf16.mxu0 0
        %1501 = vmatpush1.bf16.msra.mxu0 0
        %1502 = vmatprep.subr.bf16.mxu0 0
        %1503 = vmatpush1.bf16.msra.mxu0 0
        %1504 = vmatprep.mubr.bf16.mxu0 0
        %1505 = vmatmul.mubr.bf16.gmra.mrb[0].mxu0 %v1461
        %v1506 = vpop.f32.mrb[0].mxu0
        %v1507 = vadd.f32 %v312, %v1506
        %v1508 = vpop.f32.mrb[0].mxu0
        %v1509 = vadd.f32 %v313, %v1508
        %v1510 = vpop.f32.mrb[0].mxu0
        %v1511 = vadd.f32 %v314, %v1510
        %v1512 = vpop.f32.mrb[0].mxu0
        %v1513 = vadd.f32 %v315, %v1512
        %1514 = vmatprep.mubr.bf16.mxu0 0
        %1515 = vmatmul.mubr.bf16.gmra.mrb[0].mxu0 %v1464
        %v1516 = vpop.f32.mrb[0].mxu0
        %v1517 = vadd.f32 %v316, %v1516
        %v1518 = vpop.f32.mrb[0].mxu0
        %v1519 = vadd.f32 %v317, %v1518
        %v1520 = vpop.f32.mrb[0].mxu0
        %v1521 = vadd.f32 %v318, %v1520
        %v1522 = vpop.f32.mrb[0].mxu0
        %v1523 = vadd.f32 %v319, %v1522
        %1524 = vmatprep.mubr.bf16.mxu0 0
        %1525 = vmatmul.mubr.bf16.gmra.mrb[0].mxu0 %v1467
        %v1526 = vpop.f32.mrb[0].mxu0
        %v1527 = vadd.f32 %v320, %v1526
        %v1528 = vpop.f32.mrb[0].mxu0
        %v1529 = vadd.f32 %v321, %v1528
        %v1530 = vpop.f32.mrb[0].mxu0
        %v1531 = vadd.f32 %v322, %v1530
        %v1532 = vpop.f32.mrb[0].mxu0
        %v1533 = vadd.f32 %v323, %v1532
        %1534 = vmatprep.mubr.bf16.mxu0 0
        %1535 = vmatmul.mubr.bf16.gmra.mrb[0].mxu0 %v1470
        %v1536 = vpop.f32.mrb[0].mxu0
        %v1537 = vadd.f32 %v324, %v1536
        %v1538 = vpop.f32.mrb[0].mxu0
        %v1539 = vadd.f32 %v325, %v1538
        %v1540 = vpop.f32.mrb[0].mxu0
        %v1541 = vadd.f32 %v326, %v1540
        %v1542 = vpop.f32.mrb[0].mxu0
        %v1543 = vadd.f32 %v327, %v1542
        %1544 = vdwg.mxu0
        %v1545 = vmax.f32 %v1507, 0.0
        %v1546 = vmax.f32 %v1509, 0.0
        %v1547 = vmax.f32 %v1511, 0.0
        %v1548 = vmax.f32 %v1513, 0.0
        %v1549 = vmax.f32 %v1517, 0.0
        %v1550 = vmax.f32 %v1519, 0.0
        %v1551 = vmax.f32 %v1521, 0.0
        %v1552 = vmax.f32 %v1523, 0.0
        %v1553 = vmax.f32 %v1527, 0.0
        %v1554 = vmax.f32 %v1529, 0.0
        %v1555 = vmax.f32 %v1531, 0.0
        %v1556 = vmax.f32 %v1533, 0.0
        %v1557 = vmax.f32 %v1537, 0.0
        %v1558 = vmax.f32 %v1539, 0.0
        %v1559 = vmax.f32 %v1541, 0.0
        %v1560 = vmax.f32 %v1543, 0.0
        %1561 = vst [vmem:[%s270] sm:$0xff] %v1545
        %1562 = vst [vmem:[%s270 + $0x8] sm:$0xff] %v1546
        %1563 = vst [vmem:[%s270 + $0x10] sm:$0xff] %v1547
        %1564 = vst [vmem:[%s270 + $0x18] sm:$0xff] %v1548
        %1565 = vst [vmem:[%s270 + $0x20] sm:$0xff] %v1549
        %1566 = vst [vmem:[%s270 + $0x28] sm:$0xff] %v1550
        %1567 = vst [vmem:[%s270 + $0x30] sm:$0xff] %v1551
        %1568 = vst [vmem:[%s270 + $0x38] sm:$0xff] %v1552
        %1569 = vst [vmem:[%s270 + $0x40] sm:$0xff] %v1553
        %1570 = vst [vmem:[%s270 + $0x48] sm:$0xff] %v1554
        %1571 = vst [vmem:[%s270 + $0x50] sm:$0xff] %v1555
        %1572 = vst [vmem:[%s270 + $0x58] sm:$0xff] %v1556
        %1573 = vst [vmem:[%s270 + $0x60] sm:$0xff] %v1557
        %1574 = vst [vmem:[%s270 + $0x68] sm:$0xff] %v1558
        %1575 = vst [vmem:[%s270 + $0x70] sm:$0xff] %v1559
        %1576 = vst [vmem:[%s270 + $0x78] sm:$0xff] %v1560
        %1577 = vst.msk [vmem:[%s282] sm:$0xff] %vm726, %v1327
        %1578 = vst.msk [vmem:[%s282 + $0x8] sm:$0xff] %vm726, %v1328
        %1579 = vst.msk [vmem:[%s282 + $0x10] sm:$0xff] %vm726, %v1329
        %1580 = vst.msk [vmem:[%s282 + $0x18] sm:$0xff] %vm726, %v1330
        %1581 = vst.msk [vmem:[%s282 + $0x20] sm:$0xff] %vm726, %v1331
        %1582 = vst.msk [vmem:[%s282 + $0x28] sm:$0xff] %vm726, %v1332
        %1583 = vst.msk [vmem:[%s282 + $0x30] sm:$0xff] %vm726, %v1333
        %1584 = vst.msk [vmem:[%s282 + $0x38] sm:$0xff] %vm726, %v1334
        %s1585 = sand.u32 %s142, 1
        %s1586 = scalar_lea.sflag [#allocation4], %s1585
        %s1587 = sand.u32 %s142, 1
        %s1588 = smul.addr %s1587, 128
        %s1589 = scalar_lea.vmem [#allocation5], %s1588
        %p1590 = scmp.lt.s32.totalorder %s24, 1
        %s1591 = scalar_select %p1590, %s24, 1
        %s1592 = smul.addr %s1591, 8
        %s1593 = smul.addr %s1592, 8
        %s1594 = scalar_lea.vmem %s6, %s1593
        // Predicated region
        $region45: #{tpu_custom_call.1} parent=39 // pred_check
          %p1595 = pneg %p152
        $region46: #{tpu_custom_call.1} parent=39 // pred_check_branch
          %1597 = sbr.rel (%p1595) target = $region48
        $region47: #{tpu_custom_call.1} parent=39 // pred_region
          %s1599 = ssub.s32 2048, 2048
          %1600 = vsyncadd %s1586, %s1599
          %s1601 = smul.addr %s24, 16
          %s1602 = smul.addr %s1601, 128
          %s1603 = scalar_lea.hbm %s5, %s1602
          %s1604 = sshll.u32 %s1589, 4
          %s1605 = int_to_ptr.vmem [resolvable:$true] %s1604
          %1610 = dma.vmem_to_hbm [thread:$0]  %s1605, 2048, %s1603, %s1586, 256, 256, 16
        $region48: #{tpu_custom_call.1} parent=39 // pred_fallthru
          _
        // Predicated region
        $region49: #{tpu_custom_call.1} parent=39 // pred_check
          %p1611 = pneg %p178
        $region50: #{tpu_custom_call.1} parent=39 // pred_check_branch
          %1613 = sbr.rel (%p1611) target = $region52
        $region51: #{tpu_custom_call.1} parent=39 // pred_region
          _
        $region52: #{tpu_custom_call.1} parent=39 // pred_fallthru
          _
      $region40: #{tpu_custom_call.1} parent=5 // pred_fallthru
        _
      %p1614 = scmp.le.s32.totalorder 2, %s19
      // Predicated region
      $region53: #{tpu_custom_call.1} parent=5 // pred_check
        %p1615 = pneg %p1614
      $region54: #{tpu_custom_call.1} parent=5 // pred_check_branch
        %1617 = sbr.rel (%p1615) target = $region56
      $region55: #{tpu_custom_call.1} parent=5 // pred_region
        %s1618 = ssub.s32 %s19, 2
        // Predicated region
        $region57: #{tpu_custom_call.1} parent=55 // pred_check
          %p1619 = pneg %p158
        $region58: #{tpu_custom_call.1} parent=55 // pred_check_branch
          %1621 = sbr.rel (%p1619) target = $region60
        $region59: #{tpu_custom_call.1} parent=55 // pred_region
          %s1622 = sand.u32 %s143, 1
          %s1623 = scalar_lea.sflag [#allocation4], %s1622
          %s1624 = sand.u32 %s143, 1
          %s1625 = smul.addr %s1624, 128
          %s1626 = scalar_lea.vmem [#allocation5], %s1625
          %1627 = dma.done %s1623, 2048
        $region60: #{tpu_custom_call.1} parent=55 // pred_fallthru
          _
        // Predicated region
        $region61: #{tpu_custom_call.1} parent=55 // pred_check
          %p1628 = pneg %p184
        $region62: #{tpu_custom_call.1} parent=55 // pred_check_branch
          %1630 = sbr.rel (%p1628) target = $region64
        $region63: #{tpu_custom_call.1} parent=55 // pred_region
          %p1631 = scmp.lt.s32.totalorder %s25, 1
          %s1632 = scalar_select %p1631, %s25, 1
          %s1633 = smul.addr %s1632, 8
          %s1634 = smul.addr %s1633, 8
          %s1635 = scalar_lea.vmem %s6, %s1634
        $region64: #{tpu_custom_call.1} parent=55 // pred_fallthru
          _
      $region56: #{tpu_custom_call.1} parent=5 // pred_fallthru
        _
    $region6: #{tpu_custom_call.1} parent=1 // loop_footer
      %s23 = sadd.s32 1, %s19
    $region7: #{tpu_custom_call.1} parent=1 // loop_footer_branch
      %18 = sbr.rel target = $region3
    $region8: #{tpu_custom_call.1} parent=1 // loop_exit
      _
    %1636 = vsyncpa [#allocation3], 1
    %s1637 = scalar_lea.sflag [#allocation3], 1
    %1638 = vsyncpa %s1637, 1
    %1639 = vsyncpa [#allocation4], 1
    %s1640 = scalar_lea.sflag [#allocation4], 1
    %1641 = vsyncpa %s1640, 1

</llo_original>
